<compile_context>
chip_gen: v7x
topology: tpu7x:2x2x1
jax: 0.10.0
libtpu: 0.0.40
codegen_flags: <defaults>
</compile_context>

<pallas_src>
import functools

import jax
import jax.numpy as jnp
from jax import lax
from jax.experimental import pallas as pl
from jax.experimental.pallas import tpu as pltpu


def _round_up(x: int, m: int) -> int:
    return (x + m - 1) // m * m


def _moglstm_kernel(x_ref, w_hbm, q_hbm, r_hbm, b_ref,      # inputs
                    hseq_ref, cT_ref,                        # outputs
                    w_vmem, q_vmem, r_vmem, h_sc, c_sc, dma_sem,  # scratch
                    *, t_chunk: int, mog_iterations: int, seq_len: int,
                    mask_tail: bool, unroll):
    tb = pl.program_id(0)

    # One-time setup: DMA the loop-invariant weights HBM -> VMEM (single
    # buffered, resident for the whole grid) and zero the recurrent carry.
    @pl.when(tb == 0)
    def _init():
        cw = pltpu.make_async_copy(w_hbm, w_vmem, dma_sem.at[0]); cw.start()
        cq = pltpu.make_async_copy(q_hbm, q_vmem, dma_sem.at[1]); cq.start()
        cr = pltpu.make_async_copy(r_hbm, r_vmem, dma_sem.at[2]); cr.start()
        cw.wait(); cq.wait(); cr.wait()
        h_sc[...] = jnp.zeros_like(h_sc)
        c_sc[...] = jnp.zeros_like(c_sc)

    # Hoist loop-invariant loads out of the timestep loop.
    w = w_vmem[...]          # (D_pad + H_pad, 4*H_pad) bf16
    q = q_vmem[...]          # (H_pad, D_pad) bf16
    r = r_vmem[...]          # (D_pad, H_pad) bf16
    bias = b_ref[...]        # (1, 4*H_pad) f32 (bih + bhh, pre-summed)
    cdt = w.dtype            # MXU input dtype (bf16)
    H_pad = h_sc.shape[-1]

    def step(s, carry):
        ht, ct = carry
        xt = x_ref[s].astype(jnp.float32)      # (B_pad, D_pad), time-major load

        # --- mogrify (static unroll; mog_iterations is compile-time) -------
        for i in range(1, mog_iterations + 1):
            if i % 2 == 0:
                ht = 2.0 * jax.nn.sigmoid(
                    jnp.dot(xt.astype(cdt), r,
                            preferred_element_type=jnp.float32)) * ht
            else:
                xt = 2.0 * jax.nn.sigmoid(
                    jnp.dot(ht.astype(cdt), q,
                            preferred_element_type=jnp.float32)) * xt

        # --- fused LSTM gate matmul ----------------------------------------
        xh = jnp.concatenate([xt.astype(cdt), ht.astype(cdt)], axis=-1)
        gates = jnp.dot(xh, w, preferred_element_type=jnp.float32) + bias

        ig = gates[:, 0 * H_pad:1 * H_pad]
        fg = gates[:, 1 * H_pad:2 * H_pad]
        gg = gates[:, 2 * H_pad:3 * H_pad]
        og = gates[:, 3 * H_pad:4 * H_pad]

        it = jax.nn.sigmoid(ig)
        ft = jax.nn.sigmoid(fg)
        cc = jnp.tanh(gg)
        ot = jax.nn.sigmoid(og)

        ct_new = ft * ct + it * cc
        ht_new = ot * jnp.tanh(ct_new)

        # Lane-dense contiguous (B_pad, H_pad) store at timestep s.
        hseq_ref[s] = ht_new.astype(hseq_ref.dtype)

        if mask_tail:
            # Steps beyond the real sequence length (seq padding) must not
            # advance the recurrent state.
            valid = (tb * t_chunk + s) < seq_len
            ht_new = jnp.where(valid, ht_new, ht)
            ct_new = jnp.where(valid, ct_new, ct)
        return ht_new, ct_new

    ht, ct = lax.fori_loop(0, t_chunk, step, (h_sc[...], c_sc[...]),
                           unroll=unroll)
    h_sc[...] = ht
    c_sc[...] = ct

    # Final cell state is written once, on the last grid step.
    @pl.when(tb == pl.num_programs(0) - 1)
    def _fin():
        cT_ref[...] = ct


def _prep_params(params, D, H, D_pad, H_pad, weight_dtype):
    """Fuse + pad parameters for the kernel."""
    Wih, Whh = params["Wih"], params["Whh"]
    bih, bhh = params["bih"], params["bhh"]
    Q, R = params["Q"], params["R"]

    # Fused gate weight: rows [0, D) are Wih, rows [D_pad, D_pad+H) are Whh;
    # each of the 4 gate column-chunks is padded H -> H_pad.
    W = jnp.zeros((D_pad + H_pad, 4, H_pad), jnp.float32)
    W = W.at[:D, :, :H].set(Wih.reshape(D, 4, H))
    W = W.at[D_pad:D_pad + H, :, :H].set(Whh.reshape(H, 4, H))
    W = W.reshape(D_pad + H_pad, 4 * H_pad).astype(weight_dtype)

    b = jnp.zeros((4, H_pad), jnp.float32)
    b = b.at[:, :H].set((bih + bhh).reshape(4, H))
    b = b.reshape(1, 4 * H_pad)

    Qp = jnp.zeros((H_pad, D_pad), jnp.float32).at[:H, :D].set(Q)
    Rp = jnp.zeros((D_pad, H_pad), jnp.float32).at[:D, :H].set(R)
    return W, Qp.astype(weight_dtype), Rp.astype(weight_dtype), b


def moglstm_forward(x, params, mog_iterations: int, *, time_chunk: int = 16):
    """x: (batch, seq, input). Returns (hidden_seq, (ht, Ct)) like the module."""
    B, S, D = x.shape
    H = params["Whh"].shape[0]
    weight_dtype = jnp.bfloat16   # MXU fast path; f32 accumulation inside.

    # vreg/MXU friendly padding.
    B_pad = _round_up(B, 8)
    D_pad = _round_up(D, 128)
    H_pad = _round_up(H, 128)

    # Time chunking: t_chunk is a multiple of 8; seq padded to a multiple.
    t_chunk = min(_round_up(time_chunk, 8), _round_up(S, 8))
    S_pad = _round_up(S, t_chunk)
    mask_tail = (S_pad != S)

    W, Qp, Rp, b = _prep_params(params, D, H, D_pad, H_pad, weight_dtype)

    # Pad x and go time-major: (S_pad, B_pad, D_pad).
    xp = jnp.pad(x.astype(jnp.float32),
                 ((0, B_pad - B), (0, S_pad - S), (0, D_pad - D)))
    xp = jnp.transpose(xp, (1, 0, 2))

    kernel = functools.partial(
        _moglstm_kernel,
        t_chunk=t_chunk,
        mog_iterations=mog_iterations,
        seq_len=S,
        mask_tail=mask_tail,
        unroll=True if t_chunk <= 16 else False,
    )

    grid_spec = pltpu.PrefetchScalarGridSpec(
        num_scalar_prefetch=0,
        grid=(S_pad // t_chunk,),   # sequential recurrence over time chunks
        in_specs=[
            pl.BlockSpec((t_chunk, B_pad, D_pad), lambda t: (t, 0, 0)),  # x
            pl.BlockSpec(memory_space=pl.ANY),   # fused gate weights (HBM)
            pl.BlockSpec(memory_space=pl.ANY),   # Q (HBM)
            pl.BlockSpec(memory_space=pl.ANY),   # R (HBM)
            pl.BlockSpec((1, 4 * H_pad), lambda t: (0, 0)),              # bias
        ],
        out_specs=[
            pl.BlockSpec((t_chunk, B_pad, H_pad), lambda t: (t, 0, 0)),  # hseq
            pl.BlockSpec((B_pad, H_pad), lambda t: (0, 0)),              # Ct
        ],
        scratch_shapes=[
            pltpu.VMEM((D_pad + H_pad, 4 * H_pad), weight_dtype),  # W resident
            pltpu.VMEM((H_pad, D_pad), weight_dtype),              # Q resident
            pltpu.VMEM((D_pad, H_pad), weight_dtype),              # R resident
            pltpu.VMEM((B_pad, H_pad), jnp.float32),               # h carry
            pltpu.VMEM((B_pad, H_pad), jnp.float32),               # c carry
            pltpu.SemaphoreType.DMA((3,)),                         # weight DMAs
        ],
    )

    hseq_tm, cT_pad = pl.pallas_call(
        kernel,
        out_shape=(
            jax.ShapeDtypeStruct((S_pad, B_pad, H_pad), jnp.float32),
            jax.ShapeDtypeStruct((B_pad, H_pad), jnp.float32),
        ),
        grid_spec=grid_spec,
        compiler_params=pltpu.CompilerParams(
            dimension_semantics=("arbitrary",),      # recurrence: in-order
            vmem_limit_bytes=48 * 1024 * 1024,       # fits v7x's 64 MiB budget
        ),
    )(xp, W, Qp, Rp, b)

    hidden_seq = jnp.transpose(hseq_tm, (1, 0, 2))[:B, :S, :H]
    hT = hidden_seq[:, -1, :]
    cT = cT_pad[:B, :H]
    return hidden_seq, (hT, cT)


# ---------------------------------------------------------------------------
# Parameter init (matches module __init__ shapes; xavier_uniform / zeros)
# ---------------------------------------------------------------------------
def init_params(key, input_sz, hidden_sz):
    def xavier(k, shape):
        fan_in, fan_out = shape[0], shape[1]
        bound = jnp.sqrt(6.0 / (fan_in + fan_out))
        return jax.random.uniform(k, shape, jnp.float32, -bound, bound)

    k1, k2, k3, k4 = jax.random.split(key, 4)
    return {
        "Wih": xavier(k1, (input_sz, hidden_sz * 4)),
        "Whh": xavier(k2, (hidden_sz, hidden_sz * 4)),
        "bih": jnp.zeros((hidden_sz * 4,), jnp.float32),
        "bhh": jnp.zeros((hidden_sz * 4,), jnp.float32),
        "Q":   xavier(k3, (hidden_sz, input_sz)),
        "R":   xavier(k4, (input_sz, hidden_sz)),
    }


# ---------------------------------------------------------------------------
# Pure-JAX f32 reference (mirrors the PyTorch forward) for correctness check
# ---------------------------------------------------------------------------
def moglstm_reference(x, params, mog_iterations):
    B, S, D = x.shape
    H = params["Whh"].shape[0]
    ht = jnp.zeros((B, H), jnp.float32)
    ct = jnp.zeros((B, H), jnp.float32)
    hs = []
    for t in range(S):
        xt = x[:, t, :]
        for i in range(1, mog_iterations + 1):
            if i % 2 == 0:
                ht = 2.0 * jax.nn.sigmoid(xt @ params["R"]) * ht
            else:
                xt = 2.0 * jax.nn.sigmoid(ht @ params["Q"]) * xt
        gates = xt @ params["Wih"] + params["bih"] + ht @ params["Whh"] + params["bhh"]
        ig, fg, gg, og = jnp.split(gates, 4, axis=1)
        ft, it = jax.nn.sigmoid(fg), jax.nn.sigmoid(ig)
        cc, ot = jnp.tanh(gg), jax.nn.sigmoid(og)
        ct = ft * ct + it * cc
        ht = ot * jnp.tanh(ct)
        hs.append(ht)
    return jnp.stack(hs, axis=1), (ht, ct)


if __name__ == "__main__":
    batch, seq, input_sz, hidden_sz = 2, 8, 16, 32
    mog_iterations = 4

    key = jax.random.PRNGKey(0)
    kx, kp = jax.random.split(key)
    x = jax.random.normal(kx, (batch, seq, input_sz), jnp.float32)
    params = init_params(kp, input_sz, hidden_sz)

    hidden_seq, (hT, cT) = moglstm_forward(x, params, mog_iterations)
    jax.block_until_ready((hidden_seq, hT, cT))

    ref_seq, (ref_h, ref_c) = moglstm_reference(x, params, mog_iterations)
    assert hidden_seq.shape == (batch, seq, hidden_sz)
    # Tolerance loosened slightly vs pure-f32: the kernel feeds the MXU bf16
    # weights/activations (with f32 accumulation).
    assert jnp.allclose(hidden_seq, ref_seq, rtol=2e-2, atol=2e-2)
    assert jnp.allclose(hT, ref_h, rtol=2e-2, atol=2e-2)
    assert jnp.allclose(cT, ref_c, rtol=2e-2, atol=2e-2)

    print("KERNEL_OK")
</pallas_src>

<mosaic_0001>
module attributes {stable_mosaic.version = 11 : i64} {
  func.func @_moglstm_kernel(%arg0: i32, %arg1: memref<8x8x128xf32, #tpu.memory_space<vmem>>, %arg2: memref<256x512xbf16, #tpu.memory_space<any>>, %arg3: memref<128x128xbf16, #tpu.memory_space<any>>, %arg4: memref<128x128xbf16, #tpu.memory_space<any>>, %arg5: memref<1x512xf32, #tpu.memory_space<vmem>>, %arg6: memref<8x8x128xf32, #tpu.memory_space<vmem>>, %arg7: memref<8x128xf32, #tpu.memory_space<vmem>>, %arg8: memref<256x512xbf16, #tpu.memory_space<vmem>>, %arg9: memref<128x128xbf16, #tpu.memory_space<vmem>>, %arg10: memref<128x128xbf16, #tpu.memory_space<vmem>>, %arg11: memref<8x128xf32, #tpu.memory_space<vmem>>, %arg12: memref<8x128xf32, #tpu.memory_space<vmem>>, %arg13: memref<3x!tpu.dma_semaphore, #tpu.memory_space<semaphore_mem>>) attributes {dimension_semantics = [#tpu.dimension_semantics<arbitrary>], iteration_bounds = array<i64: 1>, scalar_prefetch = 0 : i64, scratch_operands = 6 : i64, tpu.core_type = #tpu.core_type<tc>, window_params = [{transform_indices = @transform_0, window_bounds = array<i64: 8, 8, 128>}, {}, {}, {}, {pipeline_mode = #tpu.pipeline_mode<synchronous>, transform_indices = @transform_4, window_bounds = array<i64: 1, 512>}, {transform_indices = @transform_5, window_bounds = array<i64: 8, 8, 128>}, {pipeline_mode = #tpu.pipeline_mode<synchronous>, transform_indices = @transform_6, window_bounds = array<i64: 8, 128>}]} {
    %c0_i32 = arith.constant 0 : i32
    %0 = arith.cmpi eq, %arg0, %c0_i32 : i32
    %1 = arith.extui %0 : i1 to i32
    %c0_i32_0 = arith.constant 0 : i32
    %2 = arith.cmpi ne, %1, %c0_i32_0 : i32
    scf.if %2 {
      %c0_i32_178 = arith.constant 0 : i32
      %638 = tpu.memref_slice %arg13[%c0_i32_178] : memref<3x!tpu.dma_semaphore, #tpu.memory_space<semaphore_mem>> -> memref<1x!tpu.dma_semaphore, #tpu.memory_space<semaphore_mem>>
      %639 = tpu.memref_squeeze %638 : memref<1x!tpu.dma_semaphore, #tpu.memory_space<semaphore_mem>> -> memref<!tpu.dma_semaphore, #tpu.memory_space<semaphore_mem>>
      tpu.enqueue_dma source(%arg2 : memref<256x512xbf16, #tpu.memory_space<any>>) target(%arg8 : memref<256x512xbf16, #tpu.memory_space<vmem>>) target_semaphore(%639 : memref<!tpu.dma_semaphore, #tpu.memory_space<semaphore_mem>>)
      %c1_i32_179 = arith.constant 1 : i32
      %640 = tpu.memref_slice %arg13[%c1_i32_179] : memref<3x!tpu.dma_semaphore, #tpu.memory_space<semaphore_mem>> -> memref<1x!tpu.dma_semaphore, #tpu.memory_space<semaphore_mem>>
      %641 = tpu.memref_squeeze %640 : memref<1x!tpu.dma_semaphore, #tpu.memory_space<semaphore_mem>> -> memref<!tpu.dma_semaphore, #tpu.memory_space<semaphore_mem>>
      tpu.enqueue_dma source(%arg3 : memref<128x128xbf16, #tpu.memory_space<any>>) target(%arg9 : memref<128x128xbf16, #tpu.memory_space<vmem>>) target_semaphore(%641 : memref<!tpu.dma_semaphore, #tpu.memory_space<semaphore_mem>>)
      %c2_i32_180 = arith.constant 2 : i32
      %642 = tpu.memref_slice %arg13[%c2_i32_180] : memref<3x!tpu.dma_semaphore, #tpu.memory_space<semaphore_mem>> -> memref<1x!tpu.dma_semaphore, #tpu.memory_space<semaphore_mem>>
      %643 = tpu.memref_squeeze %642 : memref<1x!tpu.dma_semaphore, #tpu.memory_space<semaphore_mem>> -> memref<!tpu.dma_semaphore, #tpu.memory_space<semaphore_mem>>
      tpu.enqueue_dma source(%arg4 : memref<128x128xbf16, #tpu.memory_space<any>>) target(%arg10 : memref<128x128xbf16, #tpu.memory_space<vmem>>) target_semaphore(%643 : memref<!tpu.dma_semaphore, #tpu.memory_space<semaphore_mem>>)
      %c0_i32_181 = arith.constant 0 : i32
      %644 = tpu.memref_slice %arg13[%c0_i32_181] : memref<3x!tpu.dma_semaphore, #tpu.memory_space<semaphore_mem>> -> memref<1x!tpu.dma_semaphore, #tpu.memory_space<semaphore_mem>>
      %645 = tpu.memref_squeeze %644 : memref<1x!tpu.dma_semaphore, #tpu.memory_space<semaphore_mem>> -> memref<!tpu.dma_semaphore, #tpu.memory_space<semaphore_mem>>
      tpu.wait_dma2 semaphore(%645 : memref<!tpu.dma_semaphore, #tpu.memory_space<semaphore_mem>>) src(%arg2 : memref<256x512xbf16, #tpu.memory_space<any>>) dst(%arg8 : memref<256x512xbf16, #tpu.memory_space<vmem>>)
      %c1_i32_182 = arith.constant 1 : i32
      %646 = tpu.memref_slice %arg13[%c1_i32_182] : memref<3x!tpu.dma_semaphore, #tpu.memory_space<semaphore_mem>> -> memref<1x!tpu.dma_semaphore, #tpu.memory_space<semaphore_mem>>
      %647 = tpu.memref_squeeze %646 : memref<1x!tpu.dma_semaphore, #tpu.memory_space<semaphore_mem>> -> memref<!tpu.dma_semaphore, #tpu.memory_space<semaphore_mem>>
      tpu.wait_dma2 semaphore(%647 : memref<!tpu.dma_semaphore, #tpu.memory_space<semaphore_mem>>) src(%arg3 : memref<128x128xbf16, #tpu.memory_space<any>>) dst(%arg9 : memref<128x128xbf16, #tpu.memory_space<vmem>>)
      %c2_i32_183 = arith.constant 2 : i32
      %648 = tpu.memref_slice %arg13[%c2_i32_183] : memref<3x!tpu.dma_semaphore, #tpu.memory_space<semaphore_mem>> -> memref<1x!tpu.dma_semaphore, #tpu.memory_space<semaphore_mem>>
      %649 = tpu.memref_squeeze %648 : memref<1x!tpu.dma_semaphore, #tpu.memory_space<semaphore_mem>> -> memref<!tpu.dma_semaphore, #tpu.memory_space<semaphore_mem>>
      tpu.wait_dma2 semaphore(%649 : memref<!tpu.dma_semaphore, #tpu.memory_space<semaphore_mem>>) src(%arg4 : memref<128x128xbf16, #tpu.memory_space<any>>) dst(%arg10 : memref<128x128xbf16, #tpu.memory_space<vmem>>)
      %cst_184 = arith.constant 0.000000e+00 : f32
      %650 = vector.broadcast %cst_184 : f32 to vector<8x128xf32>
      %c0_185 = arith.constant 0 : index
      %c0_186 = arith.constant 0 : index
      %651 = vector.load %arg11[%c0_185, %c0_186] : memref<8x128xf32, #tpu.memory_space<vmem>>, vector<8x128xf32>
      tpu.vector_store %arg11[%c0_185, %c0_186], %650 {strides = array<i32>} : memref<8x128xf32, #tpu.memory_space<vmem>>, vector<8x128xf32>,
      %cst_187 = arith.constant 0.000000e+00 : f32
      %652 = vector.broadcast %cst_187 : f32 to vector<8x128xf32>
      %c0_188 = arith.constant 0 : index
      %c0_189 = arith.constant 0 : index
      %653 = vector.load %arg12[%c0_188, %c0_189] : memref<8x128xf32, #tpu.memory_space<vmem>>, vector<8x128xf32>
      tpu.vector_store %arg12[%c0_188, %c0_189], %652 {strides = array<i32>} : memref<8x128xf32, #tpu.memory_space<vmem>>, vector<8x128xf32>,
    } else {
    }
    %c0 = arith.constant 0 : index
    %c0_1 = arith.constant 0 : index
    %3 = vector.load %arg8[%c0, %c0_1] : memref<256x512xbf16, #tpu.memory_space<vmem>>, vector<256x512xbf16>
    %c0_2 = arith.constant 0 : index
    %c0_3 = arith.constant 0 : index
    %4 = vector.load %arg9[%c0_2, %c0_3] : memref<128x128xbf16, #tpu.memory_space<vmem>>, vector<128x128xbf16>
    %c0_4 = arith.constant 0 : index
    %c0_5 = arith.constant 0 : index
    %5 = vector.load %arg10[%c0_4, %c0_5] : memref<128x128xbf16, #tpu.memory_space<vmem>>, vector<128x128xbf16>
    %c0_6 = arith.constant 0 : index
    %c0_7 = arith.constant 0 : index
    %6 = vector.load %arg5[%c0_6, %c0_7] : memref<1x512xf32, #tpu.memory_space<vmem>>, vector<1x512xf32>
    %c0_8 = arith.constant 0 : index
    %c0_9 = arith.constant 0 : index
    %7 = vector.load %arg11[%c0_8, %c0_9] : memref<8x128xf32, #tpu.memory_space<vmem>>, vector<8x128xf32>
    %c0_10 = arith.constant 0 : index
    %c0_11 = arith.constant 0 : index
    %8 = vector.load %arg12[%c0_10, %c0_11] : memref<8x128xf32, #tpu.memory_space<vmem>>, vector<8x128xf32>
    %c0_i32_12 = arith.constant 0 : i32
    %9 = arith.index_cast %c0_i32_12 : i32 to index
    %c0_13 = arith.constant 0 : index
    %c0_14 = arith.constant 0 : index
    %10 = vector.load %arg1[%9, %c0_13, %c0_14] : memref<8x8x128xf32, #tpu.memory_space<vmem>>, vector<1x8x128xf32>
    %11 = vector.shape_cast %10 : vector<1x8x128xf32> to vector<8x128xf32>
    %12 = arith.truncf %7 : vector<8x128xf32> to vector<8x128xbf16>
    %cst = arith.constant dense<0.000000e+00> : vector<8x128xf32>
    %13 = tpu.matmul %12, %4, %cst {dimension_numbers = #tpu.dot_dimension_numbers<[1], [0], [0], [1], [0, 0, 1, 1], [], []>} : vector<8x128xbf16>, vector<128x128xbf16>, vector<8x128xf32> -> vector<8x128xf32>
    %14 = arith.negf %13 : vector<8x128xf32>
    %15 = math.exp %14 : vector<8x128xf32>
    %cst_15 = arith.constant 1.000000e+00 : f32
    %16 = vector.broadcast %cst_15 : f32 to vector<8x128xf32>
    %17 = arith.addf %16, %15 : vector<8x128xf32>
    %18 = arith.divf %16, %17 : vector<8x128xf32>
    %cst_16 = arith.constant 2.000000e+00 : f32
    %19 = vector.broadcast %cst_16 : f32 to vector<8x128xf32>
    %20 = arith.mulf %19, %18 : vector<8x128xf32>
    %21 = arith.mulf %20, %11 : vector<8x128xf32>
    %22 = arith.truncf %21 : vector<8x128xf32> to vector<8x128xbf16>
    %cst_17 = arith.constant dense<0.000000e+00> : vector<8x128xf32>
    %23 = tpu.matmul %22, %5, %cst_17 {dimension_numbers = #tpu.dot_dimension_numbers<[1], [0], [0], [1], [0, 0, 1, 1], [], []>} : vector<8x128xbf16>, vector<128x128xbf16>, vector<8x128xf32> -> vector<8x128xf32>
    %24 = arith.negf %23 : vector<8x128xf32>
    %25 = math.exp %24 : vector<8x128xf32>
    %cst_18 = arith.constant 1.000000e+00 : f32
    %26 = vector.broadcast %cst_18 : f32 to vector<8x128xf32>
    %27 = arith.addf %26, %25 : vector<8x128xf32>
    %28 = arith.divf %26, %27 : vector<8x128xf32>
    %cst_19 = arith.constant 2.000000e+00 : f32
    %29 = vector.broadcast %cst_19 : f32 to vector<8x128xf32>
    %30 = arith.mulf %29, %28 : vector<8x128xf32>
    %31 = arith.mulf %30, %7 : vector<8x128xf32>
    %32 = arith.truncf %31 : vector<8x128xf32> to vector<8x128xbf16>
    %cst_20 = arith.constant dense<0.000000e+00> : vector<8x128xf32>
    %33 = tpu.matmul %32, %4, %cst_20 {dimension_numbers = #tpu.dot_dimension_numbers<[1], [0], [0], [1], [0, 0, 1, 1], [], []>} : vector<8x128xbf16>, vector<128x128xbf16>, vector<8x128xf32> -> vector<8x128xf32>
    %34 = arith.negf %33 : vector<8x128xf32>
    %35 = math.exp %34 : vector<8x128xf32>
    %cst_21 = arith.constant 1.000000e+00 : f32
    %36 = vector.broadcast %cst_21 : f32 to vector<8x128xf32>
    %37 = arith.addf %36, %35 : vector<8x128xf32>
    %38 = arith.divf %36, %37 : vector<8x128xf32>
    %cst_22 = arith.constant 2.000000e+00 : f32
    %39 = vector.broadcast %cst_22 : f32 to vector<8x128xf32>
    %40 = arith.mulf %39, %38 : vector<8x128xf32>
    %41 = arith.mulf %40, %21 : vector<8x128xf32>
    %42 = arith.truncf %41 : vector<8x128xf32> to vector<8x128xbf16>
    %cst_23 = arith.constant dense<0.000000e+00> : vector<8x128xf32>
    %43 = tpu.matmul %42, %5, %cst_23 {dimension_numbers = #tpu.dot_dimension_numbers<[1], [0], [0], [1], [0, 0, 1, 1], [], []>} : vector<8x128xbf16>, vector<128x128xbf16>, vector<8x128xf32> -> vector<8x128xf32>
    %44 = arith.negf %43 : vector<8x128xf32>
    %45 = math.exp %44 : vector<8x128xf32>
    %cst_24 = arith.constant 1.000000e+00 : f32
    %46 = vector.broadcast %cst_24 : f32 to vector<8x128xf32>
    %47 = arith.addf %46, %45 : vector<8x128xf32>
    %48 = arith.divf %46, %47 : vector<8x128xf32>
    %cst_25 = arith.constant 2.000000e+00 : f32
    %49 = vector.broadcast %cst_25 : f32 to vector<8x128xf32>
    %50 = arith.mulf %49, %48 : vector<8x128xf32>
    %51 = arith.mulf %50, %31 : vector<8x128xf32>
    %52 = arith.truncf %41 : vector<8x128xf32> to vector<8x128xbf16>
    %53 = arith.truncf %51 : vector<8x128xf32> to vector<8x128xbf16>
    %54 = tpu.concatenate %52, %53 in 1 : vector<8x128xbf16>, vector<8x128xbf16> -> vector<8x256xbf16>
    %cst_26 = arith.constant dense<0.000000e+00> : vector<8x512xf32>
    %55 = tpu.matmul %54, %3, %cst_26 {dimension_numbers = #tpu.dot_dimension_numbers<[1], [0], [0], [1], [0, 0, 1, 1], [], []>} : vector<8x256xbf16>, vector<256x512xbf16>, vector<8x512xf32> -> vector<8x512xf32>
    %56 = vector.broadcast %6 : vector<1x512xf32> to vector<8x512xf32>
    %57 = arith.addf %55, %56 : vector<8x512xf32>
    %58 = vector.extract_strided_slice %57 {offsets = [0, 0], sizes = [8, 128], strides = [1, 1]} : vector<8x512xf32> to vector<8x128xf32>
    %59 = vector.extract_strided_slice %57 {offsets = [0, 128], sizes = [8, 128], strides = [1, 1]} : vector<8x512xf32> to vector<8x128xf32>
    %60 = vector.extract_strided_slice %57 {offsets = [0, 256], sizes = [8, 128], strides = [1, 1]} : vector<8x512xf32> to vector<8x128xf32>
    %61 = vector.extract_strided_slice %57 {offsets = [0, 384], sizes = [8, 128], strides = [1, 1]} : vector<8x512xf32> to vector<8x128xf32>
    %62 = arith.negf %58 : vector<8x128xf32>
    %63 = math.exp %62 : vector<8x128xf32>
    %cst_27 = arith.constant 1.000000e+00 : f32
    %64 = vector.broadcast %cst_27 : f32 to vector<8x128xf32>
    %65 = arith.addf %64, %63 : vector<8x128xf32>
    %66 = arith.divf %64, %65 : vector<8x128xf32>
    %67 = arith.negf %59 : vector<8x128xf32>
    %68 = math.exp %67 : vector<8x128xf32>
    %cst_28 = arith.constant 1.000000e+00 : f32
    %69 = vector.broadcast %cst_28 : f32 to vector<8x128xf32>
    %70 = arith.addf %69, %68 : vector<8x128xf32>
    %71 = arith.divf %69, %70 : vector<8x128xf32>
    %72 = math.tanh %60 : vector<8x128xf32>
    %73 = arith.negf %61 : vector<8x128xf32>
    %74 = math.exp %73 : vector<8x128xf32>
    %cst_29 = arith.constant 1.000000e+00 : f32
    %75 = vector.broadcast %cst_29 : f32 to vector<8x128xf32>
    %76 = arith.addf %75, %74 : vector<8x128xf32>
    %77 = arith.divf %75, %76 : vector<8x128xf32>
    %78 = arith.mulf %71, %8 : vector<8x128xf32>
    %79 = arith.mulf %66, %72 : vector<8x128xf32>
    %80 = arith.addf %78, %79 : vector<8x128xf32>
    %81 = math.tanh %80 : vector<8x128xf32>
    %82 = arith.mulf %77, %81 : vector<8x128xf32>
    %83 = arith.index_cast %c0_i32_12 : i32 to index
    %c0_30 = arith.constant 0 : index
    %c0_31 = arith.constant 0 : index
    %84 = vector.load %arg6[%83, %c0_30, %c0_31] : memref<8x8x128xf32, #tpu.memory_space<vmem>>, vector<1x8x128xf32>
    %85 = vector.shape_cast %84 : vector<1x8x128xf32> to vector<8x128xf32>
    %86 = vector.shape_cast %82 : vector<8x128xf32> to vector<1x8x128xf32>
    tpu.vector_store %arg6[%83, %c0_30, %c0_31], %86 {strides = array<i32>} : memref<8x8x128xf32, #tpu.memory_space<vmem>>, vector<1x8x128xf32>,
    %c1_i32 = arith.constant 1 : i32
    %87 = arith.index_cast %c1_i32 : i32 to index
    %c0_32 = arith.constant 0 : index
    %c0_33 = arith.constant 0 : index
    %88 = vector.load %arg1[%87, %c0_32, %c0_33] : memref<8x8x128xf32, #tpu.memory_space<vmem>>, vector<1x8x128xf32>
    %89 = vector.shape_cast %88 : vector<1x8x128xf32> to vector<8x128xf32>
    %90 = arith.truncf %82 : vector<8x128xf32> to vector<8x128xbf16>
    %cst_34 = arith.constant dense<0.000000e+00> : vector<8x128xf32>
    %91 = tpu.matmul %90, %4, %cst_34 {dimension_numbers = #tpu.dot_dimension_numbers<[1], [0], [0], [1], [0, 0, 1, 1], [], []>} : vector<8x128xbf16>, vector<128x128xbf16>, vector<8x128xf32> -> vector<8x128xf32>
    %92 = arith.negf %91 : vector<8x128xf32>
    %93 = math.exp %92 : vector<8x128xf32>
    %cst_35 = arith.constant 1.000000e+00 : f32
    %94 = vector.broadcast %cst_35 : f32 to vector<8x128xf32>
    %95 = arith.addf %94, %93 : vector<8x128xf32>
    %96 = arith.divf %94, %95 : vector<8x128xf32>
    %cst_36 = arith.constant 2.000000e+00 : f32
    %97 = vector.broadcast %cst_36 : f32 to vector<8x128xf32>
    %98 = arith.mulf %97, %96 : vector<8x128xf32>
    %99 = arith.mulf %98, %89 : vector<8x128xf32>
    %100 = arith.truncf %99 : vector<8x128xf32> to vector<8x128xbf16>
    %cst_37 = arith.constant dense<0.000000e+00> : vector<8x128xf32>
    %101 = tpu.matmul %100, %5, %cst_37 {dimension_numbers = #tpu.dot_dimension_numbers<[1], [0], [0], [1], [0, 0, 1, 1], [], []>} : vector<8x128xbf16>, vector<128x128xbf16>, vector<8x128xf32> -> vector<8x128xf32>
    %102 = arith.negf %101 : vector<8x128xf32>
    %103 = math.exp %102 : vector<8x128xf32>
    %cst_38 = arith.constant 1.000000e+00 : f32
    %104 = vector.broadcast %cst_38 : f32 to vector<8x128xf32>
    %105 = arith.addf %104, %103 : vector<8x128xf32>
    %106 = arith.divf %104, %105 : vector<8x128xf32>
    %cst_39 = arith.constant 2.000000e+00 : f32
    %107 = vector.broadcast %cst_39 : f32 to vector<8x128xf32>
    %108 = arith.mulf %107, %106 : vector<8x128xf32>
    %109 = arith.mulf %108, %82 : vector<8x128xf32>
    %110 = arith.truncf %109 : vector<8x128xf32> to vector<8x128xbf16>
    %cst_40 = arith.constant dense<0.000000e+00> : vector<8x128xf32>
    %111 = tpu.matmul %110, %4, %cst_40 {dimension_numbers = #tpu.dot_dimension_numbers<[1], [0], [0], [1], [0, 0, 1, 1], [], []>} : vector<8x128xbf16>, vector<128x128xbf16>, vector<8x128xf32> -> vector<8x128xf32>
    %112 = arith.negf %111 : vector<8x128xf32>
    %113 = math.exp %112 : vector<8x128xf32>
    %cst_41 = arith.constant 1.000000e+00 : f32
    %114 = vector.broadcast %cst_41 : f32 to vector<8x128xf32>
    %115 = arith.addf %114, %113 : vector<8x128xf32>
    %116 = arith.divf %114, %115 : vector<8x128xf32>
    %cst_42 = arith.constant 2.000000e+00 : f32
    %117 = vector.broadcast %cst_42 : f32 to vector<8x128xf32>
    %118 = arith.mulf %117, %116 : vector<8x128xf32>
    %119 = arith.mulf %118, %99 : vector<8x128xf32>
    %120 = arith.truncf %119 : vector<8x128xf32> to vector<8x128xbf16>
    %cst_43 = arith.constant dense<0.000000e+00> : vector<8x128xf32>
    %121 = tpu.matmul %120, %5, %cst_43 {dimension_numbers = #tpu.dot_dimension_numbers<[1], [0], [0], [1], [0, 0, 1, 1], [], []>} : vector<8x128xbf16>, vector<128x128xbf16>, vector<8x128xf32> -> vector<8x128xf32>
    %122 = arith.negf %121 : vector<8x128xf32>
    %123 = math.exp %122 : vector<8x128xf32>
    %cst_44 = arith.constant 1.000000e+00 : f32
    %124 = vector.broadcast %cst_44 : f32 to vector<8x128xf32>
    %125 = arith.addf %124, %123 : vector<8x128xf32>
    %126 = arith.divf %124, %125 : vector<8x128xf32>
    %cst_45 = arith.constant 2.000000e+00 : f32
    %127 = vector.broadcast %cst_45 : f32 to vector<8x128xf32>
    %128 = arith.mulf %127, %126 : vector<8x128xf32>
    %129 = arith.mulf %128, %109 : vector<8x128xf32>
    %130 = arith.truncf %119 : vector<8x128xf32> to vector<8x128xbf16>
    %131 = arith.truncf %129 : vector<8x128xf32> to vector<8x128xbf16>
    %132 = tpu.concatenate %130, %131 in 1 : vector<8x128xbf16>, vector<8x128xbf16> -> vector<8x256xbf16>
    %cst_46 = arith.constant dense<0.000000e+00> : vector<8x512xf32>
    %133 = tpu.matmul %132, %3, %cst_46 {dimension_numbers = #tpu.dot_dimension_numbers<[1], [0], [0], [1], [0, 0, 1, 1], [], []>} : vector<8x256xbf16>, vector<256x512xbf16>, vector<8x512xf32> -> vector<8x512xf32>
    %134 = vector.broadcast %6 : vector<1x512xf32> to vector<8x512xf32>
    %135 = arith.addf %133, %134 : vector<8x512xf32>
    %136 = vector.extract_strided_slice %135 {offsets = [0, 0], sizes = [8, 128], strides = [1, 1]} : vector<8x512xf32> to vector<8x128xf32>
    %137 = vector.extract_strided_slice %135 {offsets = [0, 128], sizes = [8, 128], strides = [1, 1]} : vector<8x512xf32> to vector<8x128xf32>
    %138 = vector.extract_strided_slice %135 {offsets = [0, 256], sizes = [8, 128], strides = [1, 1]} : vector<8x512xf32> to vector<8x128xf32>
    %139 = vector.extract_strided_slice %135 {offsets = [0, 384], sizes = [8, 128], strides = [1, 1]} : vector<8x512xf32> to vector<8x128xf32>
    %140 = arith.negf %136 : vector<8x128xf32>
    %141 = math.exp %140 : vector<8x128xf32>
    %cst_47 = arith.constant 1.000000e+00 : f32
    %142 = vector.broadcast %cst_47 : f32 to vector<8x128xf32>
    %143 = arith.addf %142, %141 : vector<8x128xf32>
    %144 = arith.divf %142, %143 : vector<8x128xf32>
    %145 = arith.negf %137 : vector<8x128xf32>
    %146 = math.exp %145 : vector<8x128xf32>
    %cst_48 = arith.constant 1.000000e+00 : f32
    %147 = vector.broadcast %cst_48 : f32 to vector<8x128xf32>
    %148 = arith.addf %147, %146 : vector<8x128xf32>
    %149 = arith.divf %147, %148 : vector<8x128xf32>
    %150 = math.tanh %138 : vector<8x128xf32>
    %151 = arith.negf %139 : vector<8x128xf32>
    %152 = math.exp %151 : vector<8x128xf32>
    %cst_49 = arith.constant 1.000000e+00 : f32
    %153 = vector.broadcast %cst_49 : f32 to vector<8x128xf32>
    %154 = arith.addf %153, %152 : vector<8x128xf32>
    %155 = arith.divf %153, %154 : vector<8x128xf32>
    %156 = arith.mulf %149, %80 : vector<8x128xf32>
    %157 = arith.mulf %144, %150 : vector<8x128xf32>
    %158 = arith.addf %156, %157 : vector<8x128xf32>
    %159 = math.tanh %158 : vector<8x128xf32>
    %160 = arith.mulf %155, %159 : vector<8x128xf32>
    %161 = arith.index_cast %c1_i32 : i32 to index
    %c0_50 = arith.constant 0 : index
    %c0_51 = arith.constant 0 : index
    %162 = vector.load %arg6[%161, %c0_50, %c0_51] : memref<8x8x128xf32, #tpu.memory_space<vmem>>, vector<1x8x128xf32>
    %163 = vector.shape_cast %162 : vector<1x8x128xf32> to vector<8x128xf32>
    %164 = vector.shape_cast %160 : vector<8x128xf32> to vector<1x8x128xf32>
    tpu.vector_store %arg6[%161, %c0_50, %c0_51], %164 {strides = array<i32>} : memref<8x8x128xf32, #tpu.memory_space<vmem>>, vector<1x8x128xf32>,
    %c2_i32 = arith.constant 2 : i32
    %165 = arith.index_cast %c2_i32 : i32 to index
    %c0_52 = arith.constant 0 : index
    %c0_53 = arith.constant 0 : index
    %166 = vector.load %arg1[%165, %c0_52, %c0_53] : memref<8x8x128xf32, #tpu.memory_space<vmem>>, vector<1x8x128xf32>
    %167 = vector.shape_cast %166 : vector<1x8x128xf32> to vector<8x128xf32>
    %168 = arith.truncf %160 : vector<8x128xf32> to vector<8x128xbf16>
    %cst_54 = arith.constant dense<0.000000e+00> : vector<8x128xf32>
    %169 = tpu.matmul %168, %4, %cst_54 {dimension_numbers = #tpu.dot_dimension_numbers<[1], [0], [0], [1], [0, 0, 1, 1], [], []>} : vector<8x128xbf16>, vector<128x128xbf16>, vector<8x128xf32> -> vector<8x128xf32>
    %170 = arith.negf %169 : vector<8x128xf32>
    %171 = math.exp %170 : vector<8x128xf32>
    %cst_55 = arith.constant 1.000000e+00 : f32
    %172 = vector.broadcast %cst_55 : f32 to vector<8x128xf32>
    %173 = arith.addf %172, %171 : vector<8x128xf32>
    %174 = arith.divf %172, %173 : vector<8x128xf32>
    %cst_56 = arith.constant 2.000000e+00 : f32
    %175 = vector.broadcast %cst_56 : f32 to vector<8x128xf32>
    %176 = arith.mulf %175, %174 : vector<8x128xf32>
    %177 = arith.mulf %176, %167 : vector<8x128xf32>
    %178 = arith.truncf %177 : vector<8x128xf32> to vector<8x128xbf16>
    %cst_57 = arith.constant dense<0.000000e+00> : vector<8x128xf32>
    %179 = tpu.matmul %178, %5, %cst_57 {dimension_numbers = #tpu.dot_dimension_numbers<[1], [0], [0], [1], [0, 0, 1, 1], [], []>} : vector<8x128xbf16>, vector<128x128xbf16>, vector<8x128xf32> -> vector<8x128xf32>
    %180 = arith.negf %179 : vector<8x128xf32>
    %181 = math.exp %180 : vector<8x128xf32>
    %cst_58 = arith.constant 1.000000e+00 : f32
    %182 = vector.broadcast %cst_58 : f32 to vector<8x128xf32>
    %183 = arith.addf %182, %181 : vector<8x128xf32>
    %184 = arith.divf %182, %183 : vector<8x128xf32>
    %cst_59 = arith.constant 2.000000e+00 : f32
    %185 = vector.broadcast %cst_59 : f32 to vector<8x128xf32>
    %186 = arith.mulf %185, %184 : vector<8x128xf32>
    %187 = arith.mulf %186, %160 : vector<8x128xf32>
    %188 = arith.truncf %187 : vector<8x128xf32> to vector<8x128xbf16>
    %cst_60 = arith.constant dense<0.000000e+00> : vector<8x128xf32>
    %189 = tpu.matmul %188, %4, %cst_60 {dimension_numbers = #tpu.dot_dimension_numbers<[1], [0], [0], [1], [0, 0, 1, 1], [], []>} : vector<8x128xbf16>, vector<128x128xbf16>, vector<8x128xf32> -> vector<8x128xf32>
    %190 = arith.negf %189 : vector<8x128xf32>
    %191 = math.exp %190 : vector<8x128xf32>
    %cst_61 = arith.constant 1.000000e+00 : f32
    %192 = vector.broadcast %cst_61 : f32 to vector<8x128xf32>
    %193 = arith.addf %192, %191 : vector<8x128xf32>
    %194 = arith.divf %192, %193 : vector<8x128xf32>
    %cst_62 = arith.constant 2.000000e+00 : f32
    %195 = vector.broadcast %cst_62 : f32 to vector<8x128xf32>
    %196 = arith.mulf %195, %194 : vector<8x128xf32>
    %197 = arith.mulf %196, %177 : vector<8x128xf32>
    %198 = arith.truncf %197 : vector<8x128xf32> to vector<8x128xbf16>
    %cst_63 = arith.constant dense<0.000000e+00> : vector<8x128xf32>
    %199 = tpu.matmul %198, %5, %cst_63 {dimension_numbers = #tpu.dot_dimension_numbers<[1], [0], [0], [1], [0, 0, 1, 1], [], []>} : vector<8x128xbf16>, vector<128x128xbf16>, vector<8x128xf32> -> vector<8x128xf32>
    %200 = arith.negf %199 : vector<8x128xf32>
    %201 = math.exp %200 : vector<8x128xf32>
    %cst_64 = arith.constant 1.000000e+00 : f32
    %202 = vector.broadcast %cst_64 : f32 to vector<8x128xf32>
    %203 = arith.addf %202, %201 : vector<8x128xf32>
    %204 = arith.divf %202, %203 : vector<8x128xf32>
    %cst_65 = arith.constant 2.000000e+00 : f32
    %205 = vector.broadcast %cst_65 : f32 to vector<8x128xf32>
    %206 = arith.mulf %205, %204 : vector<8x128xf32>
    %207 = arith.mulf %206, %187 : vector<8x128xf32>
    %208 = arith.truncf %197 : vector<8x128xf32> to vector<8x128xbf16>
    %209 = arith.truncf %207 : vector<8x128xf32> to vector<8x128xbf16>
    %210 = tpu.concatenate %208, %209 in 1 : vector<8x128xbf16>, vector<8x128xbf16> -> vector<8x256xbf16>
    %cst_66 = arith.constant dense<0.000000e+00> : vector<8x512xf32>
    %211 = tpu.matmul %210, %3, %cst_66 {dimension_numbers = #tpu.dot_dimension_numbers<[1], [0], [0], [1], [0, 0, 1, 1], [], []>} : vector<8x256xbf16>, vector<256x512xbf16>, vector<8x512xf32> -> vector<8x512xf32>
    %212 = vector.broadcast %6 : vector<1x512xf32> to vector<8x512xf32>
    %213 = arith.addf %211, %212 : vector<8x512xf32>
    %214 = vector.extract_strided_slice %213 {offsets = [0, 0], sizes = [8, 128], strides = [1, 1]} : vector<8x512xf32> to vector<8x128xf32>
    %215 = vector.extract_strided_slice %213 {offsets = [0, 128], sizes = [8, 128], strides = [1, 1]} : vector<8x512xf32> to vector<8x128xf32>
    %216 = vector.extract_strided_slice %213 {offsets = [0, 256], sizes = [8, 128], strides = [1, 1]} : vector<8x512xf32> to vector<8x128xf32>
    %217 = vector.extract_strided_slice %213 {offsets = [0, 384], sizes = [8, 128], strides = [1, 1]} : vector<8x512xf32> to vector<8x128xf32>
    %218 = arith.negf %214 : vector<8x128xf32>
    %219 = math.exp %218 : vector<8x128xf32>
    %cst_67 = arith.constant 1.000000e+00 : f32
    %220 = vector.broadcast %cst_67 : f32 to vector<8x128xf32>
    %221 = arith.addf %220, %219 : vector<8x128xf32>
    %222 = arith.divf %220, %221 : vector<8x128xf32>
    %223 = arith.negf %215 : vector<8x128xf32>
    %224 = math.exp %223 : vector<8x128xf32>
    %cst_68 = arith.constant 1.000000e+00 : f32
    %225 = vector.broadcast %cst_68 : f32 to vector<8x128xf32>
    %226 = arith.addf %225, %224 : vector<8x128xf32>
    %227 = arith.divf %225, %226 : vector<8x128xf32>
    %228 = math.tanh %216 : vector<8x128xf32>
    %229 = arith.negf %217 : vector<8x128xf32>
    %230 = math.exp %229 : vector<8x128xf32>
    %cst_69 = arith.constant 1.000000e+00 : f32
    %231 = vector.broadcast %cst_69 : f32 to vector<8x128xf32>
    %232 = arith.addf %231, %230 : vector<8x128xf32>
    %233 = arith.divf %231, %232 : vector<8x128xf32>
    %234 = arith.mulf %227, %158 : vector<8x128xf32>
    %235 = arith.mulf %222, %228 : vector<8x128xf32>
    %236 = arith.addf %234, %235 : vector<8x128xf32>
    %237 = math.tanh %236 : vector<8x128xf32>
    %238 = arith.mulf %233, %237 : vector<8x128xf32>
    %239 = arith.index_cast %c2_i32 : i32 to index
    %c0_70 = arith.constant 0 : index
    %c0_71 = arith.constant 0 : index
    %240 = vector.load %arg6[%239, %c0_70, %c0_71] : memref<8x8x128xf32, #tpu.memory_space<vmem>>, vector<1x8x128xf32>
    %241 = vector.shape_cast %240 : vector<1x8x128xf32> to vector<8x128xf32>
    %242 = vector.shape_cast %238 : vector<8x128xf32> to vector<1x8x128xf32>
    tpu.vector_store %arg6[%239, %c0_70, %c0_71], %242 {strides = array<i32>} : memref<8x8x128xf32, #tpu.memory_space<vmem>>, vector<1x8x128xf32>,
    %c3_i32 = arith.constant 3 : i32
    %243 = arith.index_cast %c3_i32 : i32 to index
    %c0_72 = arith.constant 0 : index
    %c0_73 = arith.constant 0 : index
    %244 = vector.load %arg1[%243, %c0_72, %c0_73] : memref<8x8x128xf32, #tpu.memory_space<vmem>>, vector<1x8x128xf32>
    %245 = vector.shape_cast %244 : vector<1x8x128xf32> to vector<8x128xf32>
    %246 = arith.truncf %238 : vector<8x128xf32> to vector<8x128xbf16>
    %cst_74 = arith.constant dense<0.000000e+00> : vector<8x128xf32>
    %247 = tpu.matmul %246, %4, %cst_74 {dimension_numbers = #tpu.dot_dimension_numbers<[1], [0], [0], [1], [0, 0, 1, 1], [], []>} : vector<8x128xbf16>, vector<128x128xbf16>, vector<8x128xf32> -> vector<8x128xf32>
    %248 = arith.negf %247 : vector<8x128xf32>
    %249 = math.exp %248 : vector<8x128xf32>
    %cst_75 = arith.constant 1.000000e+00 : f32
    %250 = vector.broadcast %cst_75 : f32 to vector<8x128xf32>
    %251 = arith.addf %250, %249 : vector<8x128xf32>
    %252 = arith.divf %250, %251 : vector<8x128xf32>
    %cst_76 = arith.constant 2.000000e+00 : f32
    %253 = vector.broadcast %cst_76 : f32 to vector<8x128xf32>
    %254 = arith.mulf %253, %252 : vector<8x128xf32>
    %255 = arith.mulf %254, %245 : vector<8x128xf32>
    %256 = arith.truncf %255 : vector<8x128xf32> to vector<8x128xbf16>
    %cst_77 = arith.constant dense<0.000000e+00> : vector<8x128xf32>
    %257 = tpu.matmul %256, %5, %cst_77 {dimension_numbers = #tpu.dot_dimension_numbers<[1], [0], [0], [1], [0, 0, 1, 1], [], []>} : vector<8x128xbf16>, vector<128x128xbf16>, vector<8x128xf32> -> vector<8x128xf32>
    %258 = arith.negf %257 : vector<8x128xf32>
    %259 = math.exp %258 : vector<8x128xf32>
    %cst_78 = arith.constant 1.000000e+00 : f32
    %260 = vector.broadcast %cst_78 : f32 to vector<8x128xf32>
    %261 = arith.addf %260, %259 : vector<8x128xf32>
    %262 = arith.divf %260, %261 : vector<8x128xf32>
    %cst_79 = arith.constant 2.000000e+00 : f32
    %263 = vector.broadcast %cst_79 : f32 to vector<8x128xf32>
    %264 = arith.mulf %263, %262 : vector<8x128xf32>
    %265 = arith.mulf %264, %238 : vector<8x128xf32>
    %266 = arith.truncf %265 : vector<8x128xf32> to vector<8x128xbf16>
    %cst_80 = arith.constant dense<0.000000e+00> : vector<8x128xf32>
    %267 = tpu.matmul %266, %4, %cst_80 {dimension_numbers = #tpu.dot_dimension_numbers<[1], [0], [0], [1], [0, 0, 1, 1], [], []>} : vector<8x128xbf16>, vector<128x128xbf16>, vector<8x128xf32> -> vector<8x128xf32>
    %268 = arith.negf %267 : vector<8x128xf32>
    %269 = math.exp %268 : vector<8x128xf32>
    %cst_81 = arith.constant 1.000000e+00 : f32
    %270 = vector.broadcast %cst_81 : f32 to vector<8x128xf32>
    %271 = arith.addf %270, %269 : vector<8x128xf32>
    %272 = arith.divf %270, %271 : vector<8x128xf32>
    %cst_82 = arith.constant 2.000000e+00 : f32
    %273 = vector.broadcast %cst_82 : f32 to vector<8x128xf32>
    %274 = arith.mulf %273, %272 : vector<8x128xf32>
    %275 = arith.mulf %274, %255 : vector<8x128xf32>
    %276 = arith.truncf %275 : vector<8x128xf32> to vector<8x128xbf16>
    %cst_83 = arith.constant dense<0.000000e+00> : vector<8x128xf32>
    %277 = tpu.matmul %276, %5, %cst_83 {dimension_numbers = #tpu.dot_dimension_numbers<[1], [0], [0], [1], [0, 0, 1, 1], [], []>} : vector<8x128xbf16>, vector<128x128xbf16>, vector<8x128xf32> -> vector<8x128xf32>
    %278 = arith.negf %277 : vector<8x128xf32>
    %279 = math.exp %278 : vector<8x128xf32>
    %cst_84 = arith.constant 1.000000e+00 : f32
    %280 = vector.broadcast %cst_84 : f32 to vector<8x128xf32>
    %281 = arith.addf %280, %279 : vector<8x128xf32>
    %282 = arith.divf %280, %281 : vector<8x128xf32>
    %cst_85 = arith.constant 2.000000e+00 : f32
    %283 = vector.broadcast %cst_85 : f32 to vector<8x128xf32>
    %284 = arith.mulf %283, %282 : vector<8x128xf32>
    %285 = arith.mulf %284, %265 : vector<8x128xf32>
    %286 = arith.truncf %275 : vector<8x128xf32> to vector<8x128xbf16>
    %287 = arith.truncf %285 : vector<8x128xf32> to vector<8x128xbf16>
    %288 = tpu.concatenate %286, %287 in 1 : vector<8x128xbf16>, vector<8x128xbf16> -> vector<8x256xbf16>
    %cst_86 = arith.constant dense<0.000000e+00> : vector<8x512xf32>
    %289 = tpu.matmul %288, %3, %cst_86 {dimension_numbers = #tpu.dot_dimension_numbers<[1], [0], [0], [1], [0, 0, 1, 1], [], []>} : vector<8x256xbf16>, vector<256x512xbf16>, vector<8x512xf32> -> vector<8x512xf32>
    %290 = vector.broadcast %6 : vector<1x512xf32> to vector<8x512xf32>
    %291 = arith.addf %289, %290 : vector<8x512xf32>
    %292 = vector.extract_strided_slice %291 {offsets = [0, 0], sizes = [8, 128], strides = [1, 1]} : vector<8x512xf32> to vector<8x128xf32>
    %293 = vector.extract_strided_slice %291 {offsets = [0, 128], sizes = [8, 128], strides = [1, 1]} : vector<8x512xf32> to vector<8x128xf32>
    %294 = vector.extract_strided_slice %291 {offsets = [0, 256], sizes = [8, 128], strides = [1, 1]} : vector<8x512xf32> to vector<8x128xf32>
    %295 = vector.extract_strided_slice %291 {offsets = [0, 384], sizes = [8, 128], strides = [1, 1]} : vector<8x512xf32> to vector<8x128xf32>
    %296 = arith.negf %292 : vector<8x128xf32>
    %297 = math.exp %296 : vector<8x128xf32>
    %cst_87 = arith.constant 1.000000e+00 : f32
    %298 = vector.broadcast %cst_87 : f32 to vector<8x128xf32>
    %299 = arith.addf %298, %297 : vector<8x128xf32>
    %300 = arith.divf %298, %299 : vector<8x128xf32>
    %301 = arith.negf %293 : vector<8x128xf32>
    %302 = math.exp %301 : vector<8x128xf32>
    %cst_88 = arith.constant 1.000000e+00 : f32
    %303 = vector.broadcast %cst_88 : f32 to vector<8x128xf32>
    %304 = arith.addf %303, %302 : vector<8x128xf32>
    %305 = arith.divf %303, %304 : vector<8x128xf32>
    %306 = math.tanh %294 : vector<8x128xf32>
    %307 = arith.negf %295 : vector<8x128xf32>
    %308 = math.exp %307 : vector<8x128xf32>
    %cst_89 = arith.constant 1.000000e+00 : f32
    %309 = vector.broadcast %cst_89 : f32 to vector<8x128xf32>
    %310 = arith.addf %309, %308 : vector<8x128xf32>
    %311 = arith.divf %309, %310 : vector<8x128xf32>
    %312 = arith.mulf %305, %236 : vector<8x128xf32>
    %313 = arith.mulf %300, %306 : vector<8x128xf32>
    %314 = arith.addf %312, %313 : vector<8x128xf32>
    %315 = math.tanh %314 : vector<8x128xf32>
    %316 = arith.mulf %311, %315 : vector<8x128xf32>
    %317 = arith.index_cast %c3_i32 : i32 to index
    %c0_90 = arith.constant 0 : index
    %c0_91 = arith.constant 0 : index
    %318 = vector.load %arg6[%317, %c0_90, %c0_91] : memref<8x8x128xf32, #tpu.memory_space<vmem>>, vector<1x8x128xf32>
    %319 = vector.shape_cast %318 : vector<1x8x128xf32> to vector<8x128xf32>
    %320 = vector.shape_cast %316 : vector<8x128xf32> to vector<1x8x128xf32>
    tpu.vector_store %arg6[%317, %c0_90, %c0_91], %320 {strides = array<i32>} : memref<8x8x128xf32, #tpu.memory_space<vmem>>, vector<1x8x128xf32>,
    %c4_i32 = arith.constant 4 : i32
    %321 = arith.index_cast %c4_i32 : i32 to index
    %c0_92 = arith.constant 0 : index
    %c0_93 = arith.constant 0 : index
    %322 = vector.load %arg1[%321, %c0_92, %c0_93] : memref<8x8x128xf32, #tpu.memory_space<vmem>>, vector<1x8x128xf32>
    %323 = vector.shape_cast %322 : vector<1x8x128xf32> to vector<8x128xf32>
    %324 = arith.truncf %316 : vector<8x128xf32> to vector<8x128xbf16>
    %cst_94 = arith.constant dense<0.000000e+00> : vector<8x128xf32>
    %325 = tpu.matmul %324, %4, %cst_94 {dimension_numbers = #tpu.dot_dimension_numbers<[1], [0], [0], [1], [0, 0, 1, 1], [], []>} : vector<8x128xbf16>, vector<128x128xbf16>, vector<8x128xf32> -> vector<8x128xf32>
    %326 = arith.negf %325 : vector<8x128xf32>
    %327 = math.exp %326 : vector<8x128xf32>
    %cst_95 = arith.constant 1.000000e+00 : f32
    %328 = vector.broadcast %cst_95 : f32 to vector<8x128xf32>
    %329 = arith.addf %328, %327 : vector<8x128xf32>
    %330 = arith.divf %328, %329 : vector<8x128xf32>
    %cst_96 = arith.constant 2.000000e+00 : f32
    %331 = vector.broadcast %cst_96 : f32 to vector<8x128xf32>
    %332 = arith.mulf %331, %330 : vector<8x128xf32>
    %333 = arith.mulf %332, %323 : vector<8x128xf32>
    %334 = arith.truncf %333 : vector<8x128xf32> to vector<8x128xbf16>
    %cst_97 = arith.constant dense<0.000000e+00> : vector<8x128xf32>
    %335 = tpu.matmul %334, %5, %cst_97 {dimension_numbers = #tpu.dot_dimension_numbers<[1], [0], [0], [1], [0, 0, 1, 1], [], []>} : vector<8x128xbf16>, vector<128x128xbf16>, vector<8x128xf32> -> vector<8x128xf32>
    %336 = arith.negf %335 : vector<8x128xf32>
    %337 = math.exp %336 : vector<8x128xf32>
    %cst_98 = arith.constant 1.000000e+00 : f32
    %338 = vector.broadcast %cst_98 : f32 to vector<8x128xf32>
    %339 = arith.addf %338, %337 : vector<8x128xf32>
    %340 = arith.divf %338, %339 : vector<8x128xf32>
    %cst_99 = arith.constant 2.000000e+00 : f32
    %341 = vector.broadcast %cst_99 : f32 to vector<8x128xf32>
    %342 = arith.mulf %341, %340 : vector<8x128xf32>
    %343 = arith.mulf %342, %316 : vector<8x128xf32>
    %344 = arith.truncf %343 : vector<8x128xf32> to vector<8x128xbf16>
    %cst_100 = arith.constant dense<0.000000e+00> : vector<8x128xf32>
    %345 = tpu.matmul %344, %4, %cst_100 {dimension_numbers = #tpu.dot_dimension_numbers<[1], [0], [0], [1], [0, 0, 1, 1], [], []>} : vector<8x128xbf16>, vector<128x128xbf16>, vector<8x128xf32> -> vector<8x128xf32>
    %346 = arith.negf %345 : vector<8x128xf32>
    %347 = math.exp %346 : vector<8x128xf32>
    %cst_101 = arith.constant 1.000000e+00 : f32
    %348 = vector.broadcast %cst_101 : f32 to vector<8x128xf32>
    %349 = arith.addf %348, %347 : vector<8x128xf32>
    %350 = arith.divf %348, %349 : vector<8x128xf32>
    %cst_102 = arith.constant 2.000000e+00 : f32
    %351 = vector.broadcast %cst_102 : f32 to vector<8x128xf32>
    %352 = arith.mulf %351, %350 : vector<8x128xf32>
    %353 = arith.mulf %352, %333 : vector<8x128xf32>
    %354 = arith.truncf %353 : vector<8x128xf32> to vector<8x128xbf16>
    %cst_103 = arith.constant dense<0.000000e+00> : vector<8x128xf32>
    %355 = tpu.matmul %354, %5, %cst_103 {dimension_numbers = #tpu.dot_dimension_numbers<[1], [0], [0], [1], [0, 0, 1, 1], [], []>} : vector<8x128xbf16>, vector<128x128xbf16>, vector<8x128xf32> -> vector<8x128xf32>
    %356 = arith.negf %355 : vector<8x128xf32>
    %357 = math.exp %356 : vector<8x128xf32>
    %cst_104 = arith.constant 1.000000e+00 : f32
    %358 = vector.broadcast %cst_104 : f32 to vector<8x128xf32>
    %359 = arith.addf %358, %357 : vector<8x128xf32>
    %360 = arith.divf %358, %359 : vector<8x128xf32>
    %cst_105 = arith.constant 2.000000e+00 : f32
    %361 = vector.broadcast %cst_105 : f32 to vector<8x128xf32>
    %362 = arith.mulf %361, %360 : vector<8x128xf32>
    %363 = arith.mulf %362, %343 : vector<8x128xf32>
    %364 = arith.truncf %353 : vector<8x128xf32> to vector<8x128xbf16>
    %365 = arith.truncf %363 : vector<8x128xf32> to vector<8x128xbf16>
    %366 = tpu.concatenate %364, %365 in 1 : vector<8x128xbf16>, vector<8x128xbf16> -> vector<8x256xbf16>
    %cst_106 = arith.constant dense<0.000000e+00> : vector<8x512xf32>
    %367 = tpu.matmul %366, %3, %cst_106 {dimension_numbers = #tpu.dot_dimension_numbers<[1], [0], [0], [1], [0, 0, 1, 1], [], []>} : vector<8x256xbf16>, vector<256x512xbf16>, vector<8x512xf32> -> vector<8x512xf32>
    %368 = vector.broadcast %6 : vector<1x512xf32> to vector<8x512xf32>
    %369 = arith.addf %367, %368 : vector<8x512xf32>
    %370 = vector.extract_strided_slice %369 {offsets = [0, 0], sizes = [8, 128], strides = [1, 1]} : vector<8x512xf32> to vector<8x128xf32>
    %371 = vector.extract_strided_slice %369 {offsets = [0, 128], sizes = [8, 128], strides = [1, 1]} : vector<8x512xf32> to vector<8x128xf32>
    %372 = vector.extract_strided_slice %369 {offsets = [0, 256], sizes = [8, 128], strides = [1, 1]} : vector<8x512xf32> to vector<8x128xf32>
    %373 = vector.extract_strided_slice %369 {offsets = [0, 384], sizes = [8, 128], strides = [1, 1]} : vector<8x512xf32> to vector<8x128xf32>
    %374 = arith.negf %370 : vector<8x128xf32>
    %375 = math.exp %374 : vector<8x128xf32>
    %cst_107 = arith.constant 1.000000e+00 : f32
    %376 = vector.broadcast %cst_107 : f32 to vector<8x128xf32>
    %377 = arith.addf %376, %375 : vector<8x128xf32>
    %378 = arith.divf %376, %377 : vector<8x128xf32>
    %379 = arith.negf %371 : vector<8x128xf32>
    %380 = math.exp %379 : vector<8x128xf32>
    %cst_108 = arith.constant 1.000000e+00 : f32
    %381 = vector.broadcast %cst_108 : f32 to vector<8x128xf32>
    %382 = arith.addf %381, %380 : vector<8x128xf32>
    %383 = arith.divf %381, %382 : vector<8x128xf32>
    %384 = math.tanh %372 : vector<8x128xf32>
    %385 = arith.negf %373 : vector<8x128xf32>
    %386 = math.exp %385 : vector<8x128xf32>
    %cst_109 = arith.constant 1.000000e+00 : f32
    %387 = vector.broadcast %cst_109 : f32 to vector<8x128xf32>
    %388 = arith.addf %387, %386 : vector<8x128xf32>
    %389 = arith.divf %387, %388 : vector<8x128xf32>
    %390 = arith.mulf %383, %314 : vector<8x128xf32>
    %391 = arith.mulf %378, %384 : vector<8x128xf32>
    %392 = arith.addf %390, %391 : vector<8x128xf32>
    %393 = math.tanh %392 : vector<8x128xf32>
    %394 = arith.mulf %389, %393 : vector<8x128xf32>
    %395 = arith.index_cast %c4_i32 : i32 to index
    %c0_110 = arith.constant 0 : index
    %c0_111 = arith.constant 0 : index
    %396 = vector.load %arg6[%395, %c0_110, %c0_111] : memref<8x8x128xf32, #tpu.memory_space<vmem>>, vector<1x8x128xf32>
    %397 = vector.shape_cast %396 : vector<1x8x128xf32> to vector<8x128xf32>
    %398 = vector.shape_cast %394 : vector<8x128xf32> to vector<1x8x128xf32>
    tpu.vector_store %arg6[%395, %c0_110, %c0_111], %398 {strides = array<i32>} : memref<8x8x128xf32, #tpu.memory_space<vmem>>, vector<1x8x128xf32>,
    %c5_i32 = arith.constant 5 : i32
    %399 = arith.index_cast %c5_i32 : i32 to index
    %c0_112 = arith.constant 0 : index
    %c0_113 = arith.constant 0 : index
    %400 = vector.load %arg1[%399, %c0_112, %c0_113] : memref<8x8x128xf32, #tpu.memory_space<vmem>>, vector<1x8x128xf32>
    %401 = vector.shape_cast %400 : vector<1x8x128xf32> to vector<8x128xf32>
    %402 = arith.truncf %394 : vector<8x128xf32> to vector<8x128xbf16>
    %cst_114 = arith.constant dense<0.000000e+00> : vector<8x128xf32>
    %403 = tpu.matmul %402, %4, %cst_114 {dimension_numbers = #tpu.dot_dimension_numbers<[1], [0], [0], [1], [0, 0, 1, 1], [], []>} : vector<8x128xbf16>, vector<128x128xbf16>, vector<8x128xf32> -> vector<8x128xf32>
    %404 = arith.negf %403 : vector<8x128xf32>
    %405 = math.exp %404 : vector<8x128xf32>
    %cst_115 = arith.constant 1.000000e+00 : f32
    %406 = vector.broadcast %cst_115 : f32 to vector<8x128xf32>
    %407 = arith.addf %406, %405 : vector<8x128xf32>
    %408 = arith.divf %406, %407 : vector<8x128xf32>
    %cst_116 = arith.constant 2.000000e+00 : f32
    %409 = vector.broadcast %cst_116 : f32 to vector<8x128xf32>
    %410 = arith.mulf %409, %408 : vector<8x128xf32>
    %411 = arith.mulf %410, %401 : vector<8x128xf32>
    %412 = arith.truncf %411 : vector<8x128xf32> to vector<8x128xbf16>
    %cst_117 = arith.constant dense<0.000000e+00> : vector<8x128xf32>
    %413 = tpu.matmul %412, %5, %cst_117 {dimension_numbers = #tpu.dot_dimension_numbers<[1], [0], [0], [1], [0, 0, 1, 1], [], []>} : vector<8x128xbf16>, vector<128x128xbf16>, vector<8x128xf32> -> vector<8x128xf32>
    %414 = arith.negf %413 : vector<8x128xf32>
    %415 = math.exp %414 : vector<8x128xf32>
    %cst_118 = arith.constant 1.000000e+00 : f32
    %416 = vector.broadcast %cst_118 : f32 to vector<8x128xf32>
    %417 = arith.addf %416, %415 : vector<8x128xf32>
    %418 = arith.divf %416, %417 : vector<8x128xf32>
    %cst_119 = arith.constant 2.000000e+00 : f32
    %419 = vector.broadcast %cst_119 : f32 to vector<8x128xf32>
    %420 = arith.mulf %419, %418 : vector<8x128xf32>
    %421 = arith.mulf %420, %394 : vector<8x128xf32>
    %422 = arith.truncf %421 : vector<8x128xf32> to vector<8x128xbf16>
    %cst_120 = arith.constant dense<0.000000e+00> : vector<8x128xf32>
    %423 = tpu.matmul %422, %4, %cst_120 {dimension_numbers = #tpu.dot_dimension_numbers<[1], [0], [0], [1], [0, 0, 1, 1], [], []>} : vector<8x128xbf16>, vector<128x128xbf16>, vector<8x128xf32> -> vector<8x128xf32>
    %424 = arith.negf %423 : vector<8x128xf32>
    %425 = math.exp %424 : vector<8x128xf32>
    %cst_121 = arith.constant 1.000000e+00 : f32
    %426 = vector.broadcast %cst_121 : f32 to vector<8x128xf32>
    %427 = arith.addf %426, %425 : vector<8x128xf32>
    %428 = arith.divf %426, %427 : vector<8x128xf32>
    %cst_122 = arith.constant 2.000000e+00 : f32
    %429 = vector.broadcast %cst_122 : f32 to vector<8x128xf32>
    %430 = arith.mulf %429, %428 : vector<8x128xf32>
    %431 = arith.mulf %430, %411 : vector<8x128xf32>
    %432 = arith.truncf %431 : vector<8x128xf32> to vector<8x128xbf16>
    %cst_123 = arith.constant dense<0.000000e+00> : vector<8x128xf32>
    %433 = tpu.matmul %432, %5, %cst_123 {dimension_numbers = #tpu.dot_dimension_numbers<[1], [0], [0], [1], [0, 0, 1, 1], [], []>} : vector<8x128xbf16>, vector<128x128xbf16>, vector<8x128xf32> -> vector<8x128xf32>
    %434 = arith.negf %433 : vector<8x128xf32>
    %435 = math.exp %434 : vector<8x128xf32>
    %cst_124 = arith.constant 1.000000e+00 : f32
    %436 = vector.broadcast %cst_124 : f32 to vector<8x128xf32>
    %437 = arith.addf %436, %435 : vector<8x128xf32>
    %438 = arith.divf %436, %437 : vector<8x128xf32>
    %cst_125 = arith.constant 2.000000e+00 : f32
    %439 = vector.broadcast %cst_125 : f32 to vector<8x128xf32>
    %440 = arith.mulf %439, %438 : vector<8x128xf32>
    %441 = arith.mulf %440, %421 : vector<8x128xf32>
    %442 = arith.truncf %431 : vector<8x128xf32> to vector<8x128xbf16>
    %443 = arith.truncf %441 : vector<8x128xf32> to vector<8x128xbf16>
    %444 = tpu.concatenate %442, %443 in 1 : vector<8x128xbf16>, vector<8x128xbf16> -> vector<8x256xbf16>
    %cst_126 = arith.constant dense<0.000000e+00> : vector<8x512xf32>
    %445 = tpu.matmul %444, %3, %cst_126 {dimension_numbers = #tpu.dot_dimension_numbers<[1], [0], [0], [1], [0, 0, 1, 1], [], []>} : vector<8x256xbf16>, vector<256x512xbf16>, vector<8x512xf32> -> vector<8x512xf32>
    %446 = vector.broadcast %6 : vector<1x512xf32> to vector<8x512xf32>
    %447 = arith.addf %445, %446 : vector<8x512xf32>
    %448 = vector.extract_strided_slice %447 {offsets = [0, 0], sizes = [8, 128], strides = [1, 1]} : vector<8x512xf32> to vector<8x128xf32>
    %449 = vector.extract_strided_slice %447 {offsets = [0, 128], sizes = [8, 128], strides = [1, 1]} : vector<8x512xf32> to vector<8x128xf32>
    %450 = vector.extract_strided_slice %447 {offsets = [0, 256], sizes = [8, 128], strides = [1, 1]} : vector<8x512xf32> to vector<8x128xf32>
    %451 = vector.extract_strided_slice %447 {offsets = [0, 384], sizes = [8, 128], strides = [1, 1]} : vector<8x512xf32> to vector<8x128xf32>
    %452 = arith.negf %448 : vector<8x128xf32>
    %453 = math.exp %452 : vector<8x128xf32>
    %cst_127 = arith.constant 1.000000e+00 : f32
    %454 = vector.broadcast %cst_127 : f32 to vector<8x128xf32>
    %455 = arith.addf %454, %453 : vector<8x128xf32>
    %456 = arith.divf %454, %455 : vector<8x128xf32>
    %457 = arith.negf %449 : vector<8x128xf32>
    %458 = math.exp %457 : vector<8x128xf32>
    %cst_128 = arith.constant 1.000000e+00 : f32
    %459 = vector.broadcast %cst_128 : f32 to vector<8x128xf32>
    %460 = arith.addf %459, %458 : vector<8x128xf32>
    %461 = arith.divf %459, %460 : vector<8x128xf32>
    %462 = math.tanh %450 : vector<8x128xf32>
    %463 = arith.negf %451 : vector<8x128xf32>
    %464 = math.exp %463 : vector<8x128xf32>
    %cst_129 = arith.constant 1.000000e+00 : f32
    %465 = vector.broadcast %cst_129 : f32 to vector<8x128xf32>
    %466 = arith.addf %465, %464 : vector<8x128xf32>
    %467 = arith.divf %465, %466 : vector<8x128xf32>
    %468 = arith.mulf %461, %392 : vector<8x128xf32>
    %469 = arith.mulf %456, %462 : vector<8x128xf32>
    %470 = arith.addf %468, %469 : vector<8x128xf32>
    %471 = math.tanh %470 : vector<8x128xf32>
    %472 = arith.mulf %467, %471 : vector<8x128xf32>
    %473 = arith.index_cast %c5_i32 : i32 to index
    %c0_130 = arith.constant 0 : index
    %c0_131 = arith.constant 0 : index
    %474 = vector.load %arg6[%473, %c0_130, %c0_131] : memref<8x8x128xf32, #tpu.memory_space<vmem>>, vector<1x8x128xf32>
    %475 = vector.shape_cast %474 : vector<1x8x128xf32> to vector<8x128xf32>
    %476 = vector.shape_cast %472 : vector<8x128xf32> to vector<1x8x128xf32>
    tpu.vector_store %arg6[%473, %c0_130, %c0_131], %476 {strides = array<i32>} : memref<8x8x128xf32, #tpu.memory_space<vmem>>, vector<1x8x128xf32>,
    %c6_i32 = arith.constant 6 : i32
    %477 = arith.index_cast %c6_i32 : i32 to index
    %c0_132 = arith.constant 0 : index
    %c0_133 = arith.constant 0 : index
    %478 = vector.load %arg1[%477, %c0_132, %c0_133] : memref<8x8x128xf32, #tpu.memory_space<vmem>>, vector<1x8x128xf32>
    %479 = vector.shape_cast %478 : vector<1x8x128xf32> to vector<8x128xf32>
    %480 = arith.truncf %472 : vector<8x128xf32> to vector<8x128xbf16>
    %cst_134 = arith.constant dense<0.000000e+00> : vector<8x128xf32>
    %481 = tpu.matmul %480, %4, %cst_134 {dimension_numbers = #tpu.dot_dimension_numbers<[1], [0], [0], [1], [0, 0, 1, 1], [], []>} : vector<8x128xbf16>, vector<128x128xbf16>, vector<8x128xf32> -> vector<8x128xf32>
    %482 = arith.negf %481 : vector<8x128xf32>
    %483 = math.exp %482 : vector<8x128xf32>
    %cst_135 = arith.constant 1.000000e+00 : f32
    %484 = vector.broadcast %cst_135 : f32 to vector<8x128xf32>
    %485 = arith.addf %484, %483 : vector<8x128xf32>
    %486 = arith.divf %484, %485 : vector<8x128xf32>
    %cst_136 = arith.constant 2.000000e+00 : f32
    %487 = vector.broadcast %cst_136 : f32 to vector<8x128xf32>
    %488 = arith.mulf %487, %486 : vector<8x128xf32>
    %489 = arith.mulf %488, %479 : vector<8x128xf32>
    %490 = arith.truncf %489 : vector<8x128xf32> to vector<8x128xbf16>
    %cst_137 = arith.constant dense<0.000000e+00> : vector<8x128xf32>
    %491 = tpu.matmul %490, %5, %cst_137 {dimension_numbers = #tpu.dot_dimension_numbers<[1], [0], [0], [1], [0, 0, 1, 1], [], []>} : vector<8x128xbf16>, vector<128x128xbf16>, vector<8x128xf32> -> vector<8x128xf32>
    %492 = arith.negf %491 : vector<8x128xf32>
    %493 = math.exp %492 : vector<8x128xf32>
    %cst_138 = arith.constant 1.000000e+00 : f32
    %494 = vector.broadcast %cst_138 : f32 to vector<8x128xf32>
    %495 = arith.addf %494, %493 : vector<8x128xf32>
    %496 = arith.divf %494, %495 : vector<8x128xf32>
    %cst_139 = arith.constant 2.000000e+00 : f32
    %497 = vector.broadcast %cst_139 : f32 to vector<8x128xf32>
    %498 = arith.mulf %497, %496 : vector<8x128xf32>
    %499 = arith.mulf %498, %472 : vector<8x128xf32>
    %500 = arith.truncf %499 : vector<8x128xf32> to vector<8x128xbf16>
    %cst_140 = arith.constant dense<0.000000e+00> : vector<8x128xf32>
    %501 = tpu.matmul %500, %4, %cst_140 {dimension_numbers = #tpu.dot_dimension_numbers<[1], [0], [0], [1], [0, 0, 1, 1], [], []>} : vector<8x128xbf16>, vector<128x128xbf16>, vector<8x128xf32> -> vector<8x128xf32>
    %502 = arith.negf %501 : vector<8x128xf32>
    %503 = math.exp %502 : vector<8x128xf32>
    %cst_141 = arith.constant 1.000000e+00 : f32
    %504 = vector.broadcast %cst_141 : f32 to vector<8x128xf32>
    %505 = arith.addf %504, %503 : vector<8x128xf32>
    %506 = arith.divf %504, %505 : vector<8x128xf32>
    %cst_142 = arith.constant 2.000000e+00 : f32
    %507 = vector.broadcast %cst_142 : f32 to vector<8x128xf32>
    %508 = arith.mulf %507, %506 : vector<8x128xf32>
    %509 = arith.mulf %508, %489 : vector<8x128xf32>
    %510 = arith.truncf %509 : vector<8x128xf32> to vector<8x128xbf16>
    %cst_143 = arith.constant dense<0.000000e+00> : vector<8x128xf32>
    %511 = tpu.matmul %510, %5, %cst_143 {dimension_numbers = #tpu.dot_dimension_numbers<[1], [0], [0], [1], [0, 0, 1, 1], [], []>} : vector<8x128xbf16>, vector<128x128xbf16>, vector<8x128xf32> -> vector<8x128xf32>
    %512 = arith.negf %511 : vector<8x128xf32>
    %513 = math.exp %512 : vector<8x128xf32>
    %cst_144 = arith.constant 1.000000e+00 : f32
    %514 = vector.broadcast %cst_144 : f32 to vector<8x128xf32>
    %515 = arith.addf %514, %513 : vector<8x128xf32>
    %516 = arith.divf %514, %515 : vector<8x128xf32>
    %cst_145 = arith.constant 2.000000e+00 : f32
    %517 = vector.broadcast %cst_145 : f32 to vector<8x128xf32>
    %518 = arith.mulf %517, %516 : vector<8x128xf32>
    %519 = arith.mulf %518, %499 : vector<8x128xf32>
    %520 = arith.truncf %509 : vector<8x128xf32> to vector<8x128xbf16>
    %521 = arith.truncf %519 : vector<8x128xf32> to vector<8x128xbf16>
    %522 = tpu.concatenate %520, %521 in 1 : vector<8x128xbf16>, vector<8x128xbf16> -> vector<8x256xbf16>
    %cst_146 = arith.constant dense<0.000000e+00> : vector<8x512xf32>
    %523 = tpu.matmul %522, %3, %cst_146 {dimension_numbers = #tpu.dot_dimension_numbers<[1], [0], [0], [1], [0, 0, 1, 1], [], []>} : vector<8x256xbf16>, vector<256x512xbf16>, vector<8x512xf32> -> vector<8x512xf32>
    %524 = vector.broadcast %6 : vector<1x512xf32> to vector<8x512xf32>
    %525 = arith.addf %523, %524 : vector<8x512xf32>
    %526 = vector.extract_strided_slice %525 {offsets = [0, 0], sizes = [8, 128], strides = [1, 1]} : vector<8x512xf32> to vector<8x128xf32>
    %527 = vector.extract_strided_slice %525 {offsets = [0, 128], sizes = [8, 128], strides = [1, 1]} : vector<8x512xf32> to vector<8x128xf32>
    %528 = vector.extract_strided_slice %525 {offsets = [0, 256], sizes = [8, 128], strides = [1, 1]} : vector<8x512xf32> to vector<8x128xf32>
    %529 = vector.extract_strided_slice %525 {offsets = [0, 384], sizes = [8, 128], strides = [1, 1]} : vector<8x512xf32> to vector<8x128xf32>
    %530 = arith.negf %526 : vector<8x128xf32>
    %531 = math.exp %530 : vector<8x128xf32>
    %cst_147 = arith.constant 1.000000e+00 : f32
    %532 = vector.broadcast %cst_147 : f32 to vector<8x128xf32>
    %533 = arith.addf %532, %531 : vector<8x128xf32>
    %534 = arith.divf %532, %533 : vector<8x128xf32>
    %535 = arith.negf %527 : vector<8x128xf32>
    %536 = math.exp %535 : vector<8x128xf32>
    %cst_148 = arith.constant 1.000000e+00 : f32
    %537 = vector.broadcast %cst_148 : f32 to vector<8x128xf32>
    %538 = arith.addf %537, %536 : vector<8x128xf32>
    %539 = arith.divf %537, %538 : vector<8x128xf32>
    %540 = math.tanh %528 : vector<8x128xf32>
    %541 = arith.negf %529 : vector<8x128xf32>
    %542 = math.exp %541 : vector<8x128xf32>
    %cst_149 = arith.constant 1.000000e+00 : f32
    %543 = vector.broadcast %cst_149 : f32 to vector<8x128xf32>
    %544 = arith.addf %543, %542 : vector<8x128xf32>
    %545 = arith.divf %543, %544 : vector<8x128xf32>
    %546 = arith.mulf %539, %470 : vector<8x128xf32>
    %547 = arith.mulf %534, %540 : vector<8x128xf32>
    %548 = arith.addf %546, %547 : vector<8x128xf32>
    %549 = math.tanh %548 : vector<8x128xf32>
    %550 = arith.mulf %545, %549 : vector<8x128xf32>
    %551 = arith.index_cast %c6_i32 : i32 to index
    %c0_150 = arith.constant 0 : index
    %c0_151 = arith.constant 0 : index
    %552 = vector.load %arg6[%551, %c0_150, %c0_151] : memref<8x8x128xf32, #tpu.memory_space<vmem>>, vector<1x8x128xf32>
    %553 = vector.shape_cast %552 : vector<1x8x128xf32> to vector<8x128xf32>
    %554 = vector.shape_cast %550 : vector<8x128xf32> to vector<1x8x128xf32>
    tpu.vector_store %arg6[%551, %c0_150, %c0_151], %554 {strides = array<i32>} : memref<8x8x128xf32, #tpu.memory_space<vmem>>, vector<1x8x128xf32>,
    %c7_i32 = arith.constant 7 : i32
    %555 = arith.index_cast %c7_i32 : i32 to index
    %c0_152 = arith.constant 0 : index
    %c0_153 = arith.constant 0 : index
    %556 = vector.load %arg1[%555, %c0_152, %c0_153] : memref<8x8x128xf32, #tpu.memory_space<vmem>>, vector<1x8x128xf32>
    %557 = vector.shape_cast %556 : vector<1x8x128xf32> to vector<8x128xf32>
    %558 = arith.truncf %550 : vector<8x128xf32> to vector<8x128xbf16>
    %cst_154 = arith.constant dense<0.000000e+00> : vector<8x128xf32>
    %559 = tpu.matmul %558, %4, %cst_154 {dimension_numbers = #tpu.dot_dimension_numbers<[1], [0], [0], [1], [0, 0, 1, 1], [], []>} : vector<8x128xbf16>, vector<128x128xbf16>, vector<8x128xf32> -> vector<8x128xf32>
    %560 = arith.negf %559 : vector<8x128xf32>
    %561 = math.exp %560 : vector<8x128xf32>
    %cst_155 = arith.constant 1.000000e+00 : f32
    %562 = vector.broadcast %cst_155 : f32 to vector<8x128xf32>
    %563 = arith.addf %562, %561 : vector<8x128xf32>
    %564 = arith.divf %562, %563 : vector<8x128xf32>
    %cst_156 = arith.constant 2.000000e+00 : f32
    %565 = vector.broadcast %cst_156 : f32 to vector<8x128xf32>
    %566 = arith.mulf %565, %564 : vector<8x128xf32>
    %567 = arith.mulf %566, %557 : vector<8x128xf32>
    %568 = arith.truncf %567 : vector<8x128xf32> to vector<8x128xbf16>
    %cst_157 = arith.constant dense<0.000000e+00> : vector<8x128xf32>
    %569 = tpu.matmul %568, %5, %cst_157 {dimension_numbers = #tpu.dot_dimension_numbers<[1], [0], [0], [1], [0, 0, 1, 1], [], []>} : vector<8x128xbf16>, vector<128x128xbf16>, vector<8x128xf32> -> vector<8x128xf32>
    %570 = arith.negf %569 : vector<8x128xf32>
    %571 = math.exp %570 : vector<8x128xf32>
    %cst_158 = arith.constant 1.000000e+00 : f32
    %572 = vector.broadcast %cst_158 : f32 to vector<8x128xf32>
    %573 = arith.addf %572, %571 : vector<8x128xf32>
    %574 = arith.divf %572, %573 : vector<8x128xf32>
    %cst_159 = arith.constant 2.000000e+00 : f32
    %575 = vector.broadcast %cst_159 : f32 to vector<8x128xf32>
    %576 = arith.mulf %575, %574 : vector<8x128xf32>
    %577 = arith.mulf %576, %550 : vector<8x128xf32>
    %578 = arith.truncf %577 : vector<8x128xf32> to vector<8x128xbf16>
    %cst_160 = arith.constant dense<0.000000e+00> : vector<8x128xf32>
    %579 = tpu.matmul %578, %4, %cst_160 {dimension_numbers = #tpu.dot_dimension_numbers<[1], [0], [0], [1], [0, 0, 1, 1], [], []>} : vector<8x128xbf16>, vector<128x128xbf16>, vector<8x128xf32> -> vector<8x128xf32>
    %580 = arith.negf %579 : vector<8x128xf32>
    %581 = math.exp %580 : vector<8x128xf32>
    %cst_161 = arith.constant 1.000000e+00 : f32
    %582 = vector.broadcast %cst_161 : f32 to vector<8x128xf32>
    %583 = arith.addf %582, %581 : vector<8x128xf32>
    %584 = arith.divf %582, %583 : vector<8x128xf32>
    %cst_162 = arith.constant 2.000000e+00 : f32
    %585 = vector.broadcast %cst_162 : f32 to vector<8x128xf32>
    %586 = arith.mulf %585, %584 : vector<8x128xf32>
    %587 = arith.mulf %586, %567 : vector<8x128xf32>
    %588 = arith.truncf %587 : vector<8x128xf32> to vector<8x128xbf16>
    %cst_163 = arith.constant dense<0.000000e+00> : vector<8x128xf32>
    %589 = tpu.matmul %588, %5, %cst_163 {dimension_numbers = #tpu.dot_dimension_numbers<[1], [0], [0], [1], [0, 0, 1, 1], [], []>} : vector<8x128xbf16>, vector<128x128xbf16>, vector<8x128xf32> -> vector<8x128xf32>
    %590 = arith.negf %589 : vector<8x128xf32>
    %591 = math.exp %590 : vector<8x128xf32>
    %cst_164 = arith.constant 1.000000e+00 : f32
    %592 = vector.broadcast %cst_164 : f32 to vector<8x128xf32>
    %593 = arith.addf %592, %591 : vector<8x128xf32>
    %594 = arith.divf %592, %593 : vector<8x128xf32>
    %cst_165 = arith.constant 2.000000e+00 : f32
    %595 = vector.broadcast %cst_165 : f32 to vector<8x128xf32>
    %596 = arith.mulf %595, %594 : vector<8x128xf32>
    %597 = arith.mulf %596, %577 : vector<8x128xf32>
    %598 = arith.truncf %587 : vector<8x128xf32> to vector<8x128xbf16>
    %599 = arith.truncf %597 : vector<8x128xf32> to vector<8x128xbf16>
    %600 = tpu.concatenate %598, %599 in 1 : vector<8x128xbf16>, vector<8x128xbf16> -> vector<8x256xbf16>
    %cst_166 = arith.constant dense<0.000000e+00> : vector<8x512xf32>
    %601 = tpu.matmul %600, %3, %cst_166 {dimension_numbers = #tpu.dot_dimension_numbers<[1], [0], [0], [1], [0, 0, 1, 1], [], []>} : vector<8x256xbf16>, vector<256x512xbf16>, vector<8x512xf32> -> vector<8x512xf32>
    %602 = vector.broadcast %6 : vector<1x512xf32> to vector<8x512xf32>
    %603 = arith.addf %601, %602 : vector<8x512xf32>
    %604 = vector.extract_strided_slice %603 {offsets = [0, 0], sizes = [8, 128], strides = [1, 1]} : vector<8x512xf32> to vector<8x128xf32>
    %605 = vector.extract_strided_slice %603 {offsets = [0, 128], sizes = [8, 128], strides = [1, 1]} : vector<8x512xf32> to vector<8x128xf32>
    %606 = vector.extract_strided_slice %603 {offsets = [0, 256], sizes = [8, 128], strides = [1, 1]} : vector<8x512xf32> to vector<8x128xf32>
    %607 = vector.extract_strided_slice %603 {offsets = [0, 384], sizes = [8, 128], strides = [1, 1]} : vector<8x512xf32> to vector<8x128xf32>
    %608 = arith.negf %604 : vector<8x128xf32>
    %609 = math.exp %608 : vector<8x128xf32>
    %cst_167 = arith.constant 1.000000e+00 : f32
    %610 = vector.broadcast %cst_167 : f32 to vector<8x128xf32>
    %611 = arith.addf %610, %609 : vector<8x128xf32>
    %612 = arith.divf %610, %611 : vector<8x128xf32>
    %613 = arith.negf %605 : vector<8x128xf32>
    %614 = math.exp %613 : vector<8x128xf32>
    %cst_168 = arith.constant 1.000000e+00 : f32
    %615 = vector.broadcast %cst_168 : f32 to vector<8x128xf32>
    %616 = arith.addf %615, %614 : vector<8x128xf32>
    %617 = arith.divf %615, %616 : vector<8x128xf32>
    %618 = math.tanh %606 : vector<8x128xf32>
    %619 = arith.negf %607 : vector<8x128xf32>
    %620 = math.exp %619 : vector<8x128xf32>
    %cst_169 = arith.constant 1.000000e+00 : f32
    %621 = vector.broadcast %cst_169 : f32 to vector<8x128xf32>
    %622 = arith.addf %621, %620 : vector<8x128xf32>
    %623 = arith.divf %621, %622 : vector<8x128xf32>
    %624 = arith.mulf %617, %548 : vector<8x128xf32>
    %625 = arith.mulf %612, %618 : vector<8x128xf32>
    %626 = arith.addf %624, %625 : vector<8x128xf32>
    %627 = math.tanh %626 : vector<8x128xf32>
    %628 = arith.mulf %623, %627 : vector<8x128xf32>
    %629 = arith.index_cast %c7_i32 : i32 to index
    %c0_170 = arith.constant 0 : index
    %c0_171 = arith.constant 0 : index
    %630 = vector.load %arg6[%629, %c0_170, %c0_171] : memref<8x8x128xf32, #tpu.memory_space<vmem>>, vector<1x8x128xf32>
    %631 = vector.shape_cast %630 : vector<1x8x128xf32> to vector<8x128xf32>
    %632 = vector.shape_cast %628 : vector<8x128xf32> to vector<1x8x128xf32>
    tpu.vector_store %arg6[%629, %c0_170, %c0_171], %632 {strides = array<i32>} : memref<8x8x128xf32, #tpu.memory_space<vmem>>, vector<1x8x128xf32>,
    %c8_i32 = arith.constant 8 : i32
    %c0_172 = arith.constant 0 : index
    %c0_173 = arith.constant 0 : index
    %633 = vector.load %arg11[%c0_172, %c0_173] : memref<8x128xf32, #tpu.memory_space<vmem>>, vector<8x128xf32>
    tpu.vector_store %arg11[%c0_172, %c0_173], %628 {strides = array<i32>} : memref<8x128xf32, #tpu.memory_space<vmem>>, vector<8x128xf32>,
    %c0_174 = arith.constant 0 : index
    %c0_175 = arith.constant 0 : index
    %634 = vector.load %arg12[%c0_174, %c0_175] : memref<8x128xf32, #tpu.memory_space<vmem>>, vector<8x128xf32>
    tpu.vector_store %arg12[%c0_174, %c0_175], %626 {strides = array<i32>} : memref<8x128xf32, #tpu.memory_space<vmem>>, vector<8x128xf32>,
    %c0_i32_176 = arith.constant 0 : i32
    %635 = arith.cmpi eq, %arg0, %c0_i32_176 : i32
    %636 = arith.extui %635 : i1 to i32
    %c0_i32_177 = arith.constant 0 : i32
    %637 = arith.cmpi ne, %636, %c0_i32_177 : i32
    scf.if %637 {
      %c0_178 = arith.constant 0 : index
      %c0_179 = arith.constant 0 : index
      %638 = vector.load %arg7[%c0_178, %c0_179] : memref<8x128xf32, #tpu.memory_space<vmem>>, vector<8x128xf32>
      tpu.vector_store %arg7[%c0_178, %c0_179], %626 {strides = array<i32>} : memref<8x128xf32, #tpu.memory_space<vmem>>, vector<8x128xf32>,
    } else {
    }
    return
  }
  func.func @transform_0(%arg0: i32) -> (i32, i32, i32) {
    %c0_i32 = arith.constant 0 : i32
    %c0_i32_0 = arith.constant 0 : i32
    %c0_i32_1 = arith.constant 0 : i32
    return %arg0, %c0_i32, %c0_i32_0 : i32, i32, i32
  }
  func.func @transform_4(%arg0: i32) -> (i32, i32) {
    %c0_i32 = arith.constant 0 : i32
    %c0_i32_0 = arith.constant 0 : i32
    %c0_i32_1 = arith.constant 0 : i32
    return %c0_i32, %c0_i32_0 : i32, i32
  }
  func.func @transform_5(%arg0: i32) -> (i32, i32, i32) {
    %c0_i32 = arith.constant 0 : i32
    %c0_i32_0 = arith.constant 0 : i32
    %c0_i32_1 = arith.constant 0 : i32
    return %arg0, %c0_i32, %c0_i32_0 : i32, i32, i32
  }
  func.func @transform_6(%arg0: i32) -> (i32, i32) {
    %c0_i32 = arith.constant 0 : i32
    %c0_i32_0 = arith.constant 0 : i32
    %c0_i32_1 = arith.constant 0 : i32
    return %c0_i32, %c0_i32_0 : i32, i32
  }
}

</mosaic_0001>

<llo_original>
// kernel: tpu_custom_call.1
$region0: #{tpu_custom_call.1}
  #allocation0 [shape = 'u32[]', space=smem, size = 0x4, offset = 0x4, fixed_abs, tag = 'smem constant byte address 0x4 - core index']
  #allocation1 [shape = 'u32[144,128]{1,0:T(1,128)}', space=vmem, size = 0x12000, scoped, tag = 'internal scratch']
  #allocation2 [shape = 'bf16[256,512]{1,0:T(16,128)(2,1)}', space=vmem, size = 0x40000, scoped, tag = 'scratch operand']
  #allocation3 [shape = 'bf16[128,128]{1,0:T(16,128)(2,1)}', space=vmem, size = 0x8000, scoped, tag = 'scratch operand']
  #allocation4 [shape = 'bf16[128,128]{1,0:T(16,128)(2,1)}', space=vmem, size = 0x8000, scoped, tag = 'scratch operand']
  #allocation5 [shape = 'f32[8,128]{1,0:T(8,128)}', space=vmem, size = 0x1000, scoped, tag = 'scratch operand']
  #allocation6 [shape = 'f32[8,128]{1,0:T(8,128)}', space=vmem, size = 0x1000, scoped, tag = 'scratch operand']
  #allocation7 [shape = 's32[3]{0}', space=sflag, size = 0xc, scoped, tag = 'scratch operand']
  #allocation14 [shape = 's32[]', space=sflag, size = 0x4, offset = 0, fixed_abs, tag = 'sflag constant byte address 0x0 - dummy sync flag']
  #allocation16 [shape = 's32[]', space=sflag, size = 0x4, offset = 0, fixed_abs, tag = 'sflag constant byte address 0x0 - dummy sync flag']
  #allocation17 [shape = 's32[]', space=sflag, size = 0x4, offset = 0, fixed_abs, tag = 'sflag constant byte address 0x0 - dummy sync flag']
  #allocation18 [shape = 'u32[]', space=smem, size = 0x4, offset = 0x44, fixed_abs, tag = 'smem constant byte address 0x44 - assertion arg 0']
  #allocation19 [shape = 'u32[]', space=smem, size = 0x4, offset = 0x48, fixed_abs, tag = 'smem constant byte address 0x48 - assertion arg 1']
  #allocation20 [shape = 's32[]', space=sflag, size = 0x4, offset = 0, fixed_abs, tag = 'sflag constant byte address 0x0 - dummy sync flag']
  #allocation21 [shape = 's32[]', space=sflag, size = 0x4, offset = 0, fixed_abs, tag = 'sflag constant byte address 0x0 - dummy sync flag']
  %s0 = inlined_call_operand.hbm [shape: f32[8,8,128], index: 0, kind: input, shape index: {}]
  %s1 = inlined_call_operand.hbm [shape: bf16[256,512], index: 1, kind: input, shape index: {}]
  %s2 = inlined_call_operand.hbm [shape: bf16[128,128], index: 2, kind: input, shape index: {}]
  %s3 = inlined_call_operand.hbm [shape: bf16[128,128], index: 3, kind: input, shape index: {}]
  %s4 = inlined_call_operand.vmem [shape: f32[1,512], index: 4, kind: input, shape index: {}]
  %s5 = inlined_call_operand.hbm [shape: f32[8,8,128], index: 5, kind: output, shape index: {0}]
  %s6 = inlined_call_operand.hbm [shape: f32[8,128], index: 6, kind: output, shape index: {1}]
  %7 = xla_tuple %s5, %s6
  %s8 = sld [smem:[#allocation0]]
  $region46: #{tpu_custom_call.1} parent=0
    _
  %s10 = ssub.s32 1, %s8
  %s11 = scalar_select 0, %s10, %s8
  $region1: #{tpu_custom_call.1} parent=0
    #allocation8 [shape = 'u8[32768]{0}', space=vmem, size = 0x8000, scoped, tag = 'input window, operand 0, single buffered']
    #allocation9 [shape = 's32[1]{0}', space=sflag, size = 0x4, scoped, tag = 'scoped memory for tpu_custom_call.1']
    #allocation10 [shape = 's32[1]{0}', space=sflag, size = 0x4, scoped, tag = 'scoped memory for tpu_custom_call.1']
    #allocation11 [shape = 'u8[32768]{0}', space=vmem, size = 0x8000, scoped, tag = 'output window, operand 0, single buffered']
    #allocation12 [shape = 'u8[4096]{0}', space=vmem, size = 0x1000, scoped, tag = 'output window, operand 1, single buffered']
    #allocation13 [shape = 's32[1]{0}', space=sflag, size = 0x4, scoped, tag = 'scoped memory for tpu_custom_call.1']
    %12 = vsyncpa [#allocation9], 0
    %13 = vsyncpa [#allocation10], 0
    %14 = vsyncpa [#allocation13], 0
    // Predicated region
    $region2: #{tpu_custom_call.1} parent=1 // pred_check
      _
    $region3: #{tpu_custom_call.1} parent=1 // pred_check_branch
      %16 = sbr.rel (0) target = $region5
    $region4: #{tpu_custom_call.1} parent=1 // pred_region
      %s18 = ssub.s32 1024, 1024
      %19 = vsyncadd [#allocation9], %s18
      %s20 = sshll.u32 [#allocation8], 4
      %s21 = int_to_ptr.vmem [resolvable:$true] %s20
      %26 = dma.hbm_to_vmem [thread:$0]  %s0, 1024, %s21, [#allocation9], 128, 128, 8
    $region5: #{tpu_custom_call.1} parent=1 // pred_fallthru
      _
    // Predicated region
    $region6: #{tpu_custom_call.1} parent=1 // pred_check
      _
    $region7: #{tpu_custom_call.1} parent=1 // pred_check_branch
      %28 = sbr.rel (0) target = $region9
    $region8: #{tpu_custom_call.1} parent=1 // pred_region
      _
    $region9: #{tpu_custom_call.1} parent=1 // pred_fallthru
      _
    // Predicated region
    $region10: #{tpu_custom_call.1} parent=1 // pred_check
      _
    $region11: #{tpu_custom_call.1} parent=1 // pred_check_branch
      %30 = sbr.rel (0) target = $region13
    $region12: #{tpu_custom_call.1} parent=1 // pred_region
      %31 = dma.done [#allocation9], 1024
    $region13: #{tpu_custom_call.1} parent=1 // pred_fallthru
      _
    %p33 = scmp.eq.s32.totalorder 0, 0
    // Predicated region
    $region14: #{tpu_custom_call.1} parent=1 // pred_check
      %p34 = pneg %p33
    $region15: #{tpu_custom_call.1} parent=1 // pred_check_branch
      %36 = sbr.rel (%p34) target = $region17
    $region16: #{tpu_custom_call.1} parent=1 // pred_region
      #allocation15 [shape = 'u32[9]{0}', space=smem, size = 0x24, scoped, tag = 'DMA stride descriptor']
      %s38 = sshll.u32 1, 14
      %s39 = sxor.u32 4294967295, %s38
      %s41 = sld [smem:[#allocation0]]
      %s42 = sadd.s32 2, %s41
      %s44 = sshll.u32 7, 26
      %s45 = sxor.u32 4294967295, %s44
      %s46 = sand.u32 0, %s45
      %s47 = sshll.u32 %s42, 26
      %s48 = sor.u32 %s46, %s47
      %s49 = sshll.u32 [#allocation2], 4
      %s50 = int_to_ptr.vmem [resolvable:$true] %s49
      %53 = sst [smem:[#allocation15]] 512
      %s54 = scalar_lea.smem [#allocation15], 1
      %55 = sst [smem:[%s54]] 512
      %s56 = scalar_lea.smem [#allocation15], 2
      %57 = sst [smem:[%s56]] 4
      %s58 = scalar_lea.smem [#allocation15], 3
      %59 = sst [smem:[%s58]] 64
      %s60 = scalar_lea.smem [#allocation15], 4
      %61 = sst [smem:[%s60]] 128
      %s62 = scalar_lea.smem [#allocation15], 5
      %63 = sst [smem:[%s62]] 2
      %s64 = scalar_lea.smem [#allocation15], 6
      %65 = sst [smem:[%s64]] 256
      %s66 = scalar_lea.smem [#allocation15], 7
      %67 = sst [smem:[%s66]] 64
      %s68 = scalar_lea.smem [#allocation15], 8
      %69 = sst [smem:[%s68]] 4
      %71 = dma.general %s1, 8192, %s50, [#allocation7], [#allocation14], [#allocation15], %s48, 0
      %s72 = scalar_lea.sflag [#allocation7], 1
      // Predicated region
      $region18: #{tpu_custom_call.1} parent=16 // pred_check
        _
      $region19: #{tpu_custom_call.1} parent=16 // pred_check_branch
        %74 = sbr.rel target = $region21
      $region20: #{tpu_custom_call.1} parent=16 // pred_region
        %75 = sst [smem:[#allocation18]] [#allocation17]
        %76 = sst [smem:[#allocation19]] [#allocation16]
      $region21: #{tpu_custom_call.1} parent=16 // pred_fallthru
        _
      %78 = shalt.err (0)
      %s80 = sshll.u32 [#allocation3], 4
      %s81 = int_to_ptr.vmem [resolvable:$true] %s80
      %83 = dma.hbm_to_vmem [thread:$0]  %s2, 1024, %s81, %s72
      %s84 = scalar_lea.sflag [#allocation7], 2
      // Predicated region
      $region22: #{tpu_custom_call.1} parent=16 // pred_check
        _
      $region23: #{tpu_custom_call.1} parent=16 // pred_check_branch
        %86 = sbr.rel target = $region25
      $region24: #{tpu_custom_call.1} parent=16 // pred_region
        %87 = sst [smem:[#allocation18]] [#allocation21]
        %88 = sst [smem:[#allocation19]] [#allocation20]
      $region25: #{tpu_custom_call.1} parent=16 // pred_fallthru
        _
      %90 = shalt.err (0)
      %s92 = sshll.u32 [#allocation4], 4
      %s93 = int_to_ptr.vmem [resolvable:$true] %s92
      %95 = dma.hbm_to_vmem [thread:$0]  %s3, 1024, %s93, %s84
      %s96 = smul.u32 4, 32
      %s97 = smul.u32 %s96, 4
      %s98 = sshll.u32 %s97, 4
      %99 = dma.done [#allocation7], %s98
      %s100 = smul.u32 4, 16
      %s101 = smul.u32 %s100, 1
      %s102 = sshll.u32 %s101, 4
      %103 = dma.done %s72, %s102
      %s104 = sshll.u32 %s101, 4
      %105 = dma.done %s84, %s104
      %106 = vst [vmem:[#allocation5] sm:$0xff] 0.0
      %107 = vst [vmem:[#allocation6] sm:$0xff] 0.0
    $region17: #{tpu_custom_call.1} parent=1 // pred_fallthru
      _
    %v108 = vld [vmem:[#allocation2] sm:$0xff]
    %v109 = vld [vmem:[#allocation2 + $0x8] sm:$0xff]
    %v110 = vld [vmem:[#allocation2 + $0x10] sm:$0xff]
    %v111 = vld [vmem:[#allocation2 + $0x18] sm:$0xff]
    %v112 = vld [vmem:[#allocation2 + $0x20] sm:$0xff]
    %v113 = vld [vmem:[#allocation2 + $0x28] sm:$0xff]
    %v114 = vld [vmem:[#allocation2 + $0x30] sm:$0xff]
    %v115 = vld [vmem:[#allocation2 + $0x38] sm:$0xff]
    %v116 = vld [vmem:[#allocation2 + $0x40] sm:$0xff]
    %v117 = vld [vmem:[#allocation2 + $0x48] sm:$0xff]
    %v118 = vld [vmem:[#allocation2 + $0x50] sm:$0xff]
    %v119 = vld [vmem:[#allocation2 + $0x58] sm:$0xff]
    %v120 = vld [vmem:[#allocation2 + $0x60] sm:$0xff]
    %v121 = vld [vmem:[#allocation2 + $0x68] sm:$0xff]
    %v122 = vld [vmem:[#allocation2 + $0x70] sm:$0xff]
    %v123 = vld [vmem:[#allocation2 + $0x78] sm:$0xff]
    %v124 = vld [vmem:[#allocation2 + $0x80] sm:$0xff]
    %v125 = vld [vmem:[#allocation2 + $0x88] sm:$0xff]
    %v126 = vld [vmem:[#allocation2 + $0x90] sm:$0xff]
    %v127 = vld [vmem:[#allocation2 + $0x98] sm:$0xff]
    %v128 = vld [vmem:[#allocation2 + $0xa0] sm:$0xff]
    %v129 = vld [vmem:[#allocation2 + $0xa8] sm:$0xff]
    %v130 = vld [vmem:[#allocation2 + $0xb0] sm:$0xff]
    %v131 = vld [vmem:[#allocation2 + $0xb8] sm:$0xff]
    %v132 = vld [vmem:[#allocation2 + $0xc0] sm:$0xff]
    %v133 = vld [vmem:[#allocation2 + $0xc8] sm:$0xff]
    %v134 = vld [vmem:[#allocation2 + $0xd0] sm:$0xff]
    %v135 = vld [vmem:[#allocation2 + $0xd8] sm:$0xff]
    %v136 = vld [vmem:[#allocation2 + $0xe0] sm:$0xff]
    %v137 = vld [vmem:[#allocation2 + $0xe8] sm:$0xff]
    %v138 = vld [vmem:[#allocation2 + $0xf0] sm:$0xff]
    %v139 = vld [vmem:[#allocation2 + $0xf8] sm:$0xff]
    %v140 = vld [vmem:[#allocation2 + $0x100] sm:$0xff]
    %v141 = vld [vmem:[#allocation2 + $0x108] sm:$0xff]
    %v142 = vld [vmem:[#allocation2 + $0x110] sm:$0xff]
    %v143 = vld [vmem:[#allocation2 + $0x118] sm:$0xff]
    %v144 = vld [vmem:[#allocation2 + $0x120] sm:$0xff]
    %v145 = vld [vmem:[#allocation2 + $0x128] sm:$0xff]
    %v146 = vld [vmem:[#allocation2 + $0x130] sm:$0xff]
    %v147 = vld [vmem:[#allocation2 + $0x138] sm:$0xff]
    %v148 = vld [vmem:[#allocation2 + $0x140] sm:$0xff]
    %v149 = vld [vmem:[#allocation2 + $0x148] sm:$0xff]
    %v150 = vld [vmem:[#allocation2 + $0x150] sm:$0xff]
    %v151 = vld [vmem:[#allocation2 + $0x158] sm:$0xff]
    %v152 = vld [vmem:[#allocation2 + $0x160] sm:$0xff]
    %v153 = vld [vmem:[#allocation2 + $0x168] sm:$0xff]
    %v154 = vld [vmem:[#allocation2 + $0x170] sm:$0xff]
    %v155 = vld [vmem:[#allocation2 + $0x178] sm:$0xff]
    %v156 = vld [vmem:[#allocation2 + $0x180] sm:$0xff]
    %v157 = vld [vmem:[#allocation2 + $0x188] sm:$0xff]
    %v158 = vld [vmem:[#allocation2 + $0x190] sm:$0xff]
    %v159 = vld [vmem:[#allocation2 + $0x198] sm:$0xff]
    %v160 = vld [vmem:[#allocation2 + $0x1a0] sm:$0xff]
    %v161 = vld [vmem:[#allocation2 + $0x1a8] sm:$0xff]
    %v162 = vld [vmem:[#allocation2 + $0x1b0] sm:$0xff]
    %v163 = vld [vmem:[#allocation2 + $0x1b8] sm:$0xff]
    %v164 = vld [vmem:[#allocation2 + $0x1c0] sm:$0xff]
    %v165 = vld [vmem:[#allocation2 + $0x1c8] sm:$0xff]
    %v166 = vld [vmem:[#allocation2 + $0x1d0] sm:$0xff]
    %v167 = vld [vmem:[#allocation2 + $0x1d8] sm:$0xff]
    %v168 = vld [vmem:[#allocation2 + $0x1e0] sm:$0xff]
    %v169 = vld [vmem:[#allocation2 + $0x1e8] sm:$0xff]
    %v170 = vld [vmem:[#allocation2 + $0x1f0] sm:$0xff]
    %v171 = vld [vmem:[#allocation2 + $0x1f8] sm:$0xff]
    %v172 = vld [vmem:[#allocation3] sm:$0xff]
    %v173 = vld [vmem:[#allocation3 + $0x8] sm:$0xff]
    %v174 = vld [vmem:[#allocation3 + $0x10] sm:$0xff]
    %v175 = vld [vmem:[#allocation3 + $0x18] sm:$0xff]
    %v176 = vld [vmem:[#allocation3 + $0x20] sm:$0xff]
    %v177 = vld [vmem:[#allocation3 + $0x28] sm:$0xff]
    %v178 = vld [vmem:[#allocation3 + $0x30] sm:$0xff]
    %v179 = vld [vmem:[#allocation3 + $0x38] sm:$0xff]
    %v180 = vld [vmem:[#allocation4] sm:$0xff]
    %v181 = vld [vmem:[#allocation4 + $0x8] sm:$0xff]
    %v182 = vld [vmem:[#allocation4 + $0x10] sm:$0xff]
    %v183 = vld [vmem:[#allocation4 + $0x18] sm:$0xff]
    %v184 = vld [vmem:[#allocation4 + $0x20] sm:$0xff]
    %v185 = vld [vmem:[#allocation4 + $0x28] sm:$0xff]
    %v186 = vld [vmem:[#allocation4 + $0x30] sm:$0xff]
    %v187 = vld [vmem:[#allocation4 + $0x38] sm:$0xff]
    %v188 = vld [vmem:[%s4] sm:$0xf]
    %v189 = vld [vmem:[#allocation5] sm:$0xff]
    %v190 = vld [vmem:[#allocation6] sm:$0xff]
    %v191 = vld [vmem:[#allocation8] sm:$0xff]
    %v192 = vpack.c.bf16 %v189, %v189
    %193 = vmatprep.subr.bf16.mxu0 0
    %194 = vmatpush1.bf16.msra.mxu0 %v172
    %195 = vmatprep.subr.bf16.mxu0 0
    %196 = vmatpush1.bf16.msra.mxu0 %v173
    %197 = vmatprep.subr.bf16.mxu0 0
    %198 = vmatpush1.bf16.msra.mxu0 %v174
    %199 = vmatprep.subr.bf16.mxu0 0
    %200 = vmatpush1.bf16.msra.mxu0 %v175
    %201 = vmatprep.subr.bf16.mxu0 0
    %202 = vmatpush1.bf16.msra.mxu0 %v176
    %203 = vmatprep.subr.bf16.mxu0 0
    %204 = vmatpush1.bf16.msra.mxu0 %v177
    %205 = vmatprep.subr.bf16.mxu0 0
    %206 = vmatpush1.bf16.msra.mxu0 %v178
    %207 = vmatprep.subr.bf16.mxu0 0
    %208 = vmatpush1.bf16.msra.mxu0 %v179
    %209 = vmatprep.subr.bf16.mxu0 0
    %210 = vmatpush1.bf16.msra.mxu0 0
    %211 = vmatprep.subr.bf16.mxu0 0
    %212 = vmatpush1.bf16.msra.mxu0 0
    %213 = vmatprep.subr.bf16.mxu0 0
    %214 = vmatpush1.bf16.msra.mxu0 0
    %215 = vmatprep.subr.bf16.mxu0 0
    %216 = vmatpush1.bf16.msra.mxu0 0
    %217 = vmatprep.subr.bf16.mxu0 0
    %218 = vmatpush1.bf16.msra.mxu0 0
    %219 = vmatprep.subr.bf16.mxu0 0
    %220 = vmatpush1.bf16.msra.mxu0 0
    %221 = vmatprep.subr.bf16.mxu0 0
    %222 = vmatpush1.bf16.msra.mxu0 0
    %223 = vmatprep.subr.bf16.mxu0 0
    %224 = vmatpush1.bf16.msra.mxu0 0
    %225 = vmatprep.mubr.bf16.mxu0 0
    %226 = vmatmul.mubr.bf16.gmra.mrb[0].mxu0 %v192
    %v227 = vpop.f32.mrb[0].mxu0
    %v228 = vadd.f32 0.0, %v227
    %v229 = vpop.f32.mrb[0].mxu0
    %v230 = vpop.f32.mrb[0].mxu0
    %v231 = vpop.f32.mrb[0].mxu0
    %232 = vdwg.mxu0
    %v233 = vxor.u32 %v228, 2147483648
    %v234 = vmul.f32 %v233, 1.442695
    %v235 = vpow.pop %v234
    %v236 = vadd.f32 %v235, 1.0
    %v237 = vrcp.pop %v236
    %v238 = vmul.f32 1.0, %v237
    %v239 = vmul.f32 %v238, 2.0
    %v240 = vmul.f32 %v239, %v191
    %v241 = vpack.c.bf16 %v240, %v240
    %242 = vmatprep.subr.bf16.mxu0 0
    %243 = vmatpush1.bf16.msra.mxu0 %v180
    %244 = vmatprep.subr.bf16.mxu0 0
    %245 = vmatpush1.bf16.msra.mxu0 %v181
    %246 = vmatprep.subr.bf16.mxu0 0
    %247 = vmatpush1.bf16.msra.mxu0 %v182
    %248 = vmatprep.subr.bf16.mxu0 0
    %249 = vmatpush1.bf16.msra.mxu0 %v183
    %250 = vmatprep.subr.bf16.mxu0 0
    %251 = vmatpush1.bf16.msra.mxu0 %v184
    %252 = vmatprep.subr.bf16.mxu0 0
    %253 = vmatpush1.bf16.msra.mxu0 %v185
    %254 = vmatprep.subr.bf16.mxu0 0
    %255 = vmatpush1.bf16.msra.mxu0 %v186
    %256 = vmatprep.subr.bf16.mxu0 0
    %257 = vmatpush1.bf16.msra.mxu0 %v187
    %258 = vmatprep.subr.bf16.mxu0 0
    %259 = vmatpush1.bf16.msra.mxu0 0
    %260 = vmatprep.subr.bf16.mxu0 0
    %261 = vmatpush1.bf16.msra.mxu0 0
    %262 = vmatprep.subr.bf16.mxu0 0
    %263 = vmatpush1.bf16.msra.mxu0 0
    %264 = vmatprep.subr.bf16.mxu0 0
    %265 = vmatpush1.bf16.msra.mxu0 0
    %266 = vmatprep.subr.bf16.mxu0 0
    %267 = vmatpush1.bf16.msra.mxu0 0
    %268 = vmatprep.subr.bf16.mxu0 0
    %269 = vmatpush1.bf16.msra.mxu0 0
    %270 = vmatprep.subr.bf16.mxu0 0
    %271 = vmatpush1.bf16.msra.mxu0 0
    %272 = vmatprep.subr.bf16.mxu0 0
    %273 = vmatpush1.bf16.msra.mxu0 0
    %274 = vmatprep.mubr.bf16.mxu0 0
    %275 = vmatmul.mubr.bf16.gmra.mrb[0].mxu0 %v241
    %v276 = vpop.f32.mrb[0].mxu0
    %v277 = vadd.f32 0.0, %v276
    %v278 = vpop.f32.mrb[0].mxu0
    %v279 = vpop.f32.mrb[0].mxu0
    %v280 = vpop.f32.mrb[0].mxu0
    %281 = vdwg.mxu0
    %v282 = vxor.u32 %v277, 2147483648
    %v283 = vmul.f32 %v282, 1.442695
    %v284 = vpow.pop %v283
    %v285 = vadd.f32 %v284, 1.0
    %v286 = vrcp.pop %v285
    %v287 = vmul.f32 1.0, %v286
    %v288 = vmul.f32 %v287, 2.0
    %v289 = vmul.f32 %v288, %v189
    %v290 = vpack.c.bf16 %v289, %v289
    %291 = vmatprep.subr.bf16.mxu0 0
    %292 = vmatpush1.bf16.msra.mxu0 %v172
    %293 = vmatprep.subr.bf16.mxu0 0
    %294 = vmatpush1.bf16.msra.mxu0 %v173
    %295 = vmatprep.subr.bf16.mxu0 0
    %296 = vmatpush1.bf16.msra.mxu0 %v174
    %297 = vmatprep.subr.bf16.mxu0 0
    %298 = vmatpush1.bf16.msra.mxu0 %v175
    %299 = vmatprep.subr.bf16.mxu0 0
    %300 = vmatpush1.bf16.msra.mxu0 %v176
    %301 = vmatprep.subr.bf16.mxu0 0
    %302 = vmatpush1.bf16.msra.mxu0 %v177
    %303 = vmatprep.subr.bf16.mxu0 0
    %304 = vmatpush1.bf16.msra.mxu0 %v178
    %305 = vmatprep.subr.bf16.mxu0 0
    %306 = vmatpush1.bf16.msra.mxu0 %v179
    %307 = vmatprep.subr.bf16.mxu0 0
    %308 = vmatpush1.bf16.msra.mxu0 0
    %309 = vmatprep.subr.bf16.mxu0 0
    %310 = vmatpush1.bf16.msra.mxu0 0
    %311 = vmatprep.subr.bf16.mxu0 0
    %312 = vmatpush1.bf16.msra.mxu0 0
    %313 = vmatprep.subr.bf16.mxu0 0
    %314 = vmatpush1.bf16.msra.mxu0 0
    %315 = vmatprep.subr.bf16.mxu0 0
    %316 = vmatpush1.bf16.msra.mxu0 0
    %317 = vmatprep.subr.bf16.mxu0 0
    %318 = vmatpush1.bf16.msra.mxu0 0
    %319 = vmatprep.subr.bf16.mxu0 0
    %320 = vmatpush1.bf16.msra.mxu0 0
    %321 = vmatprep.subr.bf16.mxu0 0
    %322 = vmatpush1.bf16.msra.mxu0 0
    %323 = vmatprep.mubr.bf16.mxu0 0
    %324 = vmatmul.mubr.bf16.gmra.mrb[0].mxu0 %v290
    %v325 = vpop.f32.mrb[0].mxu0
    %v326 = vadd.f32 0.0, %v325
    %v327 = vpop.f32.mrb[0].mxu0
    %v328 = vpop.f32.mrb[0].mxu0
    %v329 = vpop.f32.mrb[0].mxu0
    %330 = vdwg.mxu0
    %v331 = vxor.u32 %v326, 2147483648
    %v332 = vmul.f32 %v331, 1.442695
    %v333 = vpow.pop %v332
    %v334 = vadd.f32 %v333, 1.0
    %v335 = vrcp.pop %v334
    %v336 = vmul.f32 1.0, %v335
    %v337 = vmul.f32 %v336, 2.0
    %v338 = vmul.f32 %v337, %v240
    %v339 = vpack.c.bf16 %v338, %v338
    %340 = vmatprep.subr.bf16.mxu0 0
    %341 = vmatpush1.bf16.msra.mxu0 %v180
    %342 = vmatprep.subr.bf16.mxu0 0
    %343 = vmatpush1.bf16.msra.mxu0 %v181
    %344 = vmatprep.subr.bf16.mxu0 0
    %345 = vmatpush1.bf16.msra.mxu0 %v182
    %346 = vmatprep.subr.bf16.mxu0 0
    %347 = vmatpush1.bf16.msra.mxu0 %v183
    %348 = vmatprep.subr.bf16.mxu0 0
    %349 = vmatpush1.bf16.msra.mxu0 %v184
    %350 = vmatprep.subr.bf16.mxu0 0
    %351 = vmatpush1.bf16.msra.mxu0 %v185
    %352 = vmatprep.subr.bf16.mxu0 0
    %353 = vmatpush1.bf16.msra.mxu0 %v186
    %354 = vmatprep.subr.bf16.mxu0 0
    %355 = vmatpush1.bf16.msra.mxu0 %v187
    %356 = vmatprep.subr.bf16.mxu0 0
    %357 = vmatpush1.bf16.msra.mxu0 0
    %358 = vmatprep.subr.bf16.mxu0 0
    %359 = vmatpush1.bf16.msra.mxu0 0
    %360 = vmatprep.subr.bf16.mxu0 0
    %361 = vmatpush1.bf16.msra.mxu0 0
    %362 = vmatprep.subr.bf16.mxu0 0
    %363 = vmatpush1.bf16.msra.mxu0 0
    %364 = vmatprep.subr.bf16.mxu0 0
    %365 = vmatpush1.bf16.msra.mxu0 0
    %366 = vmatprep.subr.bf16.mxu0 0
    %367 = vmatpush1.bf16.msra.mxu0 0
    %368 = vmatprep.subr.bf16.mxu0 0
    %369 = vmatpush1.bf16.msra.mxu0 0
    %370 = vmatprep.subr.bf16.mxu0 0
    %371 = vmatpush1.bf16.msra.mxu0 0
    %372 = vmatprep.mubr.bf16.mxu0 0
    %373 = vmatmul.mubr.bf16.gmra.mrb[0].mxu0 %v339
    %v374 = vpop.f32.mrb[0].mxu0
    %v375 = vadd.f32 0.0, %v374
    %v376 = vpop.f32.mrb[0].mxu0
    %v377 = vpop.f32.mrb[0].mxu0
    %v378 = vpop.f32.mrb[0].mxu0
    %379 = vdwg.mxu0
    %v380 = vxor.u32 %v375, 2147483648
    %v381 = vmul.f32 %v380, 1.442695
    %v382 = vpow.pop %v381
    %v383 = vadd.f32 %v382, 1.0
    %v384 = vrcp.pop %v383
    %v385 = vmul.f32 1.0, %v384
    %v386 = vmul.f32 %v385, 2.0
    %v387 = vmul.f32 %v386, %v289
    %v388 = vpack.c.bf16 %v387, %v387
    %v390 = vlaneseq
    %v391 = vshrl.u32 %v390, 7
    %v392 = vsub.s32 0, %v391
    %v393 = vrot.slane %v188, %v392
    %v394 = vlaneseq
    %v395 = vshrl.u32 %v394, 7
    %v396 = vsub.s32 1, %v395
    %v397 = vrot.slane %v188, %v396
    %v398 = vlaneseq
    %v399 = vshrl.u32 %v398, 7
    %v400 = vsub.s32 2, %v399
    %v401 = vrot.slane %v188, %v400
    %v402 = vlaneseq
    %v403 = vshrl.u32 %v402, 7
    %v404 = vsub.s32 3, %v403
    %v405 = vrot.slane %v188, %v404
    %410 = vmatprep.subr.bf16.mxu0 %v109
    %411 = vmatpush1.bf16.msra.mxu0 %v108
    %412 = vmatprep.subr.bf16.mxu0 %v113
    %413 = vmatpush1.bf16.msra.mxu0 %v112
    %414 = vmatprep.subr.bf16.mxu0 %v117
    %415 = vmatpush1.bf16.msra.mxu0 %v116
    %416 = vmatprep.subr.bf16.mxu0 %v121
    %417 = vmatpush1.bf16.msra.mxu0 %v120
    %418 = vmatprep.subr.bf16.mxu0 %v125
    %419 = vmatpush1.bf16.msra.mxu0 %v124
    %420 = vmatprep.subr.bf16.mxu0 %v129
    %421 = vmatpush1.bf16.msra.mxu0 %v128
    %422 = vmatprep.subr.bf16.mxu0 %v133
    %423 = vmatpush1.bf16.msra.mxu0 %v132
    %424 = vmatprep.subr.bf16.mxu0 %v137
    %425 = vmatpush1.bf16.msra.mxu0 %v136
    %426 = vmatprep.subr.bf16.mxu0 %v141
    %427 = vmatpush1.bf16.msra.mxu0 %v140
    %428 = vmatprep.subr.bf16.mxu0 %v145
    %429 = vmatpush1.bf16.msra.mxu0 %v144
    %430 = vmatprep.subr.bf16.mxu0 %v149
    %431 = vmatpush1.bf16.msra.mxu0 %v148
    %432 = vmatprep.subr.bf16.mxu0 %v153
    %433 = vmatpush1.bf16.msra.mxu0 %v152
    %434 = vmatprep.subr.bf16.mxu0 %v157
    %435 = vmatpush1.bf16.msra.mxu0 %v156
    %436 = vmatprep.subr.bf16.mxu0 %v161
    %437 = vmatpush1.bf16.msra.mxu0 %v160
    %438 = vmatprep.subr.bf16.mxu0 %v165
    %439 = vmatpush1.bf16.msra.mxu0 %v164
    %440 = vmatprep.subr.bf16.mxu0 %v169
    %441 = vmatpush1.bf16.msra.mxu0 %v168
    %442 = vmatprep.mubr.bf16.mxu0 %v388
    %443 = vmatmul.mubr.bf16.gmra.mrb[0].mxu0 %v339
    %v444 = vpop.f32.mrb[0].mxu0
    %v445 = vadd.f32 %v393, %v444
    %v446 = vpop.f32.mrb[0].mxu0
    %v447 = vadd.f32 %v397, %v446
    %v448 = vpop.f32.mrb[0].mxu0
    %v449 = vpop.f32.mrb[0].mxu0
    %450 = vdwg.mxu0
    %451 = vmatprep.subr.bf16.mxu0 %v111
    %452 = vmatpush1.bf16.msra.mxu0 %v110
    %453 = vmatprep.subr.bf16.mxu0 %v115
    %454 = vmatpush1.bf16.msra.mxu0 %v114
    %455 = vmatprep.subr.bf16.mxu0 %v119
    %456 = vmatpush1.bf16.msra.mxu0 %v118
    %457 = vmatprep.subr.bf16.mxu0 %v123
    %458 = vmatpush1.bf16.msra.mxu0 %v122
    %459 = vmatprep.subr.bf16.mxu0 %v127
    %460 = vmatpush1.bf16.msra.mxu0 %v126
    %461 = vmatprep.subr.bf16.mxu0 %v131
    %462 = vmatpush1.bf16.msra.mxu0 %v130
    %463 = vmatprep.subr.bf16.mxu0 %v135
    %464 = vmatpush1.bf16.msra.mxu0 %v134
    %465 = vmatprep.subr.bf16.mxu0 %v139
    %466 = vmatpush1.bf16.msra.mxu0 %v138
    %467 = vmatprep.subr.bf16.mxu0 %v143
    %468 = vmatpush1.bf16.msra.mxu0 %v142
    %469 = vmatprep.subr.bf16.mxu0 %v147
    %470 = vmatpush1.bf16.msra.mxu0 %v146
    %471 = vmatprep.subr.bf16.mxu0 %v151
    %472 = vmatpush1.bf16.msra.mxu0 %v150
    %473 = vmatprep.subr.bf16.mxu0 %v155
    %474 = vmatpush1.bf16.msra.mxu0 %v154
    %475 = vmatprep.subr.bf16.mxu0 %v159
    %476 = vmatpush1.bf16.msra.mxu0 %v158
    %477 = vmatprep.subr.bf16.mxu0 %v163
    %478 = vmatpush1.bf16.msra.mxu0 %v162
    %479 = vmatprep.subr.bf16.mxu0 %v167
    %480 = vmatpush1.bf16.msra.mxu0 %v166
    %481 = vmatprep.subr.bf16.mxu0 %v171
    %482 = vmatpush1.bf16.msra.mxu0 %v170
    %483 = vmatprep.mubr.bf16.mxu0 %v388
    %484 = vmatmul.mubr.bf16.gmra.mrb[0].mxu0 %v339
    %v485 = vpop.f32.mrb[0].mxu0
    %v486 = vadd.f32 %v401, %v485
    %v487 = vpop.f32.mrb[0].mxu0
    %v488 = vadd.f32 %v405, %v487
    %v489 = vpop.f32.mrb[0].mxu0
    %v490 = vpop.f32.mrb[0].mxu0
    %491 = vdwg.mxu0
    %v492 = vxor.u32 %v445, 2147483648
    %v493 = vmul.f32 %v492, 1.442695
    %v494 = vpow.pop %v493
    %v495 = vadd.f32 %v494, 1.0
    %v496 = vrcp.pop %v495
    %v497 = vmul.f32 1.0, %v496
    %v498 = vxor.u32 %v447, 2147483648
    %v499 = vmul.f32 %v498, 1.442695
    %v500 = vpow.pop %v499
    %v501 = vadd.f32 %v500, 1.0
    %v502 = vrcp.pop %v501
    %v503 = vmul.f32 1.0, %v502
    %v504 = vtanh.pop %v486
    %v505 = vxor.u32 %v488, 2147483648
    %v506 = vmul.f32 %v505, 1.442695
    %v507 = vpow.pop %v506
    %v508 = vadd.f32 %v507, 1.0
    %v509 = vrcp.pop %v508
    %v510 = vmul.f32 1.0, %v509
    %v511 = vmul.f32 %v503, %v190
    %v512 = vmul.f32 %v497, %v504
    %v513 = vadd.f32 %v511, %v512
    %v514 = vtanh.pop %v513
    %v515 = vmul.f32 %v510, %v514
    %516 = vst [vmem:[#allocation11] sm:$0xff] %v515
    %s517 = scalar_lea.vmem [#allocation8], 8
    %v518 = vld [vmem:[%s517] sm:$0xff]
    %v519 = vpack.c.bf16 %v515, %v515
    %520 = vmatprep.subr.bf16.mxu0 0
    %521 = vmatpush1.bf16.msra.mxu0 %v172
    %522 = vmatprep.subr.bf16.mxu0 0
    %523 = vmatpush1.bf16.msra.mxu0 %v173
    %524 = vmatprep.subr.bf16.mxu0 0
    %525 = vmatpush1.bf16.msra.mxu0 %v174
    %526 = vmatprep.subr.bf16.mxu0 0
    %527 = vmatpush1.bf16.msra.mxu0 %v175
    %528 = vmatprep.subr.bf16.mxu0 0
    %529 = vmatpush1.bf16.msra.mxu0 %v176
    %530 = vmatprep.subr.bf16.mxu0 0
    %531 = vmatpush1.bf16.msra.mxu0 %v177
    %532 = vmatprep.subr.bf16.mxu0 0
    %533 = vmatpush1.bf16.msra.mxu0 %v178
    %534 = vmatprep.subr.bf16.mxu0 0
    %535 = vmatpush1.bf16.msra.mxu0 %v179
    %536 = vmatprep.subr.bf16.mxu0 0
    %537 = vmatpush1.bf16.msra.mxu0 0
    %538 = vmatprep.subr.bf16.mxu0 0
    %539 = vmatpush1.bf16.msra.mxu0 0
    %540 = vmatprep.subr.bf16.mxu0 0
    %541 = vmatpush1.bf16.msra.mxu0 0
    %542 = vmatprep.subr.bf16.mxu0 0
    %543 = vmatpush1.bf16.msra.mxu0 0
    %544 = vmatprep.subr.bf16.mxu0 0
    %545 = vmatpush1.bf16.msra.mxu0 0
    %546 = vmatprep.subr.bf16.mxu0 0
    %547 = vmatpush1.bf16.msra.mxu0 0
    %548 = vmatprep.subr.bf16.mxu0 0
    %549 = vmatpush1.bf16.msra.mxu0 0
    %550 = vmatprep.subr.bf16.mxu0 0
    %551 = vmatpush1.bf16.msra.mxu0 0
    %552 = vmatprep.mubr.bf16.mxu0 0
    %553 = vmatmul.mubr.bf16.gmra.mrb[0].mxu0 %v519
    %v554 = vpop.f32.mrb[0].mxu0
    %v555 = vadd.f32 0.0, %v554
    %v556 = vpop.f32.mrb[0].mxu0
    %v557 = vpop.f32.mrb[0].mxu0
    %v558 = vpop.f32.mrb[0].mxu0
    %559 = vdwg.mxu0
    %v560 = vxor.u32 %v555, 2147483648
    %v561 = vmul.f32 %v560, 1.442695
    %v562 = vpow.pop %v561
    %v563 = vadd.f32 %v562, 1.0
    %v564 = vrcp.pop %v563
    %v565 = vmul.f32 1.0, %v564
    %v566 = vmul.f32 %v565, 2.0
    %v567 = vmul.f32 %v566, %v518
    %v568 = vpack.c.bf16 %v567, %v567
    %569 = vmatprep.subr.bf16.mxu0 0
    %570 = vmatpush1.bf16.msra.mxu0 %v180
    %571 = vmatprep.subr.bf16.mxu0 0
    %572 = vmatpush1.bf16.msra.mxu0 %v181
    %573 = vmatprep.subr.bf16.mxu0 0
    %574 = vmatpush1.bf16.msra.mxu0 %v182
    %575 = vmatprep.subr.bf16.mxu0 0
    %576 = vmatpush1.bf16.msra.mxu0 %v183
    %577 = vmatprep.subr.bf16.mxu0 0
    %578 = vmatpush1.bf16.msra.mxu0 %v184
    %579 = vmatprep.subr.bf16.mxu0 0
    %580 = vmatpush1.bf16.msra.mxu0 %v185
    %581 = vmatprep.subr.bf16.mxu0 0
    %582 = vmatpush1.bf16.msra.mxu0 %v186
    %583 = vmatprep.subr.bf16.mxu0 0
    %584 = vmatpush1.bf16.msra.mxu0 %v187
    %585 = vmatprep.subr.bf16.mxu0 0
    %586 = vmatpush1.bf16.msra.mxu0 0
    %587 = vmatprep.subr.bf16.mxu0 0
    %588 = vmatpush1.bf16.msra.mxu0 0
    %589 = vmatprep.subr.bf16.mxu0 0
    %590 = vmatpush1.bf16.msra.mxu0 0
    %591 = vmatprep.subr.bf16.mxu0 0
    %592 = vmatpush1.bf16.msra.mxu0 0
    %593 = vmatprep.subr.bf16.mxu0 0
    %594 = vmatpush1.bf16.msra.mxu0 0
    %595 = vmatprep.subr.bf16.mxu0 0
    %596 = vmatpush1.bf16.msra.mxu0 0
    %597 = vmatprep.subr.bf16.mxu0 0
    %598 = vmatpush1.bf16.msra.mxu0 0
    %599 = vmatprep.subr.bf16.mxu0 0
    %600 = vmatpush1.bf16.msra.mxu0 0
    %601 = vmatprep.mubr.bf16.mxu0 0
    %602 = vmatmul.mubr.bf16.gmra.mrb[0].mxu0 %v568
    %v603 = vpop.f32.mrb[0].mxu0
    %v604 = vadd.f32 0.0, %v603
    %v605 = vpop.f32.mrb[0].mxu0
    %v606 = vpop.f32.mrb[0].mxu0
    %v607 = vpop.f32.mrb[0].mxu0
    %608 = vdwg.mxu0
    %v609 = vxor.u32 %v604, 2147483648
    %v610 = vmul.f32 %v609, 1.442695
    %v611 = vpow.pop %v610
    %v612 = vadd.f32 %v611, 1.0
    %v613 = vrcp.pop %v612
    %v614 = vmul.f32 1.0, %v613
    %v615 = vmul.f32 %v614, 2.0
    %v616 = vmul.f32 %v615, %v515
    %v617 = vpack.c.bf16 %v616, %v616
    %618 = vmatprep.subr.bf16.mxu0 0
    %619 = vmatpush1.bf16.msra.mxu0 %v172
    %620 = vmatprep.subr.bf16.mxu0 0
    %621 = vmatpush1.bf16.msra.mxu0 %v173
    %622 = vmatprep.subr.bf16.mxu0 0
    %623 = vmatpush1.bf16.msra.mxu0 %v174
    %624 = vmatprep.subr.bf16.mxu0 0
    %625 = vmatpush1.bf16.msra.mxu0 %v175
    %626 = vmatprep.subr.bf16.mxu0 0
    %627 = vmatpush1.bf16.msra.mxu0 %v176
    %628 = vmatprep.subr.bf16.mxu0 0
    %629 = vmatpush1.bf16.msra.mxu0 %v177
    %630 = vmatprep.subr.bf16.mxu0 0
    %631 = vmatpush1.bf16.msra.mxu0 %v178
    %632 = vmatprep.subr.bf16.mxu0 0
    %633 = vmatpush1.bf16.msra.mxu0 %v179
    %634 = vmatprep.subr.bf16.mxu0 0
    %635 = vmatpush1.bf16.msra.mxu0 0
    %636 = vmatprep.subr.bf16.mxu0 0
    %637 = vmatpush1.bf16.msra.mxu0 0
    %638 = vmatprep.subr.bf16.mxu0 0
    %639 = vmatpush1.bf16.msra.mxu0 0
    %640 = vmatprep.subr.bf16.mxu0 0
    %641 = vmatpush1.bf16.msra.mxu0 0
    %642 = vmatprep.subr.bf16.mxu0 0
    %643 = vmatpush1.bf16.msra.mxu0 0
    %644 = vmatprep.subr.bf16.mxu0 0
    %645 = vmatpush1.bf16.msra.mxu0 0
    %646 = vmatprep.subr.bf16.mxu0 0
    %647 = vmatpush1.bf16.msra.mxu0 0
    %648 = vmatprep.subr.bf16.mxu0 0
    %649 = vmatpush1.bf16.msra.mxu0 0
    %650 = vmatprep.mubr.bf16.mxu0 0
    %651 = vmatmul.mubr.bf16.gmra.mrb[0].mxu0 %v617
    %v652 = vpop.f32.mrb[0].mxu0
    %v653 = vadd.f32 0.0, %v652
    %v654 = vpop.f32.mrb[0].mxu0
    %v655 = vpop.f32.mrb[0].mxu0
    %v656 = vpop.f32.mrb[0].mxu0
    %657 = vdwg.mxu0
    %v658 = vxor.u32 %v653, 2147483648
    %v659 = vmul.f32 %v658, 1.442695
    %v660 = vpow.pop %v659
    %v661 = vadd.f32 %v660, 1.0
    %v662 = vrcp.pop %v661
    %v663 = vmul.f32 1.0, %v662
    %v664 = vmul.f32 %v663, 2.0
    %v665 = vmul.f32 %v664, %v567
    %v666 = vpack.c.bf16 %v665, %v665
    %667 = vmatprep.subr.bf16.mxu0 0
    %668 = vmatpush1.bf16.msra.mxu0 %v180
    %669 = vmatprep.subr.bf16.mxu0 0
    %670 = vmatpush1.bf16.msra.mxu0 %v181
    %671 = vmatprep.subr.bf16.mxu0 0
    %672 = vmatpush1.bf16.msra.mxu0 %v182
    %673 = vmatprep.subr.bf16.mxu0 0
    %674 = vmatpush1.bf16.msra.mxu0 %v183
    %675 = vmatprep.subr.bf16.mxu0 0
    %676 = vmatpush1.bf16.msra.mxu0 %v184
    %677 = vmatprep.subr.bf16.mxu0 0
    %678 = vmatpush1.bf16.msra.mxu0 %v185
    %679 = vmatprep.subr.bf16.mxu0 0
    %680 = vmatpush1.bf16.msra.mxu0 %v186
    %681 = vmatprep.subr.bf16.mxu0 0
    %682 = vmatpush1.bf16.msra.mxu0 %v187
    %683 = vmatprep.subr.bf16.mxu0 0
    %684 = vmatpush1.bf16.msra.mxu0 0
    %685 = vmatprep.subr.bf16.mxu0 0
    %686 = vmatpush1.bf16.msra.mxu0 0
    %687 = vmatprep.subr.bf16.mxu0 0
    %688 = vmatpush1.bf16.msra.mxu0 0
    %689 = vmatprep.subr.bf16.mxu0 0
    %690 = vmatpush1.bf16.msra.mxu0 0
    %691 = vmatprep.subr.bf16.mxu0 0
    %692 = vmatpush1.bf16.msra.mxu0 0
    %693 = vmatprep.subr.bf16.mxu0 0
    %694 = vmatpush1.bf16.msra.mxu0 0
    %695 = vmatprep.subr.bf16.mxu0 0
    %696 = vmatpush1.bf16.msra.mxu0 0
    %697 = vmatprep.subr.bf16.mxu0 0
    %698 = vmatpush1.bf16.msra.mxu0 0
    %699 = vmatprep.mubr.bf16.mxu0 0
    %700 = vmatmul.mubr.bf16.gmra.mrb[0].mxu0 %v666
    %v701 = vpop.f32.mrb[0].mxu0
    %v702 = vadd.f32 0.0, %v701
    %v703 = vpop.f32.mrb[0].mxu0
    %v704 = vpop.f32.mrb[0].mxu0
    %v705 = vpop.f32.mrb[0].mxu0
    %706 = vdwg.mxu0
    %v707 = vxor.u32 %v702, 2147483648
    %v708 = vmul.f32 %v707, 1.442695
    %v709 = vpow.pop %v708
    %v710 = vadd.f32 %v709, 1.0
    %v711 = vrcp.pop %v710
    %v712 = vmul.f32 1.0, %v711
    %v713 = vmul.f32 %v712, 2.0
    %v714 = vmul.f32 %v713, %v616
    %v715 = vpack.c.bf16 %v714, %v714
    %716 = vmatprep.subr.bf16.mxu0 %v109
    %717 = vmatpush1.bf16.msra.mxu0 %v108
    %718 = vmatprep.subr.bf16.mxu0 %v113
    %719 = vmatpush1.bf16.msra.mxu0 %v112
    %720 = vmatprep.subr.bf16.mxu0 %v117
    %721 = vmatpush1.bf16.msra.mxu0 %v116
    %722 = vmatprep.subr.bf16.mxu0 %v121
    %723 = vmatpush1.bf16.msra.mxu0 %v120
    %724 = vmatprep.subr.bf16.mxu0 %v125
    %725 = vmatpush1.bf16.msra.mxu0 %v124
    %726 = vmatprep.subr.bf16.mxu0 %v129
    %727 = vmatpush1.bf16.msra.mxu0 %v128
    %728 = vmatprep.subr.bf16.mxu0 %v133
    %729 = vmatpush1.bf16.msra.mxu0 %v132
    %730 = vmatprep.subr.bf16.mxu0 %v137
    %731 = vmatpush1.bf16.msra.mxu0 %v136
    %732 = vmatprep.subr.bf16.mxu0 %v141
    %733 = vmatpush1.bf16.msra.mxu0 %v140
    %734 = vmatprep.subr.bf16.mxu0 %v145
    %735 = vmatpush1.bf16.msra.mxu0 %v144
    %736 = vmatprep.subr.bf16.mxu0 %v149
    %737 = vmatpush1.bf16.msra.mxu0 %v148
    %738 = vmatprep.subr.bf16.mxu0 %v153
    %739 = vmatpush1.bf16.msra.mxu0 %v152
    %740 = vmatprep.subr.bf16.mxu0 %v157
    %741 = vmatpush1.bf16.msra.mxu0 %v156
    %742 = vmatprep.subr.bf16.mxu0 %v161
    %743 = vmatpush1.bf16.msra.mxu0 %v160
    %744 = vmatprep.subr.bf16.mxu0 %v165
    %745 = vmatpush1.bf16.msra.mxu0 %v164
    %746 = vmatprep.subr.bf16.mxu0 %v169
    %747 = vmatpush1.bf16.msra.mxu0 %v168
    %748 = vmatprep.mubr.bf16.mxu0 %v715
    %749 = vmatmul.mubr.bf16.gmra.mrb[0].mxu0 %v666
    %v750 = vpop.f32.mrb[0].mxu0
    %v751 = vadd.f32 %v393, %v750
    %v752 = vpop.f32.mrb[0].mxu0
    %v753 = vadd.f32 %v397, %v752
    %v754 = vpop.f32.mrb[0].mxu0
    %v755 = vpop.f32.mrb[0].mxu0
    %756 = vdwg.mxu0
    %757 = vmatprep.subr.bf16.mxu0 %v111
    %758 = vmatpush1.bf16.msra.mxu0 %v110
    %759 = vmatprep.subr.bf16.mxu0 %v115
    %760 = vmatpush1.bf16.msra.mxu0 %v114
    %761 = vmatprep.subr.bf16.mxu0 %v119
    %762 = vmatpush1.bf16.msra.mxu0 %v118
    %763 = vmatprep.subr.bf16.mxu0 %v123
    %764 = vmatpush1.bf16.msra.mxu0 %v122
    %765 = vmatprep.subr.bf16.mxu0 %v127
    %766 = vmatpush1.bf16.msra.mxu0 %v126
    %767 = vmatprep.subr.bf16.mxu0 %v131
    %768 = vmatpush1.bf16.msra.mxu0 %v130
    %769 = vmatprep.subr.bf16.mxu0 %v135
    %770 = vmatpush1.bf16.msra.mxu0 %v134
    %771 = vmatprep.subr.bf16.mxu0 %v139
    %772 = vmatpush1.bf16.msra.mxu0 %v138
    %773 = vmatprep.subr.bf16.mxu0 %v143
    %774 = vmatpush1.bf16.msra.mxu0 %v142
    %775 = vmatprep.subr.bf16.mxu0 %v147
    %776 = vmatpush1.bf16.msra.mxu0 %v146
    %777 = vmatprep.subr.bf16.mxu0 %v151
    %778 = vmatpush1.bf16.msra.mxu0 %v150
    %779 = vmatprep.subr.bf16.mxu0 %v155
    %780 = vmatpush1.bf16.msra.mxu0 %v154
    %781 = vmatprep.subr.bf16.mxu0 %v159
    %782 = vmatpush1.bf16.msra.mxu0 %v158
    %783 = vmatprep.subr.bf16.mxu0 %v163
    %784 = vmatpush1.bf16.msra.mxu0 %v162
    %785 = vmatprep.subr.bf16.mxu0 %v167
    %786 = vmatpush1.bf16.msra.mxu0 %v166
    %787 = vmatprep.subr.bf16.mxu0 %v171
    %788 = vmatpush1.bf16.msra.mxu0 %v170
    %789 = vmatprep.mubr.bf16.mxu0 %v715
    %790 = vmatmul.mubr.bf16.gmra.mrb[0].mxu0 %v666
    %v791 = vpop.f32.mrb[0].mxu0
    %v792 = vadd.f32 %v401, %v791
    %v793 = vpop.f32.mrb[0].mxu0
    %v794 = vadd.f32 %v405, %v793
    %v795 = vpop.f32.mrb[0].mxu0
    %v796 = vpop.f32.mrb[0].mxu0
    %797 = vdwg.mxu0
    %v798 = vxor.u32 %v751, 2147483648
    %v799 = vmul.f32 %v798, 1.442695
    %v800 = vpow.pop %v799
    %v801 = vadd.f32 %v800, 1.0
    %v802 = vrcp.pop %v801
    %v803 = vmul.f32 1.0, %v802
    %v804 = vxor.u32 %v753, 2147483648
    %v805 = vmul.f32 %v804, 1.442695
    %v806 = vpow.pop %v805
    %v807 = vadd.f32 %v806, 1.0
    %v808 = vrcp.pop %v807
    %v809 = vmul.f32 1.0, %v808
    %v810 = vtanh.pop %v792
    %v811 = vxor.u32 %v794, 2147483648
    %v812 = vmul.f32 %v811, 1.442695
    %v813 = vpow.pop %v812
    %v814 = vadd.f32 %v813, 1.0
    %v815 = vrcp.pop %v814
    %v816 = vmul.f32 1.0, %v815
    %v817 = vmul.f32 %v809, %v513
    %v818 = vmul.f32 %v803, %v810
    %v819 = vadd.f32 %v817, %v818
    %v820 = vtanh.pop %v819
    %v821 = vmul.f32 %v816, %v820
    %s822 = scalar_lea.vmem [#allocation11], 8
    %823 = vst [vmem:[%s822] sm:$0xff] %v821
    %s824 = scalar_lea.vmem [#allocation8], 16
    %v825 = vld [vmem:[%s824] sm:$0xff]
    %v826 = vpack.c.bf16 %v821, %v821
    %827 = vmatprep.subr.bf16.mxu0 0
    %828 = vmatpush1.bf16.msra.mxu0 %v172
    %829 = vmatprep.subr.bf16.mxu0 0
    %830 = vmatpush1.bf16.msra.mxu0 %v173
    %831 = vmatprep.subr.bf16.mxu0 0
    %832 = vmatpush1.bf16.msra.mxu0 %v174
    %833 = vmatprep.subr.bf16.mxu0 0
    %834 = vmatpush1.bf16.msra.mxu0 %v175
    %835 = vmatprep.subr.bf16.mxu0 0
    %836 = vmatpush1.bf16.msra.mxu0 %v176
    %837 = vmatprep.subr.bf16.mxu0 0
    %838 = vmatpush1.bf16.msra.mxu0 %v177
    %839 = vmatprep.subr.bf16.mxu0 0
    %840 = vmatpush1.bf16.msra.mxu0 %v178
    %841 = vmatprep.subr.bf16.mxu0 0
    %842 = vmatpush1.bf16.msra.mxu0 %v179
    %843 = vmatprep.subr.bf16.mxu0 0
    %844 = vmatpush1.bf16.msra.mxu0 0
    %845 = vmatprep.subr.bf16.mxu0 0
    %846 = vmatpush1.bf16.msra.mxu0 0
    %847 = vmatprep.subr.bf16.mxu0 0
    %848 = vmatpush1.bf16.msra.mxu0 0
    %849 = vmatprep.subr.bf16.mxu0 0
    %850 = vmatpush1.bf16.msra.mxu0 0
    %851 = vmatprep.subr.bf16.mxu0 0
    %852 = vmatpush1.bf16.msra.mxu0 0
    %853 = vmatprep.subr.bf16.mxu0 0
    %854 = vmatpush1.bf16.msra.mxu0 0
    %855 = vmatprep.subr.bf16.mxu0 0
    %856 = vmatpush1.bf16.msra.mxu0 0
    %857 = vmatprep.subr.bf16.mxu0 0
    %858 = vmatpush1.bf16.msra.mxu0 0
    %859 = vmatprep.mubr.bf16.mxu0 0
    %860 = vmatmul.mubr.bf16.gmra.mrb[0].mxu0 %v826
    %v861 = vpop.f32.mrb[0].mxu0
    %v862 = vadd.f32 0.0, %v861
    %v863 = vpop.f32.mrb[0].mxu0
    %v864 = vpop.f32.mrb[0].mxu0
    %v865 = vpop.f32.mrb[0].mxu0
    %866 = vdwg.mxu0
    %v867 = vxor.u32 %v862, 2147483648
    %v868 = vmul.f32 %v867, 1.442695
    %v869 = vpow.pop %v868
    %v870 = vadd.f32 %v869, 1.0
    %v871 = vrcp.pop %v870
    %v872 = vmul.f32 1.0, %v871
    %v873 = vmul.f32 %v872, 2.0
    %v874 = vmul.f32 %v873, %v825
    %v875 = vpack.c.bf16 %v874, %v874
    %876 = vmatprep.subr.bf16.mxu0 0
    %877 = vmatpush1.bf16.msra.mxu0 %v180
    %878 = vmatprep.subr.bf16.mxu0 0
    %879 = vmatpush1.bf16.msra.mxu0 %v181
    %880 = vmatprep.subr.bf16.mxu0 0
    %881 = vmatpush1.bf16.msra.mxu0 %v182
    %882 = vmatprep.subr.bf16.mxu0 0
    %883 = vmatpush1.bf16.msra.mxu0 %v183
    %884 = vmatprep.subr.bf16.mxu0 0
    %885 = vmatpush1.bf16.msra.mxu0 %v184
    %886 = vmatprep.subr.bf16.mxu0 0
    %887 = vmatpush1.bf16.msra.mxu0 %v185
    %888 = vmatprep.subr.bf16.mxu0 0
    %889 = vmatpush1.bf16.msra.mxu0 %v186
    %890 = vmatprep.subr.bf16.mxu0 0
    %891 = vmatpush1.bf16.msra.mxu0 %v187
    %892 = vmatprep.subr.bf16.mxu0 0
    %893 = vmatpush1.bf16.msra.mxu0 0
    %894 = vmatprep.subr.bf16.mxu0 0
    %895 = vmatpush1.bf16.msra.mxu0 0
    %896 = vmatprep.subr.bf16.mxu0 0
    %897 = vmatpush1.bf16.msra.mxu0 0
    %898 = vmatprep.subr.bf16.mxu0 0
    %899 = vmatpush1.bf16.msra.mxu0 0
    %900 = vmatprep.subr.bf16.mxu0 0
    %901 = vmatpush1.bf16.msra.mxu0 0
    %902 = vmatprep.subr.bf16.mxu0 0
    %903 = vmatpush1.bf16.msra.mxu0 0
    %904 = vmatprep.subr.bf16.mxu0 0
    %905 = vmatpush1.bf16.msra.mxu0 0
    %906 = vmatprep.subr.bf16.mxu0 0
    %907 = vmatpush1.bf16.msra.mxu0 0
    %908 = vmatprep.mubr.bf16.mxu0 0
    %909 = vmatmul.mubr.bf16.gmra.mrb[0].mxu0 %v875
    %v910 = vpop.f32.mrb[0].mxu0
    %v911 = vadd.f32 0.0, %v910
    %v912 = vpop.f32.mrb[0].mxu0
    %v913 = vpop.f32.mrb[0].mxu0
    %v914 = vpop.f32.mrb[0].mxu0
    %915 = vdwg.mxu0
    %v916 = vxor.u32 %v911, 2147483648
    %v917 = vmul.f32 %v916, 1.442695
    %v918 = vpow.pop %v917
    %v919 = vadd.f32 %v918, 1.0
    %v920 = vrcp.pop %v919
    %v921 = vmul.f32 1.0, %v920
    %v922 = vmul.f32 %v921, 2.0
    %v923 = vmul.f32 %v922, %v821
    %v924 = vpack.c.bf16 %v923, %v923
    %925 = vmatprep.subr.bf16.mxu0 0
    %926 = vmatpush1.bf16.msra.mxu0 %v172
    %927 = vmatprep.subr.bf16.mxu0 0
    %928 = vmatpush1.bf16.msra.mxu0 %v173
    %929 = vmatprep.subr.bf16.mxu0 0
    %930 = vmatpush1.bf16.msra.mxu0 %v174
    %931 = vmatprep.subr.bf16.mxu0 0
    %932 = vmatpush1.bf16.msra.mxu0 %v175
    %933 = vmatprep.subr.bf16.mxu0 0
    %934 = vmatpush1.bf16.msra.mxu0 %v176
    %935 = vmatprep.subr.bf16.mxu0 0
    %936 = vmatpush1.bf16.msra.mxu0 %v177
    %937 = vmatprep.subr.bf16.mxu0 0
    %938 = vmatpush1.bf16.msra.mxu0 %v178
    %939 = vmatprep.subr.bf16.mxu0 0
    %940 = vmatpush1.bf16.msra.mxu0 %v179
    %941 = vmatprep.subr.bf16.mxu0 0
    %942 = vmatpush1.bf16.msra.mxu0 0
    %943 = vmatprep.subr.bf16.mxu0 0
    %944 = vmatpush1.bf16.msra.mxu0 0
    %945 = vmatprep.subr.bf16.mxu0 0
    %946 = vmatpush1.bf16.msra.mxu0 0
    %947 = vmatprep.subr.bf16.mxu0 0
    %948 = vmatpush1.bf16.msra.mxu0 0
    %949 = vmatprep.subr.bf16.mxu0 0
    %950 = vmatpush1.bf16.msra.mxu0 0
    %951 = vmatprep.subr.bf16.mxu0 0
    %952 = vmatpush1.bf16.msra.mxu0 0
    %953 = vmatprep.subr.bf16.mxu0 0
    %954 = vmatpush1.bf16.msra.mxu0 0
    %955 = vmatprep.subr.bf16.mxu0 0
    %956 = vmatpush1.bf16.msra.mxu0 0
    %957 = vmatprep.mubr.bf16.mxu0 0
    %958 = vmatmul.mubr.bf16.gmra.mrb[0].mxu0 %v924
    %v959 = vpop.f32.mrb[0].mxu0
    %v960 = vadd.f32 0.0, %v959
    %v961 = vpop.f32.mrb[0].mxu0
    %v962 = vpop.f32.mrb[0].mxu0
    %v963 = vpop.f32.mrb[0].mxu0
    %964 = vdwg.mxu0
    %v965 = vxor.u32 %v960, 2147483648
    %v966 = vmul.f32 %v965, 1.442695
    %v967 = vpow.pop %v966
    %v968 = vadd.f32 %v967, 1.0
    %v969 = vrcp.pop %v968
    %v970 = vmul.f32 1.0, %v969
    %v971 = vmul.f32 %v970, 2.0
    %v972 = vmul.f32 %v971, %v874
    %v973 = vpack.c.bf16 %v972, %v972
    %974 = vmatprep.subr.bf16.mxu0 0
    %975 = vmatpush1.bf16.msra.mxu0 %v180
    %976 = vmatprep.subr.bf16.mxu0 0
    %977 = vmatpush1.bf16.msra.mxu0 %v181
    %978 = vmatprep.subr.bf16.mxu0 0
    %979 = vmatpush1.bf16.msra.mxu0 %v182
    %980 = vmatprep.subr.bf16.mxu0 0
    %981 = vmatpush1.bf16.msra.mxu0 %v183
    %982 = vmatprep.subr.bf16.mxu0 0
    %983 = vmatpush1.bf16.msra.mxu0 %v184
    %984 = vmatprep.subr.bf16.mxu0 0
    %985 = vmatpush1.bf16.msra.mxu0 %v185
    %986 = vmatprep.subr.bf16.mxu0 0
    %987 = vmatpush1.bf16.msra.mxu0 %v186
    %988 = vmatprep.subr.bf16.mxu0 0
    %989 = vmatpush1.bf16.msra.mxu0 %v187
    %990 = vmatprep.subr.bf16.mxu0 0
    %991 = vmatpush1.bf16.msra.mxu0 0
    %992 = vmatprep.subr.bf16.mxu0 0
    %993 = vmatpush1.bf16.msra.mxu0 0
    %994 = vmatprep.subr.bf16.mxu0 0
    %995 = vmatpush1.bf16.msra.mxu0 0
    %996 = vmatprep.subr.bf16.mxu0 0
    %997 = vmatpush1.bf16.msra.mxu0 0
    %998 = vmatprep.subr.bf16.mxu0 0
    %999 = vmatpush1.bf16.msra.mxu0 0
    %1000 = vmatprep.subr.bf16.mxu0 0
    %1001 = vmatpush1.bf16.msra.mxu0 0
    %1002 = vmatprep.subr.bf16.mxu0 0
    %1003 = vmatpush1.bf16.msra.mxu0 0
    %1004 = vmatprep.subr.bf16.mxu0 0
    %1005 = vmatpush1.bf16.msra.mxu0 0
    %1006 = vmatprep.mubr.bf16.mxu0 0
    %1007 = vmatmul.mubr.bf16.gmra.mrb[0].mxu0 %v973
    %v1008 = vpop.f32.mrb[0].mxu0
    %v1009 = vadd.f32 0.0, %v1008
    %v1010 = vpop.f32.mrb[0].mxu0
    %v1011 = vpop.f32.mrb[0].mxu0
    %v1012 = vpop.f32.mrb[0].mxu0
    %1013 = vdwg.mxu0
    %v1014 = vxor.u32 %v1009, 2147483648
    %v1015 = vmul.f32 %v1014, 1.442695
    %v1016 = vpow.pop %v1015
    %v1017 = vadd.f32 %v1016, 1.0
    %v1018 = vrcp.pop %v1017
    %v1019 = vmul.f32 1.0, %v1018
    %v1020 = vmul.f32 %v1019, 2.0
    %v1021 = vmul.f32 %v1020, %v923
    %v1022 = vpack.c.bf16 %v1021, %v1021
    %1023 = vmatprep.subr.bf16.mxu0 %v109
    %1024 = vmatpush1.bf16.msra.mxu0 %v108
    %1025 = vmatprep.subr.bf16.mxu0 %v113
    %1026 = vmatpush1.bf16.msra.mxu0 %v112
    %1027 = vmatprep.subr.bf16.mxu0 %v117
    %1028 = vmatpush1.bf16.msra.mxu0 %v116
    %1029 = vmatprep.subr.bf16.mxu0 %v121
    %1030 = vmatpush1.bf16.msra.mxu0 %v120
    %1031 = vmatprep.subr.bf16.mxu0 %v125
    %1032 = vmatpush1.bf16.msra.mxu0 %v124
    %1033 = vmatprep.subr.bf16.mxu0 %v129
    %1034 = vmatpush1.bf16.msra.mxu0 %v128
    %1035 = vmatprep.subr.bf16.mxu0 %v133
    %1036 = vmatpush1.bf16.msra.mxu0 %v132
    %1037 = vmatprep.subr.bf16.mxu0 %v137
    %1038 = vmatpush1.bf16.msra.mxu0 %v136
    %1039 = vmatprep.subr.bf16.mxu0 %v141
    %1040 = vmatpush1.bf16.msra.mxu0 %v140
    %1041 = vmatprep.subr.bf16.mxu0 %v145
    %1042 = vmatpush1.bf16.msra.mxu0 %v144
    %1043 = vmatprep.subr.bf16.mxu0 %v149
    %1044 = vmatpush1.bf16.msra.mxu0 %v148
    %1045 = vmatprep.subr.bf16.mxu0 %v153
    %1046 = vmatpush1.bf16.msra.mxu0 %v152
    %1047 = vmatprep.subr.bf16.mxu0 %v157
    %1048 = vmatpush1.bf16.msra.mxu0 %v156
    %1049 = vmatprep.subr.bf16.mxu0 %v161
    %1050 = vmatpush1.bf16.msra.mxu0 %v160
    %1051 = vmatprep.subr.bf16.mxu0 %v165
    %1052 = vmatpush1.bf16.msra.mxu0 %v164
    %1053 = vmatprep.subr.bf16.mxu0 %v169
    %1054 = vmatpush1.bf16.msra.mxu0 %v168
    %1055 = vmatprep.mubr.bf16.mxu0 %v1022
    %1056 = vmatmul.mubr.bf16.gmra.mrb[0].mxu0 %v973
    %v1057 = vpop.f32.mrb[0].mxu0
    %v1058 = vadd.f32 %v393, %v1057
    %v1059 = vpop.f32.mrb[0].mxu0
    %v1060 = vadd.f32 %v397, %v1059
    %v1061 = vpop.f32.mrb[0].mxu0
    %v1062 = vpop.f32.mrb[0].mxu0
    %1063 = vdwg.mxu0
    %1064 = vmatprep.subr.bf16.mxu0 %v111
    %1065 = vmatpush1.bf16.msra.mxu0 %v110
    %1066 = vmatprep.subr.bf16.mxu0 %v115
    %1067 = vmatpush1.bf16.msra.mxu0 %v114
    %1068 = vmatprep.subr.bf16.mxu0 %v119
    %1069 = vmatpush1.bf16.msra.mxu0 %v118
    %1070 = vmatprep.subr.bf16.mxu0 %v123
    %1071 = vmatpush1.bf16.msra.mxu0 %v122
    %1072 = vmatprep.subr.bf16.mxu0 %v127
    %1073 = vmatpush1.bf16.msra.mxu0 %v126
    %1074 = vmatprep.subr.bf16.mxu0 %v131
    %1075 = vmatpush1.bf16.msra.mxu0 %v130
    %1076 = vmatprep.subr.bf16.mxu0 %v135
    %1077 = vmatpush1.bf16.msra.mxu0 %v134
    %1078 = vmatprep.subr.bf16.mxu0 %v139
    %1079 = vmatpush1.bf16.msra.mxu0 %v138
    %1080 = vmatprep.subr.bf16.mxu0 %v143
    %1081 = vmatpush1.bf16.msra.mxu0 %v142
    %1082 = vmatprep.subr.bf16.mxu0 %v147
    %1083 = vmatpush1.bf16.msra.mxu0 %v146
    %1084 = vmatprep.subr.bf16.mxu0 %v151
    %1085 = vmatpush1.bf16.msra.mxu0 %v150
    %1086 = vmatprep.subr.bf16.mxu0 %v155
    %1087 = vmatpush1.bf16.msra.mxu0 %v154
    %1088 = vmatprep.subr.bf16.mxu0 %v159
    %1089 = vmatpush1.bf16.msra.mxu0 %v158
    %1090 = vmatprep.subr.bf16.mxu0 %v163
    %1091 = vmatpush1.bf16.msra.mxu0 %v162
    %1092 = vmatprep.subr.bf16.mxu0 %v167
    %1093 = vmatpush1.bf16.msra.mxu0 %v166
    %1094 = vmatprep.subr.bf16.mxu0 %v171
    %1095 = vmatpush1.bf16.msra.mxu0 %v170
    %1096 = vmatprep.mubr.bf16.mxu0 %v1022
    %1097 = vmatmul.mubr.bf16.gmra.mrb[0].mxu0 %v973
    %v1098 = vpop.f32.mrb[0].mxu0
    %v1099 = vadd.f32 %v401, %v1098
    %v1100 = vpop.f32.mrb[0].mxu0
    %v1101 = vadd.f32 %v405, %v1100
    %v1102 = vpop.f32.mrb[0].mxu0
    %v1103 = vpop.f32.mrb[0].mxu0
    %1104 = vdwg.mxu0
    %v1105 = vxor.u32 %v1058, 2147483648
    %v1106 = vmul.f32 %v1105, 1.442695
    %v1107 = vpow.pop %v1106
    %v1108 = vadd.f32 %v1107, 1.0
    %v1109 = vrcp.pop %v1108
    %v1110 = vmul.f32 1.0, %v1109
    %v1111 = vxor.u32 %v1060, 2147483648
    %v1112 = vmul.f32 %v1111, 1.442695
    %v1113 = vpow.pop %v1112
    %v1114 = vadd.f32 %v1113, 1.0
    %v1115 = vrcp.pop %v1114
    %v1116 = vmul.f32 1.0, %v1115
    %v1117 = vtanh.pop %v1099
    %v1118 = vxor.u32 %v1101, 2147483648
    %v1119 = vmul.f32 %v1118, 1.442695
    %v1120 = vpow.pop %v1119
    %v1121 = vadd.f32 %v1120, 1.0
    %v1122 = vrcp.pop %v1121
    %v1123 = vmul.f32 1.0, %v1122
    %v1124 = vmul.f32 %v1116, %v819
    %v1125 = vmul.f32 %v1110, %v1117
    %v1126 = vadd.f32 %v1124, %v1125
    %v1127 = vtanh.pop %v1126
    %v1128 = vmul.f32 %v1123, %v1127
    %s1129 = scalar_lea.vmem [#allocation11], 16
    %1130 = vst [vmem:[%s1129] sm:$0xff] %v1128
    %s1131 = scalar_lea.vmem [#allocation8], 24
    %v1132 = vld [vmem:[%s1131] sm:$0xff]
    %v1133 = vpack.c.bf16 %v1128, %v1128
    %1134 = vmatprep.subr.bf16.mxu0 0
    %1135 = vmatpush1.bf16.msra.mxu0 %v172
    %1136 = vmatprep.subr.bf16.mxu0 0
    %1137 = vmatpush1.bf16.msra.mxu0 %v173
    %1138 = vmatprep.subr.bf16.mxu0 0
    %1139 = vmatpush1.bf16.msra.mxu0 %v174
    %1140 = vmatprep.subr.bf16.mxu0 0
    %1141 = vmatpush1.bf16.msra.mxu0 %v175
    %1142 = vmatprep.subr.bf16.mxu0 0
    %1143 = vmatpush1.bf16.msra.mxu0 %v176
    %1144 = vmatprep.subr.bf16.mxu0 0
    %1145 = vmatpush1.bf16.msra.mxu0 %v177
    %1146 = vmatprep.subr.bf16.mxu0 0
    %1147 = vmatpush1.bf16.msra.mxu0 %v178
    %1148 = vmatprep.subr.bf16.mxu0 0
    %1149 = vmatpush1.bf16.msra.mxu0 %v179
    %1150 = vmatprep.subr.bf16.mxu0 0
    %1151 = vmatpush1.bf16.msra.mxu0 0
    %1152 = vmatprep.subr.bf16.mxu0 0
    %1153 = vmatpush1.bf16.msra.mxu0 0
    %1154 = vmatprep.subr.bf16.mxu0 0
    %1155 = vmatpush1.bf16.msra.mxu0 0
    %1156 = vmatprep.subr.bf16.mxu0 0
    %1157 = vmatpush1.bf16.msra.mxu0 0
    %1158 = vmatprep.subr.bf16.mxu0 0
    %1159 = vmatpush1.bf16.msra.mxu0 0
    %1160 = vmatprep.subr.bf16.mxu0 0
    %1161 = vmatpush1.bf16.msra.mxu0 0
    %1162 = vmatprep.subr.bf16.mxu0 0
    %1163 = vmatpush1.bf16.msra.mxu0 0
    %1164 = vmatprep.subr.bf16.mxu0 0
    %1165 = vmatpush1.bf16.msra.mxu0 0
    %1166 = vmatprep.mubr.bf16.mxu0 0
    %1167 = vmatmul.mubr.bf16.gmra.mrb[0].mxu0 %v1133
    %v1168 = vpop.f32.mrb[0].mxu0
    %v1169 = vadd.f32 0.0, %v1168
    %v1170 = vpop.f32.mrb[0].mxu0
    %v1171 = vpop.f32.mrb[0].mxu0
    %v1172 = vpop.f32.mrb[0].mxu0
    %1173 = vdwg.mxu0
    %v1174 = vxor.u32 %v1169, 2147483648
    %v1175 = vmul.f32 %v1174, 1.442695
    %v1176 = vpow.pop %v1175
    %v1177 = vadd.f32 %v1176, 1.0
    %v1178 = vrcp.pop %v1177
    %v1179 = vmul.f32 1.0, %v1178
    %v1180 = vmul.f32 %v1179, 2.0
    %v1181 = vmul.f32 %v1180, %v1132
    %v1182 = vpack.c.bf16 %v1181, %v1181
    %1183 = vmatprep.subr.bf16.mxu0 0
    %1184 = vmatpush1.bf16.msra.mxu0 %v180
    %1185 = vmatprep.subr.bf16.mxu0 0
    %1186 = vmatpush1.bf16.msra.mxu0 %v181
    %1187 = vmatprep.subr.bf16.mxu0 0
    %1188 = vmatpush1.bf16.msra.mxu0 %v182
    %1189 = vmatprep.subr.bf16.mxu0 0
    %1190 = vmatpush1.bf16.msra.mxu0 %v183
    %1191 = vmatprep.subr.bf16.mxu0 0
    %1192 = vmatpush1.bf16.msra.mxu0 %v184
    %1193 = vmatprep.subr.bf16.mxu0 0
    %1194 = vmatpush1.bf16.msra.mxu0 %v185
    %1195 = vmatprep.subr.bf16.mxu0 0
    %1196 = vmatpush1.bf16.msra.mxu0 %v186
    %1197 = vmatprep.subr.bf16.mxu0 0
    %1198 = vmatpush1.bf16.msra.mxu0 %v187
    %1199 = vmatprep.subr.bf16.mxu0 0
    %1200 = vmatpush1.bf16.msra.mxu0 0
    %1201 = vmatprep.subr.bf16.mxu0 0
    %1202 = vmatpush1.bf16.msra.mxu0 0
    %1203 = vmatprep.subr.bf16.mxu0 0
    %1204 = vmatpush1.bf16.msra.mxu0 0
    %1205 = vmatprep.subr.bf16.mxu0 0
    %1206 = vmatpush1.bf16.msra.mxu0 0
    %1207 = vmatprep.subr.bf16.mxu0 0
    %1208 = vmatpush1.bf16.msra.mxu0 0
    %1209 = vmatprep.subr.bf16.mxu0 0
    %1210 = vmatpush1.bf16.msra.mxu0 0
    %1211 = vmatprep.subr.bf16.mxu0 0
    %1212 = vmatpush1.bf16.msra.mxu0 0
    %1213 = vmatprep.subr.bf16.mxu0 0
    %1214 = vmatpush1.bf16.msra.mxu0 0
    %1215 = vmatprep.mubr.bf16.mxu0 0
    %1216 = vmatmul.mubr.bf16.gmra.mrb[0].mxu0 %v1182
    %v1217 = vpop.f32.mrb[0].mxu0
    %v1218 = vadd.f32 0.0, %v1217
    %v1219 = vpop.f32.mrb[0].mxu0
    %v1220 = vpop.f32.mrb[0].mxu0
    %v1221 = vpop.f32.mrb[0].mxu0
    %1222 = vdwg.mxu0
    %v1223 = vxor.u32 %v1218, 2147483648
    %v1224 = vmul.f32 %v1223, 1.442695
    %v1225 = vpow.pop %v1224
    %v1226 = vadd.f32 %v1225, 1.0
    %v1227 = vrcp.pop %v1226
    %v1228 = vmul.f32 1.0, %v1227
    %v1229 = vmul.f32 %v1228, 2.0
    %v1230 = vmul.f32 %v1229, %v1128
    %v1231 = vpack.c.bf16 %v1230, %v1230
    %1232 = vmatprep.subr.bf16.mxu0 0
    %1233 = vmatpush1.bf16.msra.mxu0 %v172
    %1234 = vmatprep.subr.bf16.mxu0 0
    %1235 = vmatpush1.bf16.msra.mxu0 %v173
    %1236 = vmatprep.subr.bf16.mxu0 0
    %1237 = vmatpush1.bf16.msra.mxu0 %v174
    %1238 = vmatprep.subr.bf16.mxu0 0
    %1239 = vmatpush1.bf16.msra.mxu0 %v175
    %1240 = vmatprep.subr.bf16.mxu0 0
    %1241 = vmatpush1.bf16.msra.mxu0 %v176
    %1242 = vmatprep.subr.bf16.mxu0 0
    %1243 = vmatpush1.bf16.msra.mxu0 %v177
    %1244 = vmatprep.subr.bf16.mxu0 0
    %1245 = vmatpush1.bf16.msra.mxu0 %v178
    %1246 = vmatprep.subr.bf16.mxu0 0
    %1247 = vmatpush1.bf16.msra.mxu0 %v179
    %1248 = vmatprep.subr.bf16.mxu0 0
    %1249 = vmatpush1.bf16.msra.mxu0 0
    %1250 = vmatprep.subr.bf16.mxu0 0
    %1251 = vmatpush1.bf16.msra.mxu0 0
    %1252 = vmatprep.subr.bf16.mxu0 0
    %1253 = vmatpush1.bf16.msra.mxu0 0
    %1254 = vmatprep.subr.bf16.mxu0 0
    %1255 = vmatpush1.bf16.msra.mxu0 0
    %1256 = vmatprep.subr.bf16.mxu0 0
    %1257 = vmatpush1.bf16.msra.mxu0 0
    %1258 = vmatprep.subr.bf16.mxu0 0
    %1259 = vmatpush1.bf16.msra.mxu0 0
    %1260 = vmatprep.subr.bf16.mxu0 0
    %1261 = vmatpush1.bf16.msra.mxu0 0
    %1262 = vmatprep.subr.bf16.mxu0 0
    %1263 = vmatpush1.bf16.msra.mxu0 0
    %1264 = vmatprep.mubr.bf16.mxu0 0
    %1265 = vmatmul.mubr.bf16.gmra.mrb[0].mxu0 %v1231
    %v1266 = vpop.f32.mrb[0].mxu0
    %v1267 = vadd.f32 0.0, %v1266
    %v1268 = vpop.f32.mrb[0].mxu0
    %v1269 = vpop.f32.mrb[0].mxu0
    %v1270 = vpop.f32.mrb[0].mxu0
    %1271 = vdwg.mxu0
    %v1272 = vxor.u32 %v1267, 2147483648
    %v1273 = vmul.f32 %v1272, 1.442695
    %v1274 = vpow.pop %v1273
    %v1275 = vadd.f32 %v1274, 1.0
    %v1276 = vrcp.pop %v1275
    %v1277 = vmul.f32 1.0, %v1276
    %v1278 = vmul.f32 %v1277, 2.0
    %v1279 = vmul.f32 %v1278, %v1181
    %v1280 = vpack.c.bf16 %v1279, %v1279
    %1281 = vmatprep.subr.bf16.mxu0 0
    %1282 = vmatpush1.bf16.msra.mxu0 %v180
    %1283 = vmatprep.subr.bf16.mxu0 0
    %1284 = vmatpush1.bf16.msra.mxu0 %v181
    %1285 = vmatprep.subr.bf16.mxu0 0
    %1286 = vmatpush1.bf16.msra.mxu0 %v182
    %1287 = vmatprep.subr.bf16.mxu0 0
    %1288 = vmatpush1.bf16.msra.mxu0 %v183
    %1289 = vmatprep.subr.bf16.mxu0 0
    %1290 = vmatpush1.bf16.msra.mxu0 %v184
    %1291 = vmatprep.subr.bf16.mxu0 0
    %1292 = vmatpush1.bf16.msra.mxu0 %v185
    %1293 = vmatprep.subr.bf16.mxu0 0
    %1294 = vmatpush1.bf16.msra.mxu0 %v186
    %1295 = vmatprep.subr.bf16.mxu0 0
    %1296 = vmatpush1.bf16.msra.mxu0 %v187
    %1297 = vmatprep.subr.bf16.mxu0 0
    %1298 = vmatpush1.bf16.msra.mxu0 0
    %1299 = vmatprep.subr.bf16.mxu0 0
    %1300 = vmatpush1.bf16.msra.mxu0 0
    %1301 = vmatprep.subr.bf16.mxu0 0
    %1302 = vmatpush1.bf16.msra.mxu0 0
    %1303 = vmatprep.subr.bf16.mxu0 0
    %1304 = vmatpush1.bf16.msra.mxu0 0
    %1305 = vmatprep.subr.bf16.mxu0 0
    %1306 = vmatpush1.bf16.msra.mxu0 0
    %1307 = vmatprep.subr.bf16.mxu0 0
    %1308 = vmatpush1.bf16.msra.mxu0 0
    %1309 = vmatprep.subr.bf16.mxu0 0
    %1310 = vmatpush1.bf16.msra.mxu0 0
    %1311 = vmatprep.subr.bf16.mxu0 0
    %1312 = vmatpush1.bf16.msra.mxu0 0
    %1313 = vmatprep.mubr.bf16.mxu0 0
    %1314 = vmatmul.mubr.bf16.gmra.mrb[0].mxu0 %v1280
    %v1315 = vpop.f32.mrb[0].mxu0
    %v1316 = vadd.f32 0.0, %v1315
    %v1317 = vpop.f32.mrb[0].mxu0
    %v1318 = vpop.f32.mrb[0].mxu0
    %v1319 = vpop.f32.mrb[0].mxu0
    %1320 = vdwg.mxu0
    %v1321 = vxor.u32 %v1316, 2147483648
    %v1322 = vmul.f32 %v1321, 1.442695
    %v1323 = vpow.pop %v1322
    %v1324 = vadd.f32 %v1323, 1.0
    %v1325 = vrcp.pop %v1324
    %v1326 = vmul.f32 1.0, %v1325
    %v1327 = vmul.f32 %v1326, 2.0
    %v1328 = vmul.f32 %v1327, %v1230
    %v1329 = vpack.c.bf16 %v1328, %v1328
    %1330 = vmatprep.subr.bf16.mxu0 %v109
    %1331 = vmatpush1.bf16.msra.mxu0 %v108
    %1332 = vmatprep.subr.bf16.mxu0 %v113
    %1333 = vmatpush1.bf16.msra.mxu0 %v112
    %1334 = vmatprep.subr.bf16.mxu0 %v117
    %1335 = vmatpush1.bf16.msra.mxu0 %v116
    %1336 = vmatprep.subr.bf16.mxu0 %v121
    %1337 = vmatpush1.bf16.msra.mxu0 %v120
    %1338 = vmatprep.subr.bf16.mxu0 %v125
    %1339 = vmatpush1.bf16.msra.mxu0 %v124
    %1340 = vmatprep.subr.bf16.mxu0 %v129
    %1341 = vmatpush1.bf16.msra.mxu0 %v128
    %1342 = vmatprep.subr.bf16.mxu0 %v133
    %1343 = vmatpush1.bf16.msra.mxu0 %v132
    %1344 = vmatprep.subr.bf16.mxu0 %v137
    %1345 = vmatpush1.bf16.msra.mxu0 %v136
    %1346 = vmatprep.subr.bf16.mxu0 %v141
    %1347 = vmatpush1.bf16.msra.mxu0 %v140
    %1348 = vmatprep.subr.bf16.mxu0 %v145
    %1349 = vmatpush1.bf16.msra.mxu0 %v144
    %1350 = vmatprep.subr.bf16.mxu0 %v149
    %1351 = vmatpush1.bf16.msra.mxu0 %v148
    %1352 = vmatprep.subr.bf16.mxu0 %v153
    %1353 = vmatpush1.bf16.msra.mxu0 %v152
    %1354 = vmatprep.subr.bf16.mxu0 %v157
    %1355 = vmatpush1.bf16.msra.mxu0 %v156
    %1356 = vmatprep.subr.bf16.mxu0 %v161
    %1357 = vmatpush1.bf16.msra.mxu0 %v160
    %1358 = vmatprep.subr.bf16.mxu0 %v165
    %1359 = vmatpush1.bf16.msra.mxu0 %v164
    %1360 = vmatprep.subr.bf16.mxu0 %v169
    %1361 = vmatpush1.bf16.msra.mxu0 %v168
    %1362 = vmatprep.mubr.bf16.mxu0 %v1329
    %1363 = vmatmul.mubr.bf16.gmra.mrb[0].mxu0 %v1280
    %v1364 = vpop.f32.mrb[0].mxu0
    %v1365 = vadd.f32 %v393, %v1364
    %v1366 = vpop.f32.mrb[0].mxu0
    %v1367 = vadd.f32 %v397, %v1366
    %v1368 = vpop.f32.mrb[0].mxu0
    %v1369 = vpop.f32.mrb[0].mxu0
    %1370 = vdwg.mxu0
    %1371 = vmatprep.subr.bf16.mxu0 %v111
    %1372 = vmatpush1.bf16.msra.mxu0 %v110
    %1373 = vmatprep.subr.bf16.mxu0 %v115
    %1374 = vmatpush1.bf16.msra.mxu0 %v114
    %1375 = vmatprep.subr.bf16.mxu0 %v119
    %1376 = vmatpush1.bf16.msra.mxu0 %v118
    %1377 = vmatprep.subr.bf16.mxu0 %v123
    %1378 = vmatpush1.bf16.msra.mxu0 %v122
    %1379 = vmatprep.subr.bf16.mxu0 %v127
    %1380 = vmatpush1.bf16.msra.mxu0 %v126
    %1381 = vmatprep.subr.bf16.mxu0 %v131
    %1382 = vmatpush1.bf16.msra.mxu0 %v130
    %1383 = vmatprep.subr.bf16.mxu0 %v135
    %1384 = vmatpush1.bf16.msra.mxu0 %v134
    %1385 = vmatprep.subr.bf16.mxu0 %v139
    %1386 = vmatpush1.bf16.msra.mxu0 %v138
    %1387 = vmatprep.subr.bf16.mxu0 %v143
    %1388 = vmatpush1.bf16.msra.mxu0 %v142
    %1389 = vmatprep.subr.bf16.mxu0 %v147
    %1390 = vmatpush1.bf16.msra.mxu0 %v146
    %1391 = vmatprep.subr.bf16.mxu0 %v151
    %1392 = vmatpush1.bf16.msra.mxu0 %v150
    %1393 = vmatprep.subr.bf16.mxu0 %v155
    %1394 = vmatpush1.bf16.msra.mxu0 %v154
    %1395 = vmatprep.subr.bf16.mxu0 %v159
    %1396 = vmatpush1.bf16.msra.mxu0 %v158
    %1397 = vmatprep.subr.bf16.mxu0 %v163
    %1398 = vmatpush1.bf16.msra.mxu0 %v162
    %1399 = vmatprep.subr.bf16.mxu0 %v167
    %1400 = vmatpush1.bf16.msra.mxu0 %v166
    %1401 = vmatprep.subr.bf16.mxu0 %v171
    %1402 = vmatpush1.bf16.msra.mxu0 %v170
    %1403 = vmatprep.mubr.bf16.mxu0 %v1329
    %1404 = vmatmul.mubr.bf16.gmra.mrb[0].mxu0 %v1280
    %v1405 = vpop.f32.mrb[0].mxu0
    %v1406 = vadd.f32 %v401, %v1405
    %v1407 = vpop.f32.mrb[0].mxu0
    %v1408 = vadd.f32 %v405, %v1407
    %v1409 = vpop.f32.mrb[0].mxu0
    %v1410 = vpop.f32.mrb[0].mxu0
    %1411 = vdwg.mxu0
    %v1412 = vxor.u32 %v1365, 2147483648
    %v1413 = vmul.f32 %v1412, 1.442695
    %v1414 = vpow.pop %v1413
    %v1415 = vadd.f32 %v1414, 1.0
    %v1416 = vrcp.pop %v1415
    %v1417 = vmul.f32 1.0, %v1416
    %v1418 = vxor.u32 %v1367, 2147483648
    %v1419 = vmul.f32 %v1418, 1.442695
    %v1420 = vpow.pop %v1419
    %v1421 = vadd.f32 %v1420, 1.0
    %v1422 = vrcp.pop %v1421
    %v1423 = vmul.f32 1.0, %v1422
    %v1424 = vtanh.pop %v1406
    %v1425 = vxor.u32 %v1408, 2147483648
    %v1426 = vmul.f32 %v1425, 1.442695
    %v1427 = vpow.pop %v1426
    %v1428 = vadd.f32 %v1427, 1.0
    %v1429 = vrcp.pop %v1428
    %v1430 = vmul.f32 1.0, %v1429
    %v1431 = vmul.f32 %v1423, %v1126
    %v1432 = vmul.f32 %v1417, %v1424
    %v1433 = vadd.f32 %v1431, %v1432
    %v1434 = vtanh.pop %v1433
    %v1435 = vmul.f32 %v1430, %v1434
    %s1436 = scalar_lea.vmem [#allocation11], 24
    %1437 = vst [vmem:[%s1436] sm:$0xff] %v1435
    %s1438 = scalar_lea.vmem [#allocation8], 32
    %v1439 = vld [vmem:[%s1438] sm:$0xff]
    %v1440 = vpack.c.bf16 %v1435, %v1435
    %1441 = vmatprep.subr.bf16.mxu0 0
    %1442 = vmatpush1.bf16.msra.mxu0 %v172
    %1443 = vmatprep.subr.bf16.mxu0 0
    %1444 = vmatpush1.bf16.msra.mxu0 %v173
    %1445 = vmatprep.subr.bf16.mxu0 0
    %1446 = vmatpush1.bf16.msra.mxu0 %v174
    %1447 = vmatprep.subr.bf16.mxu0 0
    %1448 = vmatpush1.bf16.msra.mxu0 %v175
    %1449 = vmatprep.subr.bf16.mxu0 0
    %1450 = vmatpush1.bf16.msra.mxu0 %v176
    %1451 = vmatprep.subr.bf16.mxu0 0
    %1452 = vmatpush1.bf16.msra.mxu0 %v177
    %1453 = vmatprep.subr.bf16.mxu0 0
    %1454 = vmatpush1.bf16.msra.mxu0 %v178
    %1455 = vmatprep.subr.bf16.mxu0 0
    %1456 = vmatpush1.bf16.msra.mxu0 %v179
    %1457 = vmatprep.subr.bf16.mxu0 0
    %1458 = vmatpush1.bf16.msra.mxu0 0
    %1459 = vmatprep.subr.bf16.mxu0 0
    %1460 = vmatpush1.bf16.msra.mxu0 0
    %1461 = vmatprep.subr.bf16.mxu0 0
    %1462 = vmatpush1.bf16.msra.mxu0 0
    %1463 = vmatprep.subr.bf16.mxu0 0
    %1464 = vmatpush1.bf16.msra.mxu0 0
    %1465 = vmatprep.subr.bf16.mxu0 0
    %1466 = vmatpush1.bf16.msra.mxu0 0
    %1467 = vmatprep.subr.bf16.mxu0 0
    %1468 = vmatpush1.bf16.msra.mxu0 0
    %1469 = vmatprep.subr.bf16.mxu0 0
    %1470 = vmatpush1.bf16.msra.mxu0 0
    %1471 = vmatprep.subr.bf16.mxu0 0
    %1472 = vmatpush1.bf16.msra.mxu0 0
    %1473 = vmatprep.mubr.bf16.mxu0 0
    %1474 = vmatmul.mubr.bf16.gmra.mrb[0].mxu0 %v1440
    %v1475 = vpop.f32.mrb[0].mxu0
    %v1476 = vadd.f32 0.0, %v1475
    %v1477 = vpop.f32.mrb[0].mxu0
    %v1478 = vpop.f32.mrb[0].mxu0
    %v1479 = vpop.f32.mrb[0].mxu0
    %1480 = vdwg.mxu0
    %v1481 = vxor.u32 %v1476, 2147483648
    %v1482 = vmul.f32 %v1481, 1.442695
    %v1483 = vpow.pop %v1482
    %v1484 = vadd.f32 %v1483, 1.0
    %v1485 = vrcp.pop %v1484
    %v1486 = vmul.f32 1.0, %v1485
    %v1487 = vmul.f32 %v1486, 2.0
    %v1488 = vmul.f32 %v1487, %v1439
    %v1489 = vpack.c.bf16 %v1488, %v1488
    %1490 = vmatprep.subr.bf16.mxu0 0
    %1491 = vmatpush1.bf16.msra.mxu0 %v180
    %1492 = vmatprep.subr.bf16.mxu0 0
    %1493 = vmatpush1.bf16.msra.mxu0 %v181
    %1494 = vmatprep.subr.bf16.mxu0 0
    %1495 = vmatpush1.bf16.msra.mxu0 %v182
    %1496 = vmatprep.subr.bf16.mxu0 0
    %1497 = vmatpush1.bf16.msra.mxu0 %v183
    %1498 = vmatprep.subr.bf16.mxu0 0
    %1499 = vmatpush1.bf16.msra.mxu0 %v184
    %1500 = vmatprep.subr.bf16.mxu0 0
    %1501 = vmatpush1.bf16.msra.mxu0 %v185
    %1502 = vmatprep.subr.bf16.mxu0 0
    %1503 = vmatpush1.bf16.msra.mxu0 %v186
    %1504 = vmatprep.subr.bf16.mxu0 0
    %1505 = vmatpush1.bf16.msra.mxu0 %v187
    %1506 = vmatprep.subr.bf16.mxu0 0
    %1507 = vmatpush1.bf16.msra.mxu0 0
    %1508 = vmatprep.subr.bf16.mxu0 0
    %1509 = vmatpush1.bf16.msra.mxu0 0
    %1510 = vmatprep.subr.bf16.mxu0 0
    %1511 = vmatpush1.bf16.msra.mxu0 0
    %1512 = vmatprep.subr.bf16.mxu0 0
    %1513 = vmatpush1.bf16.msra.mxu0 0
    %1514 = vmatprep.subr.bf16.mxu0 0
    %1515 = vmatpush1.bf16.msra.mxu0 0
    %1516 = vmatprep.subr.bf16.mxu0 0
    %1517 = vmatpush1.bf16.msra.mxu0 0
    %1518 = vmatprep.subr.bf16.mxu0 0
    %1519 = vmatpush1.bf16.msra.mxu0 0
    %1520 = vmatprep.subr.bf16.mxu0 0
    %1521 = vmatpush1.bf16.msra.mxu0 0
    %1522 = vmatprep.mubr.bf16.mxu0 0
    %1523 = vmatmul.mubr.bf16.gmra.mrb[0].mxu0 %v1489
    %v1524 = vpop.f32.mrb[0].mxu0
    %v1525 = vadd.f32 0.0, %v1524
    %v1526 = vpop.f32.mrb[0].mxu0
    %v1527 = vpop.f32.mrb[0].mxu0
    %v1528 = vpop.f32.mrb[0].mxu0
    %1529 = vdwg.mxu0
    %v1530 = vxor.u32 %v1525, 2147483648
    %v1531 = vmul.f32 %v1530, 1.442695
    %v1532 = vpow.pop %v1531
    %v1533 = vadd.f32 %v1532, 1.0
    %v1534 = vrcp.pop %v1533
    %v1535 = vmul.f32 1.0, %v1534
    %v1536 = vmul.f32 %v1535, 2.0
    %v1537 = vmul.f32 %v1536, %v1435
    %v1538 = vpack.c.bf16 %v1537, %v1537
    %1539 = vmatprep.subr.bf16.mxu0 0
    %1540 = vmatpush1.bf16.msra.mxu0 %v172
    %1541 = vmatprep.subr.bf16.mxu0 0
    %1542 = vmatpush1.bf16.msra.mxu0 %v173
    %1543 = vmatprep.subr.bf16.mxu0 0
    %1544 = vmatpush1.bf16.msra.mxu0 %v174
    %1545 = vmatprep.subr.bf16.mxu0 0
    %1546 = vmatpush1.bf16.msra.mxu0 %v175
    %1547 = vmatprep.subr.bf16.mxu0 0
    %1548 = vmatpush1.bf16.msra.mxu0 %v176
    %1549 = vmatprep.subr.bf16.mxu0 0
    %1550 = vmatpush1.bf16.msra.mxu0 %v177
    %1551 = vmatprep.subr.bf16.mxu0 0
    %1552 = vmatpush1.bf16.msra.mxu0 %v178
    %1553 = vmatprep.subr.bf16.mxu0 0
    %1554 = vmatpush1.bf16.msra.mxu0 %v179
    %1555 = vmatprep.subr.bf16.mxu0 0
    %1556 = vmatpush1.bf16.msra.mxu0 0
    %1557 = vmatprep.subr.bf16.mxu0 0
    %1558 = vmatpush1.bf16.msra.mxu0 0
    %1559 = vmatprep.subr.bf16.mxu0 0
    %1560 = vmatpush1.bf16.msra.mxu0 0
    %1561 = vmatprep.subr.bf16.mxu0 0
    %1562 = vmatpush1.bf16.msra.mxu0 0
    %1563 = vmatprep.subr.bf16.mxu0 0
    %1564 = vmatpush1.bf16.msra.mxu0 0
    %1565 = vmatprep.subr.bf16.mxu0 0
    %1566 = vmatpush1.bf16.msra.mxu0 0
    %1567 = vmatprep.subr.bf16.mxu0 0
    %1568 = vmatpush1.bf16.msra.mxu0 0
    %1569 = vmatprep.subr.bf16.mxu0 0
    %1570 = vmatpush1.bf16.msra.mxu0 0
    %1571 = vmatprep.mubr.bf16.mxu0 0
    %1572 = vmatmul.mubr.bf16.gmra.mrb[0].mxu0 %v1538
    %v1573 = vpop.f32.mrb[0].mxu0
    %v1574 = vadd.f32 0.0, %v1573
    %v1575 = vpop.f32.mrb[0].mxu0
    %v1576 = vpop.f32.mrb[0].mxu0
    %v1577 = vpop.f32.mrb[0].mxu0
    %1578 = vdwg.mxu0
    %v1579 = vxor.u32 %v1574, 2147483648
    %v1580 = vmul.f32 %v1579, 1.442695
    %v1581 = vpow.pop %v1580
    %v1582 = vadd.f32 %v1581, 1.0
    %v1583 = vrcp.pop %v1582
    %v1584 = vmul.f32 1.0, %v1583
    %v1585 = vmul.f32 %v1584, 2.0
    %v1586 = vmul.f32 %v1585, %v1488
    %v1587 = vpack.c.bf16 %v1586, %v1586
    %1588 = vmatprep.subr.bf16.mxu0 0
    %1589 = vmatpush1.bf16.msra.mxu0 %v180
    %1590 = vmatprep.subr.bf16.mxu0 0
    %1591 = vmatpush1.bf16.msra.mxu0 %v181
    %1592 = vmatprep.subr.bf16.mxu0 0
    %1593 = vmatpush1.bf16.msra.mxu0 %v182
    %1594 = vmatprep.subr.bf16.mxu0 0
    %1595 = vmatpush1.bf16.msra.mxu0 %v183
    %1596 = vmatprep.subr.bf16.mxu0 0
    %1597 = vmatpush1.bf16.msra.mxu0 %v184
    %1598 = vmatprep.subr.bf16.mxu0 0
    %1599 = vmatpush1.bf16.msra.mxu0 %v185
    %1600 = vmatprep.subr.bf16.mxu0 0
    %1601 = vmatpush1.bf16.msra.mxu0 %v186
    %1602 = vmatprep.subr.bf16.mxu0 0
    %1603 = vmatpush1.bf16.msra.mxu0 %v187
    %1604 = vmatprep.subr.bf16.mxu0 0
    %1605 = vmatpush1.bf16.msra.mxu0 0
    %1606 = vmatprep.subr.bf16.mxu0 0
    %1607 = vmatpush1.bf16.msra.mxu0 0
    %1608 = vmatprep.subr.bf16.mxu0 0
    %1609 = vmatpush1.bf16.msra.mxu0 0
    %1610 = vmatprep.subr.bf16.mxu0 0
    %1611 = vmatpush1.bf16.msra.mxu0 0
    %1612 = vmatprep.subr.bf16.mxu0 0
    %1613 = vmatpush1.bf16.msra.mxu0 0
    %1614 = vmatprep.subr.bf16.mxu0 0
    %1615 = vmatpush1.bf16.msra.mxu0 0
    %1616 = vmatprep.subr.bf16.mxu0 0
    %1617 = vmatpush1.bf16.msra.mxu0 0
    %1618 = vmatprep.subr.bf16.mxu0 0
    %1619 = vmatpush1.bf16.msra.mxu0 0
    %1620 = vmatprep.mubr.bf16.mxu0 0
    %1621 = vmatmul.mubr.bf16.gmra.mrb[0].mxu0 %v1587
    %v1622 = vpop.f32.mrb[0].mxu0
    %v1623 = vadd.f32 0.0, %v1622
    %v1624 = vpop.f32.mrb[0].mxu0
    %v1625 = vpop.f32.mrb[0].mxu0
    %v1626 = vpop.f32.mrb[0].mxu0
    %1627 = vdwg.mxu0
    %v1628 = vxor.u32 %v1623, 2147483648
    %v1629 = vmul.f32 %v1628, 1.442695
    %v1630 = vpow.pop %v1629
    %v1631 = vadd.f32 %v1630, 1.0
    %v1632 = vrcp.pop %v1631
    %v1633 = vmul.f32 1.0, %v1632
    %v1634 = vmul.f32 %v1633, 2.0
    %v1635 = vmul.f32 %v1634, %v1537
    %v1636 = vpack.c.bf16 %v1635, %v1635
    %1637 = vmatprep.subr.bf16.mxu0 %v109
    %1638 = vmatpush1.bf16.msra.mxu0 %v108
    %1639 = vmatprep.subr.bf16.mxu0 %v113
    %1640 = vmatpush1.bf16.msra.mxu0 %v112
    %1641 = vmatprep.subr.bf16.mxu0 %v117
    %1642 = vmatpush1.bf16.msra.mxu0 %v116
    %1643 = vmatprep.subr.bf16.mxu0 %v121
    %1644 = vmatpush1.bf16.msra.mxu0 %v120
    %1645 = vmatprep.subr.bf16.mxu0 %v125
    %1646 = vmatpush1.bf16.msra.mxu0 %v124
    %1647 = vmatprep.subr.bf16.mxu0 %v129
    %1648 = vmatpush1.bf16.msra.mxu0 %v128
    %1649 = vmatprep.subr.bf16.mxu0 %v133
    %1650 = vmatpush1.bf16.msra.mxu0 %v132
    %1651 = vmatprep.subr.bf16.mxu0 %v137
    %1652 = vmatpush1.bf16.msra.mxu0 %v136
    %1653 = vmatprep.subr.bf16.mxu0 %v141
    %1654 = vmatpush1.bf16.msra.mxu0 %v140
    %1655 = vmatprep.subr.bf16.mxu0 %v145
    %1656 = vmatpush1.bf16.msra.mxu0 %v144
    %1657 = vmatprep.subr.bf16.mxu0 %v149
    %1658 = vmatpush1.bf16.msra.mxu0 %v148
    %1659 = vmatprep.subr.bf16.mxu0 %v153
    %1660 = vmatpush1.bf16.msra.mxu0 %v152
    %1661 = vmatprep.subr.bf16.mxu0 %v157
    %1662 = vmatpush1.bf16.msra.mxu0 %v156
    %1663 = vmatprep.subr.bf16.mxu0 %v161
    %1664 = vmatpush1.bf16.msra.mxu0 %v160
    %1665 = vmatprep.subr.bf16.mxu0 %v165
    %1666 = vmatpush1.bf16.msra.mxu0 %v164
    %1667 = vmatprep.subr.bf16.mxu0 %v169
    %1668 = vmatpush1.bf16.msra.mxu0 %v168
    %1669 = vmatprep.mubr.bf16.mxu0 %v1636
    %1670 = vmatmul.mubr.bf16.gmra.mrb[0].mxu0 %v1587
    %v1671 = vpop.f32.mrb[0].mxu0
    %v1672 = vadd.f32 %v393, %v1671
    %v1673 = vpop.f32.mrb[0].mxu0
    %v1674 = vadd.f32 %v397, %v1673
    %v1675 = vpop.f32.mrb[0].mxu0
    %v1676 = vpop.f32.mrb[0].mxu0
    %1677 = vdwg.mxu0
    %1678 = vmatprep.subr.bf16.mxu0 %v111
    %1679 = vmatpush1.bf16.msra.mxu0 %v110
    %1680 = vmatprep.subr.bf16.mxu0 %v115
    %1681 = vmatpush1.bf16.msra.mxu0 %v114
    %1682 = vmatprep.subr.bf16.mxu0 %v119
    %1683 = vmatpush1.bf16.msra.mxu0 %v118
    %1684 = vmatprep.subr.bf16.mxu0 %v123
    %1685 = vmatpush1.bf16.msra.mxu0 %v122
    %1686 = vmatprep.subr.bf16.mxu0 %v127
    %1687 = vmatpush1.bf16.msra.mxu0 %v126
    %1688 = vmatprep.subr.bf16.mxu0 %v131
    %1689 = vmatpush1.bf16.msra.mxu0 %v130
    %1690 = vmatprep.subr.bf16.mxu0 %v135
    %1691 = vmatpush1.bf16.msra.mxu0 %v134
    %1692 = vmatprep.subr.bf16.mxu0 %v139
    %1693 = vmatpush1.bf16.msra.mxu0 %v138
    %1694 = vmatprep.subr.bf16.mxu0 %v143
    %1695 = vmatpush1.bf16.msra.mxu0 %v142
    %1696 = vmatprep.subr.bf16.mxu0 %v147
    %1697 = vmatpush1.bf16.msra.mxu0 %v146
    %1698 = vmatprep.subr.bf16.mxu0 %v151
    %1699 = vmatpush1.bf16.msra.mxu0 %v150
    %1700 = vmatprep.subr.bf16.mxu0 %v155
    %1701 = vmatpush1.bf16.msra.mxu0 %v154
    %1702 = vmatprep.subr.bf16.mxu0 %v159
    %1703 = vmatpush1.bf16.msra.mxu0 %v158
    %1704 = vmatprep.subr.bf16.mxu0 %v163
    %1705 = vmatpush1.bf16.msra.mxu0 %v162
    %1706 = vmatprep.subr.bf16.mxu0 %v167
    %1707 = vmatpush1.bf16.msra.mxu0 %v166
    %1708 = vmatprep.subr.bf16.mxu0 %v171
    %1709 = vmatpush1.bf16.msra.mxu0 %v170
    %1710 = vmatprep.mubr.bf16.mxu0 %v1636
    %1711 = vmatmul.mubr.bf16.gmra.mrb[0].mxu0 %v1587
    %v1712 = vpop.f32.mrb[0].mxu0
    %v1713 = vadd.f32 %v401, %v1712
    %v1714 = vpop.f32.mrb[0].mxu0
    %v1715 = vadd.f32 %v405, %v1714
    %v1716 = vpop.f32.mrb[0].mxu0
    %v1717 = vpop.f32.mrb[0].mxu0
    %1718 = vdwg.mxu0
    %v1719 = vxor.u32 %v1672, 2147483648
    %v1720 = vmul.f32 %v1719, 1.442695
    %v1721 = vpow.pop %v1720
    %v1722 = vadd.f32 %v1721, 1.0
    %v1723 = vrcp.pop %v1722
    %v1724 = vmul.f32 1.0, %v1723
    %v1725 = vxor.u32 %v1674, 2147483648
    %v1726 = vmul.f32 %v1725, 1.442695
    %v1727 = vpow.pop %v1726
    %v1728 = vadd.f32 %v1727, 1.0
    %v1729 = vrcp.pop %v1728
    %v1730 = vmul.f32 1.0, %v1729
    %v1731 = vtanh.pop %v1713
    %v1732 = vxor.u32 %v1715, 2147483648
    %v1733 = vmul.f32 %v1732, 1.442695
    %v1734 = vpow.pop %v1733
    %v1735 = vadd.f32 %v1734, 1.0
    %v1736 = vrcp.pop %v1735
    %v1737 = vmul.f32 1.0, %v1736
    %v1738 = vmul.f32 %v1730, %v1433
    %v1739 = vmul.f32 %v1724, %v1731
    %v1740 = vadd.f32 %v1738, %v1739
    %v1741 = vtanh.pop %v1740
    %v1742 = vmul.f32 %v1737, %v1741
    %s1743 = scalar_lea.vmem [#allocation11], 32
    %1744 = vst [vmem:[%s1743] sm:$0xff] %v1742
    %s1745 = scalar_lea.vmem [#allocation8], 40
    %v1746 = vld [vmem:[%s1745] sm:$0xff]
    %v1747 = vpack.c.bf16 %v1742, %v1742
    %1748 = vmatprep.subr.bf16.mxu0 0
    %1749 = vmatpush1.bf16.msra.mxu0 %v172
    %1750 = vmatprep.subr.bf16.mxu0 0
    %1751 = vmatpush1.bf16.msra.mxu0 %v173
    %1752 = vmatprep.subr.bf16.mxu0 0
    %1753 = vmatpush1.bf16.msra.mxu0 %v174
    %1754 = vmatprep.subr.bf16.mxu0 0
    %1755 = vmatpush1.bf16.msra.mxu0 %v175
    %1756 = vmatprep.subr.bf16.mxu0 0
    %1757 = vmatpush1.bf16.msra.mxu0 %v176
    %1758 = vmatprep.subr.bf16.mxu0 0
    %1759 = vmatpush1.bf16.msra.mxu0 %v177
    %1760 = vmatprep.subr.bf16.mxu0 0
    %1761 = vmatpush1.bf16.msra.mxu0 %v178
    %1762 = vmatprep.subr.bf16.mxu0 0
    %1763 = vmatpush1.bf16.msra.mxu0 %v179
    %1764 = vmatprep.subr.bf16.mxu0 0
    %1765 = vmatpush1.bf16.msra.mxu0 0
    %1766 = vmatprep.subr.bf16.mxu0 0
    %1767 = vmatpush1.bf16.msra.mxu0 0
    %1768 = vmatprep.subr.bf16.mxu0 0
    %1769 = vmatpush1.bf16.msra.mxu0 0
    %1770 = vmatprep.subr.bf16.mxu0 0
    %1771 = vmatpush1.bf16.msra.mxu0 0
    %1772 = vmatprep.subr.bf16.mxu0 0
    %1773 = vmatpush1.bf16.msra.mxu0 0
    %1774 = vmatprep.subr.bf16.mxu0 0
    %1775 = vmatpush1.bf16.msra.mxu0 0
    %1776 = vmatprep.subr.bf16.mxu0 0
    %1777 = vmatpush1.bf16.msra.mxu0 0
    %1778 = vmatprep.subr.bf16.mxu0 0
    %1779 = vmatpush1.bf16.msra.mxu0 0
    %1780 = vmatprep.mubr.bf16.mxu0 0
    %1781 = vmatmul.mubr.bf16.gmra.mrb[0].mxu0 %v1747
    %v1782 = vpop.f32.mrb[0].mxu0
    %v1783 = vadd.f32 0.0, %v1782
    %v1784 = vpop.f32.mrb[0].mxu0
    %v1785 = vpop.f32.mrb[0].mxu0
    %v1786 = vpop.f32.mrb[0].mxu0
    %1787 = vdwg.mxu0
    %v1788 = vxor.u32 %v1783, 2147483648
    %v1789 = vmul.f32 %v1788, 1.442695
    %v1790 = vpow.pop %v1789
    %v1791 = vadd.f32 %v1790, 1.0
    %v1792 = vrcp.pop %v1791
    %v1793 = vmul.f32 1.0, %v1792
    %v1794 = vmul.f32 %v1793, 2.0
    %v1795 = vmul.f32 %v1794, %v1746
    %v1796 = vpack.c.bf16 %v1795, %v1795
    %1797 = vmatprep.subr.bf16.mxu0 0
    %1798 = vmatpush1.bf16.msra.mxu0 %v180
    %1799 = vmatprep.subr.bf16.mxu0 0
    %1800 = vmatpush1.bf16.msra.mxu0 %v181
    %1801 = vmatprep.subr.bf16.mxu0 0
    %1802 = vmatpush1.bf16.msra.mxu0 %v182
    %1803 = vmatprep.subr.bf16.mxu0 0
    %1804 = vmatpush1.bf16.msra.mxu0 %v183
    %1805 = vmatprep.subr.bf16.mxu0 0
    %1806 = vmatpush1.bf16.msra.mxu0 %v184
    %1807 = vmatprep.subr.bf16.mxu0 0
    %1808 = vmatpush1.bf16.msra.mxu0 %v185
    %1809 = vmatprep.subr.bf16.mxu0 0
    %1810 = vmatpush1.bf16.msra.mxu0 %v186
    %1811 = vmatprep.subr.bf16.mxu0 0
    %1812 = vmatpush1.bf16.msra.mxu0 %v187
    %1813 = vmatprep.subr.bf16.mxu0 0
    %1814 = vmatpush1.bf16.msra.mxu0 0
    %1815 = vmatprep.subr.bf16.mxu0 0
    %1816 = vmatpush1.bf16.msra.mxu0 0
    %1817 = vmatprep.subr.bf16.mxu0 0
    %1818 = vmatpush1.bf16.msra.mxu0 0
    %1819 = vmatprep.subr.bf16.mxu0 0
    %1820 = vmatpush1.bf16.msra.mxu0 0
    %1821 = vmatprep.subr.bf16.mxu0 0
    %1822 = vmatpush1.bf16.msra.mxu0 0
    %1823 = vmatprep.subr.bf16.mxu0 0
    %1824 = vmatpush1.bf16.msra.mxu0 0
    %1825 = vmatprep.subr.bf16.mxu0 0
    %1826 = vmatpush1.bf16.msra.mxu0 0
    %1827 = vmatprep.subr.bf16.mxu0 0
    %1828 = vmatpush1.bf16.msra.mxu0 0
    %1829 = vmatprep.mubr.bf16.mxu0 0
    %1830 = vmatmul.mubr.bf16.gmra.mrb[0].mxu0 %v1796
    %v1831 = vpop.f32.mrb[0].mxu0
    %v1832 = vadd.f32 0.0, %v1831
    %v1833 = vpop.f32.mrb[0].mxu0
    %v1834 = vpop.f32.mrb[0].mxu0
    %v1835 = vpop.f32.mrb[0].mxu0
    %1836 = vdwg.mxu0
    %v1837 = vxor.u32 %v1832, 2147483648
    %v1838 = vmul.f32 %v1837, 1.442695
    %v1839 = vpow.pop %v1838
    %v1840 = vadd.f32 %v1839, 1.0
    %v1841 = vrcp.pop %v1840
    %v1842 = vmul.f32 1.0, %v1841
    %v1843 = vmul.f32 %v1842, 2.0
    %v1844 = vmul.f32 %v1843, %v1742
    %v1845 = vpack.c.bf16 %v1844, %v1844
    %1846 = vmatprep.subr.bf16.mxu0 0
    %1847 = vmatpush1.bf16.msra.mxu0 %v172
    %1848 = vmatprep.subr.bf16.mxu0 0
    %1849 = vmatpush1.bf16.msra.mxu0 %v173
    %1850 = vmatprep.subr.bf16.mxu0 0
    %1851 = vmatpush1.bf16.msra.mxu0 %v174
    %1852 = vmatprep.subr.bf16.mxu0 0
    %1853 = vmatpush1.bf16.msra.mxu0 %v175
    %1854 = vmatprep.subr.bf16.mxu0 0
    %1855 = vmatpush1.bf16.msra.mxu0 %v176
    %1856 = vmatprep.subr.bf16.mxu0 0
    %1857 = vmatpush1.bf16.msra.mxu0 %v177
    %1858 = vmatprep.subr.bf16.mxu0 0
    %1859 = vmatpush1.bf16.msra.mxu0 %v178
    %1860 = vmatprep.subr.bf16.mxu0 0
    %1861 = vmatpush1.bf16.msra.mxu0 %v179
    %1862 = vmatprep.subr.bf16.mxu0 0
    %1863 = vmatpush1.bf16.msra.mxu0 0
    %1864 = vmatprep.subr.bf16.mxu0 0
    %1865 = vmatpush1.bf16.msra.mxu0 0
    %1866 = vmatprep.subr.bf16.mxu0 0
    %1867 = vmatpush1.bf16.msra.mxu0 0
    %1868 = vmatprep.subr.bf16.mxu0 0
    %1869 = vmatpush1.bf16.msra.mxu0 0
    %1870 = vmatprep.subr.bf16.mxu0 0
    %1871 = vmatpush1.bf16.msra.mxu0 0
    %1872 = vmatprep.subr.bf16.mxu0 0
    %1873 = vmatpush1.bf16.msra.mxu0 0
    %1874 = vmatprep.subr.bf16.mxu0 0
    %1875 = vmatpush1.bf16.msra.mxu0 0
    %1876 = vmatprep.subr.bf16.mxu0 0
    %1877 = vmatpush1.bf16.msra.mxu0 0
    %1878 = vmatprep.mubr.bf16.mxu0 0
    %1879 = vmatmul.mubr.bf16.gmra.mrb[0].mxu0 %v1845
    %v1880 = vpop.f32.mrb[0].mxu0
    %v1881 = vadd.f32 0.0, %v1880
    %v1882 = vpop.f32.mrb[0].mxu0
    %v1883 = vpop.f32.mrb[0].mxu0
    %v1884 = vpop.f32.mrb[0].mxu0
    %1885 = vdwg.mxu0
    %v1886 = vxor.u32 %v1881, 2147483648
    %v1887 = vmul.f32 %v1886, 1.442695
    %v1888 = vpow.pop %v1887
    %v1889 = vadd.f32 %v1888, 1.0
    %v1890 = vrcp.pop %v1889
    %v1891 = vmul.f32 1.0, %v1890
    %v1892 = vmul.f32 %v1891, 2.0
    %v1893 = vmul.f32 %v1892, %v1795
    %v1894 = vpack.c.bf16 %v1893, %v1893
    %1895 = vmatprep.subr.bf16.mxu0 0
    %1896 = vmatpush1.bf16.msra.mxu0 %v180
    %1897 = vmatprep.subr.bf16.mxu0 0
    %1898 = vmatpush1.bf16.msra.mxu0 %v181
    %1899 = vmatprep.subr.bf16.mxu0 0
    %1900 = vmatpush1.bf16.msra.mxu0 %v182
    %1901 = vmatprep.subr.bf16.mxu0 0
    %1902 = vmatpush1.bf16.msra.mxu0 %v183
    %1903 = vmatprep.subr.bf16.mxu0 0
    %1904 = vmatpush1.bf16.msra.mxu0 %v184
    %1905 = vmatprep.subr.bf16.mxu0 0
    %1906 = vmatpush1.bf16.msra.mxu0 %v185
    %1907 = vmatprep.subr.bf16.mxu0 0
    %1908 = vmatpush1.bf16.msra.mxu0 %v186
    %1909 = vmatprep.subr.bf16.mxu0 0
    %1910 = vmatpush1.bf16.msra.mxu0 %v187
    %1911 = vmatprep.subr.bf16.mxu0 0
    %1912 = vmatpush1.bf16.msra.mxu0 0
    %1913 = vmatprep.subr.bf16.mxu0 0
    %1914 = vmatpush1.bf16.msra.mxu0 0
    %1915 = vmatprep.subr.bf16.mxu0 0
    %1916 = vmatpush1.bf16.msra.mxu0 0
    %1917 = vmatprep.subr.bf16.mxu0 0
    %1918 = vmatpush1.bf16.msra.mxu0 0
    %1919 = vmatprep.subr.bf16.mxu0 0
    %1920 = vmatpush1.bf16.msra.mxu0 0
    %1921 = vmatprep.subr.bf16.mxu0 0
    %1922 = vmatpush1.bf16.msra.mxu0 0
    %1923 = vmatprep.subr.bf16.mxu0 0
    %1924 = vmatpush1.bf16.msra.mxu0 0
    %1925 = vmatprep.subr.bf16.mxu0 0
    %1926 = vmatpush1.bf16.msra.mxu0 0
    %1927 = vmatprep.mubr.bf16.mxu0 0
    %1928 = vmatmul.mubr.bf16.gmra.mrb[0].mxu0 %v1894
    %v1929 = vpop.f32.mrb[0].mxu0
    %v1930 = vadd.f32 0.0, %v1929
    %v1931 = vpop.f32.mrb[0].mxu0
    %v1932 = vpop.f32.mrb[0].mxu0
    %v1933 = vpop.f32.mrb[0].mxu0
    %1934 = vdwg.mxu0
    %v1935 = vxor.u32 %v1930, 2147483648
    %v1936 = vmul.f32 %v1935, 1.442695
    %v1937 = vpow.pop %v1936
    %v1938 = vadd.f32 %v1937, 1.0
    %v1939 = vrcp.pop %v1938
    %v1940 = vmul.f32 1.0, %v1939
    %v1941 = vmul.f32 %v1940, 2.0
    %v1942 = vmul.f32 %v1941, %v1844
    %v1943 = vpack.c.bf16 %v1942, %v1942
    %1944 = vmatprep.subr.bf16.mxu0 %v109
    %1945 = vmatpush1.bf16.msra.mxu0 %v108
    %1946 = vmatprep.subr.bf16.mxu0 %v113
    %1947 = vmatpush1.bf16.msra.mxu0 %v112
    %1948 = vmatprep.subr.bf16.mxu0 %v117
    %1949 = vmatpush1.bf16.msra.mxu0 %v116
    %1950 = vmatprep.subr.bf16.mxu0 %v121
    %1951 = vmatpush1.bf16.msra.mxu0 %v120
    %1952 = vmatprep.subr.bf16.mxu0 %v125
    %1953 = vmatpush1.bf16.msra.mxu0 %v124
    %1954 = vmatprep.subr.bf16.mxu0 %v129
    %1955 = vmatpush1.bf16.msra.mxu0 %v128
    %1956 = vmatprep.subr.bf16.mxu0 %v133
    %1957 = vmatpush1.bf16.msra.mxu0 %v132
    %1958 = vmatprep.subr.bf16.mxu0 %v137
    %1959 = vmatpush1.bf16.msra.mxu0 %v136
    %1960 = vmatprep.subr.bf16.mxu0 %v141
    %1961 = vmatpush1.bf16.msra.mxu0 %v140
    %1962 = vmatprep.subr.bf16.mxu0 %v145
    %1963 = vmatpush1.bf16.msra.mxu0 %v144
    %1964 = vmatprep.subr.bf16.mxu0 %v149
    %1965 = vmatpush1.bf16.msra.mxu0 %v148
    %1966 = vmatprep.subr.bf16.mxu0 %v153
    %1967 = vmatpush1.bf16.msra.mxu0 %v152
    %1968 = vmatprep.subr.bf16.mxu0 %v157
    %1969 = vmatpush1.bf16.msra.mxu0 %v156
    %1970 = vmatprep.subr.bf16.mxu0 %v161
    %1971 = vmatpush1.bf16.msra.mxu0 %v160
    %1972 = vmatprep.subr.bf16.mxu0 %v165
    %1973 = vmatpush1.bf16.msra.mxu0 %v164
    %1974 = vmatprep.subr.bf16.mxu0 %v169
    %1975 = vmatpush1.bf16.msra.mxu0 %v168
    %1976 = vmatprep.mubr.bf16.mxu0 %v1943
    %1977 = vmatmul.mubr.bf16.gmra.mrb[0].mxu0 %v1894
    %v1978 = vpop.f32.mrb[0].mxu0
    %v1979 = vadd.f32 %v393, %v1978
    %v1980 = vpop.f32.mrb[0].mxu0
    %v1981 = vadd.f32 %v397, %v1980
    %v1982 = vpop.f32.mrb[0].mxu0
    %v1983 = vpop.f32.mrb[0].mxu0
    %1984 = vdwg.mxu0
    %1985 = vmatprep.subr.bf16.mxu0 %v111
    %1986 = vmatpush1.bf16.msra.mxu0 %v110
    %1987 = vmatprep.subr.bf16.mxu0 %v115
    %1988 = vmatpush1.bf16.msra.mxu0 %v114
    %1989 = vmatprep.subr.bf16.mxu0 %v119
    %1990 = vmatpush1.bf16.msra.mxu0 %v118
    %1991 = vmatprep.subr.bf16.mxu0 %v123
    %1992 = vmatpush1.bf16.msra.mxu0 %v122
    %1993 = vmatprep.subr.bf16.mxu0 %v127
    %1994 = vmatpush1.bf16.msra.mxu0 %v126
    %1995 = vmatprep.subr.bf16.mxu0 %v131
    %1996 = vmatpush1.bf16.msra.mxu0 %v130
    %1997 = vmatprep.subr.bf16.mxu0 %v135
    %1998 = vmatpush1.bf16.msra.mxu0 %v134
    %1999 = vmatprep.subr.bf16.mxu0 %v139
    %2000 = vmatpush1.bf16.msra.mxu0 %v138
    %2001 = vmatprep.subr.bf16.mxu0 %v143
    %2002 = vmatpush1.bf16.msra.mxu0 %v142
    %2003 = vmatprep.subr.bf16.mxu0 %v147
    %2004 = vmatpush1.bf16.msra.mxu0 %v146
    %2005 = vmatprep.subr.bf16.mxu0 %v151
    %2006 = vmatpush1.bf16.msra.mxu0 %v150
    %2007 = vmatprep.subr.bf16.mxu0 %v155
    %2008 = vmatpush1.bf16.msra.mxu0 %v154
    %2009 = vmatprep.subr.bf16.mxu0 %v159
    %2010 = vmatpush1.bf16.msra.mxu0 %v158
    %2011 = vmatprep.subr.bf16.mxu0 %v163
    %2012 = vmatpush1.bf16.msra.mxu0 %v162
    %2013 = vmatprep.subr.bf16.mxu0 %v167
    %2014 = vmatpush1.bf16.msra.mxu0 %v166
    %2015 = vmatprep.subr.bf16.mxu0 %v171
    %2016 = vmatpush1.bf16.msra.mxu0 %v170
    %2017 = vmatprep.mubr.bf16.mxu0 %v1943
    %2018 = vmatmul.mubr.bf16.gmra.mrb[0].mxu0 %v1894
    %v2019 = vpop.f32.mrb[0].mxu0
    %v2020 = vadd.f32 %v401, %v2019
    %v2021 = vpop.f32.mrb[0].mxu0
    %v2022 = vadd.f32 %v405, %v2021
    %v2023 = vpop.f32.mrb[0].mxu0
    %v2024 = vpop.f32.mrb[0].mxu0
    %2025 = vdwg.mxu0
    %v2026 = vxor.u32 %v1979, 2147483648
    %v2027 = vmul.f32 %v2026, 1.442695
    %v2028 = vpow.pop %v2027
    %v2029 = vadd.f32 %v2028, 1.0
    %v2030 = vrcp.pop %v2029
    %v2031 = vmul.f32 1.0, %v2030
    %v2032 = vxor.u32 %v1981, 2147483648
    %v2033 = vmul.f32 %v2032, 1.442695
    %v2034 = vpow.pop %v2033
    %v2035 = vadd.f32 %v2034, 1.0
    %v2036 = vrcp.pop %v2035
    %v2037 = vmul.f32 1.0, %v2036
    %v2038 = vtanh.pop %v2020
    %v2039 = vxor.u32 %v2022, 2147483648
    %v2040 = vmul.f32 %v2039, 1.442695
    %v2041 = vpow.pop %v2040
    %v2042 = vadd.f32 %v2041, 1.0
    %v2043 = vrcp.pop %v2042
    %v2044 = vmul.f32 1.0, %v2043
    %v2045 = vmul.f32 %v2037, %v1740
    %v2046 = vmul.f32 %v2031, %v2038
    %v2047 = vadd.f32 %v2045, %v2046
    %v2048 = vtanh.pop %v2047
    %v2049 = vmul.f32 %v2044, %v2048
    %s2050 = scalar_lea.vmem [#allocation11], 40
    %2051 = vst [vmem:[%s2050] sm:$0xff] %v2049
    %s2052 = scalar_lea.vmem [#allocation8], 48
    %v2053 = vld [vmem:[%s2052] sm:$0xff]
    %v2054 = vpack.c.bf16 %v2049, %v2049
    %2055 = vmatprep.subr.bf16.mxu0 0
    %2056 = vmatpush1.bf16.msra.mxu0 %v172
    %2057 = vmatprep.subr.bf16.mxu0 0
    %2058 = vmatpush1.bf16.msra.mxu0 %v173
    %2059 = vmatprep.subr.bf16.mxu0 0
    %2060 = vmatpush1.bf16.msra.mxu0 %v174
    %2061 = vmatprep.subr.bf16.mxu0 0
    %2062 = vmatpush1.bf16.msra.mxu0 %v175
    %2063 = vmatprep.subr.bf16.mxu0 0
    %2064 = vmatpush1.bf16.msra.mxu0 %v176
    %2065 = vmatprep.subr.bf16.mxu0 0
    %2066 = vmatpush1.bf16.msra.mxu0 %v177
    %2067 = vmatprep.subr.bf16.mxu0 0
    %2068 = vmatpush1.bf16.msra.mxu0 %v178
    %2069 = vmatprep.subr.bf16.mxu0 0
    %2070 = vmatpush1.bf16.msra.mxu0 %v179
    %2071 = vmatprep.subr.bf16.mxu0 0
    %2072 = vmatpush1.bf16.msra.mxu0 0
    %2073 = vmatprep.subr.bf16.mxu0 0
    %2074 = vmatpush1.bf16.msra.mxu0 0
    %2075 = vmatprep.subr.bf16.mxu0 0
    %2076 = vmatpush1.bf16.msra.mxu0 0
    %2077 = vmatprep.subr.bf16.mxu0 0
    %2078 = vmatpush1.bf16.msra.mxu0 0
    %2079 = vmatprep.subr.bf16.mxu0 0
    %2080 = vmatpush1.bf16.msra.mxu0 0
    %2081 = vmatprep.subr.bf16.mxu0 0
    %2082 = vmatpush1.bf16.msra.mxu0 0
    %2083 = vmatprep.subr.bf16.mxu0 0
    %2084 = vmatpush1.bf16.msra.mxu0 0
    %2085 = vmatprep.subr.bf16.mxu0 0
    %2086 = vmatpush1.bf16.msra.mxu0 0
    %2087 = vmatprep.mubr.bf16.mxu0 0
    %2088 = vmatmul.mubr.bf16.gmra.mrb[0].mxu0 %v2054
    %v2089 = vpop.f32.mrb[0].mxu0
    %v2090 = vadd.f32 0.0, %v2089
    %v2091 = vpop.f32.mrb[0].mxu0
    %v2092 = vpop.f32.mrb[0].mxu0
    %v2093 = vpop.f32.mrb[0].mxu0
    %2094 = vdwg.mxu0
    %v2095 = vxor.u32 %v2090, 2147483648
    %v2096 = vmul.f32 %v2095, 1.442695
    %v2097 = vpow.pop %v2096
    %v2098 = vadd.f32 %v2097, 1.0
    %v2099 = vrcp.pop %v2098
    %v2100 = vmul.f32 1.0, %v2099
    %v2101 = vmul.f32 %v2100, 2.0
    %v2102 = vmul.f32 %v2101, %v2053
    %v2103 = vpack.c.bf16 %v2102, %v2102
    %2104 = vmatprep.subr.bf16.mxu0 0
    %2105 = vmatpush1.bf16.msra.mxu0 %v180
    %2106 = vmatprep.subr.bf16.mxu0 0
    %2107 = vmatpush1.bf16.msra.mxu0 %v181
    %2108 = vmatprep.subr.bf16.mxu0 0
    %2109 = vmatpush1.bf16.msra.mxu0 %v182
    %2110 = vmatprep.subr.bf16.mxu0 0
    %2111 = vmatpush1.bf16.msra.mxu0 %v183
    %2112 = vmatprep.subr.bf16.mxu0 0
    %2113 = vmatpush1.bf16.msra.mxu0 %v184
    %2114 = vmatprep.subr.bf16.mxu0 0
    %2115 = vmatpush1.bf16.msra.mxu0 %v185
    %2116 = vmatprep.subr.bf16.mxu0 0
    %2117 = vmatpush1.bf16.msra.mxu0 %v186
    %2118 = vmatprep.subr.bf16.mxu0 0
    %2119 = vmatpush1.bf16.msra.mxu0 %v187
    %2120 = vmatprep.subr.bf16.mxu0 0
    %2121 = vmatpush1.bf16.msra.mxu0 0
    %2122 = vmatprep.subr.bf16.mxu0 0
    %2123 = vmatpush1.bf16.msra.mxu0 0
    %2124 = vmatprep.subr.bf16.mxu0 0
    %2125 = vmatpush1.bf16.msra.mxu0 0
    %2126 = vmatprep.subr.bf16.mxu0 0
    %2127 = vmatpush1.bf16.msra.mxu0 0
    %2128 = vmatprep.subr.bf16.mxu0 0
    %2129 = vmatpush1.bf16.msra.mxu0 0
    %2130 = vmatprep.subr.bf16.mxu0 0
    %2131 = vmatpush1.bf16.msra.mxu0 0
    %2132 = vmatprep.subr.bf16.mxu0 0
    %2133 = vmatpush1.bf16.msra.mxu0 0
    %2134 = vmatprep.subr.bf16.mxu0 0
    %2135 = vmatpush1.bf16.msra.mxu0 0
    %2136 = vmatprep.mubr.bf16.mxu0 0
    %2137 = vmatmul.mubr.bf16.gmra.mrb[0].mxu0 %v2103
    %v2138 = vpop.f32.mrb[0].mxu0
    %v2139 = vadd.f32 0.0, %v2138
    %v2140 = vpop.f32.mrb[0].mxu0
    %v2141 = vpop.f32.mrb[0].mxu0
    %v2142 = vpop.f32.mrb[0].mxu0
    %2143 = vdwg.mxu0
    %v2144 = vxor.u32 %v2139, 2147483648
    %v2145 = vmul.f32 %v2144, 1.442695
    %v2146 = vpow.pop %v2145
    %v2147 = vadd.f32 %v2146, 1.0
    %v2148 = vrcp.pop %v2147
    %v2149 = vmul.f32 1.0, %v2148
    %v2150 = vmul.f32 %v2149, 2.0
    %v2151 = vmul.f32 %v2150, %v2049
    %v2152 = vpack.c.bf16 %v2151, %v2151
    %2153 = vmatprep.subr.bf16.mxu0 0
    %2154 = vmatpush1.bf16.msra.mxu0 %v172
    %2155 = vmatprep.subr.bf16.mxu0 0
    %2156 = vmatpush1.bf16.msra.mxu0 %v173
    %2157 = vmatprep.subr.bf16.mxu0 0
    %2158 = vmatpush1.bf16.msra.mxu0 %v174
    %2159 = vmatprep.subr.bf16.mxu0 0
    %2160 = vmatpush1.bf16.msra.mxu0 %v175
    %2161 = vmatprep.subr.bf16.mxu0 0
    %2162 = vmatpush1.bf16.msra.mxu0 %v176
    %2163 = vmatprep.subr.bf16.mxu0 0
    %2164 = vmatpush1.bf16.msra.mxu0 %v177
    %2165 = vmatprep.subr.bf16.mxu0 0
    %2166 = vmatpush1.bf16.msra.mxu0 %v178
    %2167 = vmatprep.subr.bf16.mxu0 0
    %2168 = vmatpush1.bf16.msra.mxu0 %v179
    %2169 = vmatprep.subr.bf16.mxu0 0
    %2170 = vmatpush1.bf16.msra.mxu0 0
    %2171 = vmatprep.subr.bf16.mxu0 0
    %2172 = vmatpush1.bf16.msra.mxu0 0
    %2173 = vmatprep.subr.bf16.mxu0 0
    %2174 = vmatpush1.bf16.msra.mxu0 0
    %2175 = vmatprep.subr.bf16.mxu0 0
    %2176 = vmatpush1.bf16.msra.mxu0 0
    %2177 = vmatprep.subr.bf16.mxu0 0
    %2178 = vmatpush1.bf16.msra.mxu0 0
    %2179 = vmatprep.subr.bf16.mxu0 0
    %2180 = vmatpush1.bf16.msra.mxu0 0
    %2181 = vmatprep.subr.bf16.mxu0 0
    %2182 = vmatpush1.bf16.msra.mxu0 0
    %2183 = vmatprep.subr.bf16.mxu0 0
    %2184 = vmatpush1.bf16.msra.mxu0 0
    %2185 = vmatprep.mubr.bf16.mxu0 0
    %2186 = vmatmul.mubr.bf16.gmra.mrb[0].mxu0 %v2152
    %v2187 = vpop.f32.mrb[0].mxu0
    %v2188 = vadd.f32 0.0, %v2187
    %v2189 = vpop.f32.mrb[0].mxu0
    %v2190 = vpop.f32.mrb[0].mxu0
    %v2191 = vpop.f32.mrb[0].mxu0
    %2192 = vdwg.mxu0
    %v2193 = vxor.u32 %v2188, 2147483648
    %v2194 = vmul.f32 %v2193, 1.442695
    %v2195 = vpow.pop %v2194
    %v2196 = vadd.f32 %v2195, 1.0
    %v2197 = vrcp.pop %v2196
    %v2198 = vmul.f32 1.0, %v2197
    %v2199 = vmul.f32 %v2198, 2.0
    %v2200 = vmul.f32 %v2199, %v2102
    %v2201 = vpack.c.bf16 %v2200, %v2200
    %2202 = vmatprep.subr.bf16.mxu0 0
    %2203 = vmatpush1.bf16.msra.mxu0 %v180
    %2204 = vmatprep.subr.bf16.mxu0 0
    %2205 = vmatpush1.bf16.msra.mxu0 %v181
    %2206 = vmatprep.subr.bf16.mxu0 0
    %2207 = vmatpush1.bf16.msra.mxu0 %v182
    %2208 = vmatprep.subr.bf16.mxu0 0
    %2209 = vmatpush1.bf16.msra.mxu0 %v183
    %2210 = vmatprep.subr.bf16.mxu0 0
    %2211 = vmatpush1.bf16.msra.mxu0 %v184
    %2212 = vmatprep.subr.bf16.mxu0 0
    %2213 = vmatpush1.bf16.msra.mxu0 %v185
    %2214 = vmatprep.subr.bf16.mxu0 0
    %2215 = vmatpush1.bf16.msra.mxu0 %v186
    %2216 = vmatprep.subr.bf16.mxu0 0
    %2217 = vmatpush1.bf16.msra.mxu0 %v187
    %2218 = vmatprep.subr.bf16.mxu0 0
    %2219 = vmatpush1.bf16.msra.mxu0 0
    %2220 = vmatprep.subr.bf16.mxu0 0
    %2221 = vmatpush1.bf16.msra.mxu0 0
    %2222 = vmatprep.subr.bf16.mxu0 0
    %2223 = vmatpush1.bf16.msra.mxu0 0
    %2224 = vmatprep.subr.bf16.mxu0 0
    %2225 = vmatpush1.bf16.msra.mxu0 0
    %2226 = vmatprep.subr.bf16.mxu0 0
    %2227 = vmatpush1.bf16.msra.mxu0 0
    %2228 = vmatprep.subr.bf16.mxu0 0
    %2229 = vmatpush1.bf16.msra.mxu0 0
    %2230 = vmatprep.subr.bf16.mxu0 0
    %2231 = vmatpush1.bf16.msra.mxu0 0
    %2232 = vmatprep.subr.bf16.mxu0 0
    %2233 = vmatpush1.bf16.msra.mxu0 0
    %2234 = vmatprep.mubr.bf16.mxu0 0
    %2235 = vmatmul.mubr.bf16.gmra.mrb[0].mxu0 %v2201
    %v2236 = vpop.f32.mrb[0].mxu0
    %v2237 = vadd.f32 0.0, %v2236
    %v2238 = vpop.f32.mrb[0].mxu0
    %v2239 = vpop.f32.mrb[0].mxu0
    %v2240 = vpop.f32.mrb[0].mxu0
    %2241 = vdwg.mxu0
    %v2242 = vxor.u32 %v2237, 2147483648
    %v2243 = vmul.f32 %v2242, 1.442695
    %v2244 = vpow.pop %v2243
    %v2245 = vadd.f32 %v2244, 1.0
    %v2246 = vrcp.pop %v2245
    %v2247 = vmul.f32 1.0, %v2246
    %v2248 = vmul.f32 %v2247, 2.0
    %v2249 = vmul.f32 %v2248, %v2151
    %v2250 = vpack.c.bf16 %v2249, %v2249
    %2251 = vmatprep.subr.bf16.mxu0 %v109
    %2252 = vmatpush1.bf16.msra.mxu0 %v108
    %2253 = vmatprep.subr.bf16.mxu0 %v113
    %2254 = vmatpush1.bf16.msra.mxu0 %v112
    %2255 = vmatprep.subr.bf16.mxu0 %v117
    %2256 = vmatpush1.bf16.msra.mxu0 %v116
    %2257 = vmatprep.subr.bf16.mxu0 %v121
    %2258 = vmatpush1.bf16.msra.mxu0 %v120
    %2259 = vmatprep.subr.bf16.mxu0 %v125
    %2260 = vmatpush1.bf16.msra.mxu0 %v124
    %2261 = vmatprep.subr.bf16.mxu0 %v129
    %2262 = vmatpush1.bf16.msra.mxu0 %v128
    %2263 = vmatprep.subr.bf16.mxu0 %v133
    %2264 = vmatpush1.bf16.msra.mxu0 %v132
    %2265 = vmatprep.subr.bf16.mxu0 %v137
    %2266 = vmatpush1.bf16.msra.mxu0 %v136
    %2267 = vmatprep.subr.bf16.mxu0 %v141
    %2268 = vmatpush1.bf16.msra.mxu0 %v140
    %2269 = vmatprep.subr.bf16.mxu0 %v145
    %2270 = vmatpush1.bf16.msra.mxu0 %v144
    %2271 = vmatprep.subr.bf16.mxu0 %v149
    %2272 = vmatpush1.bf16.msra.mxu0 %v148
    %2273 = vmatprep.subr.bf16.mxu0 %v153
    %2274 = vmatpush1.bf16.msra.mxu0 %v152
    %2275 = vmatprep.subr.bf16.mxu0 %v157
    %2276 = vmatpush1.bf16.msra.mxu0 %v156
    %2277 = vmatprep.subr.bf16.mxu0 %v161
    %2278 = vmatpush1.bf16.msra.mxu0 %v160
    %2279 = vmatprep.subr.bf16.mxu0 %v165
    %2280 = vmatpush1.bf16.msra.mxu0 %v164
    %2281 = vmatprep.subr.bf16.mxu0 %v169
    %2282 = vmatpush1.bf16.msra.mxu0 %v168
    %2283 = vmatprep.mubr.bf16.mxu0 %v2250
    %2284 = vmatmul.mubr.bf16.gmra.mrb[0].mxu0 %v2201
    %v2285 = vpop.f32.mrb[0].mxu0
    %v2286 = vadd.f32 %v393, %v2285
    %v2287 = vpop.f32.mrb[0].mxu0
    %v2288 = vadd.f32 %v397, %v2287
    %v2289 = vpop.f32.mrb[0].mxu0
    %v2290 = vpop.f32.mrb[0].mxu0
    %2291 = vdwg.mxu0
    %2292 = vmatprep.subr.bf16.mxu0 %v111
    %2293 = vmatpush1.bf16.msra.mxu0 %v110
    %2294 = vmatprep.subr.bf16.mxu0 %v115
    %2295 = vmatpush1.bf16.msra.mxu0 %v114
    %2296 = vmatprep.subr.bf16.mxu0 %v119
    %2297 = vmatpush1.bf16.msra.mxu0 %v118
    %2298 = vmatprep.subr.bf16.mxu0 %v123
    %2299 = vmatpush1.bf16.msra.mxu0 %v122
    %2300 = vmatprep.subr.bf16.mxu0 %v127
    %2301 = vmatpush1.bf16.msra.mxu0 %v126
    %2302 = vmatprep.subr.bf16.mxu0 %v131
    %2303 = vmatpush1.bf16.msra.mxu0 %v130
    %2304 = vmatprep.subr.bf16.mxu0 %v135
    %2305 = vmatpush1.bf16.msra.mxu0 %v134
    %2306 = vmatprep.subr.bf16.mxu0 %v139
    %2307 = vmatpush1.bf16.msra.mxu0 %v138
    %2308 = vmatprep.subr.bf16.mxu0 %v143
    %2309 = vmatpush1.bf16.msra.mxu0 %v142
    %2310 = vmatprep.subr.bf16.mxu0 %v147
    %2311 = vmatpush1.bf16.msra.mxu0 %v146
    %2312 = vmatprep.subr.bf16.mxu0 %v151
    %2313 = vmatpush1.bf16.msra.mxu0 %v150
    %2314 = vmatprep.subr.bf16.mxu0 %v155
    %2315 = vmatpush1.bf16.msra.mxu0 %v154
    %2316 = vmatprep.subr.bf16.mxu0 %v159
    %2317 = vmatpush1.bf16.msra.mxu0 %v158
    %2318 = vmatprep.subr.bf16.mxu0 %v163
    %2319 = vmatpush1.bf16.msra.mxu0 %v162
    %2320 = vmatprep.subr.bf16.mxu0 %v167
    %2321 = vmatpush1.bf16.msra.mxu0 %v166
    %2322 = vmatprep.subr.bf16.mxu0 %v171
    %2323 = vmatpush1.bf16.msra.mxu0 %v170
    %2324 = vmatprep.mubr.bf16.mxu0 %v2250
    %2325 = vmatmul.mubr.bf16.gmra.mrb[0].mxu0 %v2201
    %v2326 = vpop.f32.mrb[0].mxu0
    %v2327 = vadd.f32 %v401, %v2326
    %v2328 = vpop.f32.mrb[0].mxu0
    %v2329 = vadd.f32 %v405, %v2328
    %v2330 = vpop.f32.mrb[0].mxu0
    %v2331 = vpop.f32.mrb[0].mxu0
    %2332 = vdwg.mxu0
    %v2333 = vxor.u32 %v2286, 2147483648
    %v2334 = vmul.f32 %v2333, 1.442695
    %v2335 = vpow.pop %v2334
    %v2336 = vadd.f32 %v2335, 1.0
    %v2337 = vrcp.pop %v2336
    %v2338 = vmul.f32 1.0, %v2337
    %v2339 = vxor.u32 %v2288, 2147483648
    %v2340 = vmul.f32 %v2339, 1.442695
    %v2341 = vpow.pop %v2340
    %v2342 = vadd.f32 %v2341, 1.0
    %v2343 = vrcp.pop %v2342
    %v2344 = vmul.f32 1.0, %v2343
    %v2345 = vtanh.pop %v2327
    %v2346 = vxor.u32 %v2329, 2147483648
    %v2347 = vmul.f32 %v2346, 1.442695
    %v2348 = vpow.pop %v2347
    %v2349 = vadd.f32 %v2348, 1.0
    %v2350 = vrcp.pop %v2349
    %v2351 = vmul.f32 1.0, %v2350
    %v2352 = vmul.f32 %v2344, %v2047
    %v2353 = vmul.f32 %v2338, %v2345
    %v2354 = vadd.f32 %v2352, %v2353
    %v2355 = vtanh.pop %v2354
    %v2356 = vmul.f32 %v2351, %v2355
    %s2357 = scalar_lea.vmem [#allocation11], 48
    %2358 = vst [vmem:[%s2357] sm:$0xff] %v2356
    %s2359 = scalar_lea.vmem [#allocation8], 56
    %v2360 = vld [vmem:[%s2359] sm:$0xff]
    %v2361 = vpack.c.bf16 %v2356, %v2356
    %2362 = vmatprep.subr.bf16.mxu0 0
    %2363 = vmatpush1.bf16.msra.mxu0 %v172
    %2364 = vmatprep.subr.bf16.mxu0 0
    %2365 = vmatpush1.bf16.msra.mxu0 %v173
    %2366 = vmatprep.subr.bf16.mxu0 0
    %2367 = vmatpush1.bf16.msra.mxu0 %v174
    %2368 = vmatprep.subr.bf16.mxu0 0
    %2369 = vmatpush1.bf16.msra.mxu0 %v175
    %2370 = vmatprep.subr.bf16.mxu0 0
    %2371 = vmatpush1.bf16.msra.mxu0 %v176
    %2372 = vmatprep.subr.bf16.mxu0 0
    %2373 = vmatpush1.bf16.msra.mxu0 %v177
    %2374 = vmatprep.subr.bf16.mxu0 0
    %2375 = vmatpush1.bf16.msra.mxu0 %v178
    %2376 = vmatprep.subr.bf16.mxu0 0
    %2377 = vmatpush1.bf16.msra.mxu0 %v179
    %2378 = vmatprep.subr.bf16.mxu0 0
    %2379 = vmatpush1.bf16.msra.mxu0 0
    %2380 = vmatprep.subr.bf16.mxu0 0
    %2381 = vmatpush1.bf16.msra.mxu0 0
    %2382 = vmatprep.subr.bf16.mxu0 0
    %2383 = vmatpush1.bf16.msra.mxu0 0
    %2384 = vmatprep.subr.bf16.mxu0 0
    %2385 = vmatpush1.bf16.msra.mxu0 0
    %2386 = vmatprep.subr.bf16.mxu0 0
    %2387 = vmatpush1.bf16.msra.mxu0 0
    %2388 = vmatprep.subr.bf16.mxu0 0
    %2389 = vmatpush1.bf16.msra.mxu0 0
    %2390 = vmatprep.subr.bf16.mxu0 0
    %2391 = vmatpush1.bf16.msra.mxu0 0
    %2392 = vmatprep.subr.bf16.mxu0 0
    %2393 = vmatpush1.bf16.msra.mxu0 0
    %2394 = vmatprep.mubr.bf16.mxu0 0
    %2395 = vmatmul.mubr.bf16.gmra.mrb[0].mxu0 %v2361
    %v2396 = vpop.f32.mrb[0].mxu0
    %v2397 = vadd.f32 0.0, %v2396
    %v2398 = vpop.f32.mrb[0].mxu0
    %v2399 = vpop.f32.mrb[0].mxu0
    %v2400 = vpop.f32.mrb[0].mxu0
    %2401 = vdwg.mxu0
    %v2402 = vxor.u32 %v2397, 2147483648
    %v2403 = vmul.f32 %v2402, 1.442695
    %v2404 = vpow.pop %v2403
    %v2405 = vadd.f32 %v2404, 1.0
    %v2406 = vrcp.pop %v2405
    %v2407 = vmul.f32 1.0, %v2406
    %v2408 = vmul.f32 %v2407, 2.0
    %v2409 = vmul.f32 %v2408, %v2360
    %v2410 = vpack.c.bf16 %v2409, %v2409
    %2411 = vmatprep.subr.bf16.mxu0 0
    %2412 = vmatpush1.bf16.msra.mxu0 %v180
    %2413 = vmatprep.subr.bf16.mxu0 0
    %2414 = vmatpush1.bf16.msra.mxu0 %v181
    %2415 = vmatprep.subr.bf16.mxu0 0
    %2416 = vmatpush1.bf16.msra.mxu0 %v182
    %2417 = vmatprep.subr.bf16.mxu0 0
    %2418 = vmatpush1.bf16.msra.mxu0 %v183
    %2419 = vmatprep.subr.bf16.mxu0 0
    %2420 = vmatpush1.bf16.msra.mxu0 %v184
    %2421 = vmatprep.subr.bf16.mxu0 0
    %2422 = vmatpush1.bf16.msra.mxu0 %v185
    %2423 = vmatprep.subr.bf16.mxu0 0
    %2424 = vmatpush1.bf16.msra.mxu0 %v186
    %2425 = vmatprep.subr.bf16.mxu0 0
    %2426 = vmatpush1.bf16.msra.mxu0 %v187
    %2427 = vmatprep.subr.bf16.mxu0 0
    %2428 = vmatpush1.bf16.msra.mxu0 0
    %2429 = vmatprep.subr.bf16.mxu0 0
    %2430 = vmatpush1.bf16.msra.mxu0 0
    %2431 = vmatprep.subr.bf16.mxu0 0
    %2432 = vmatpush1.bf16.msra.mxu0 0
    %2433 = vmatprep.subr.bf16.mxu0 0
    %2434 = vmatpush1.bf16.msra.mxu0 0
    %2435 = vmatprep.subr.bf16.mxu0 0
    %2436 = vmatpush1.bf16.msra.mxu0 0
    %2437 = vmatprep.subr.bf16.mxu0 0
    %2438 = vmatpush1.bf16.msra.mxu0 0
    %2439 = vmatprep.subr.bf16.mxu0 0
    %2440 = vmatpush1.bf16.msra.mxu0 0
    %2441 = vmatprep.subr.bf16.mxu0 0
    %2442 = vmatpush1.bf16.msra.mxu0 0
    %2443 = vmatprep.mubr.bf16.mxu0 0
    %2444 = vmatmul.mubr.bf16.gmra.mrb[0].mxu0 %v2410
    %v2445 = vpop.f32.mrb[0].mxu0
    %v2446 = vadd.f32 0.0, %v2445
    %v2447 = vpop.f32.mrb[0].mxu0
    %v2448 = vpop.f32.mrb[0].mxu0
    %v2449 = vpop.f32.mrb[0].mxu0
    %2450 = vdwg.mxu0
    %v2451 = vxor.u32 %v2446, 2147483648
    %v2452 = vmul.f32 %v2451, 1.442695
    %v2453 = vpow.pop %v2452
    %v2454 = vadd.f32 %v2453, 1.0
    %v2455 = vrcp.pop %v2454
    %v2456 = vmul.f32 1.0, %v2455
    %v2457 = vmul.f32 %v2456, 2.0
    %v2458 = vmul.f32 %v2457, %v2356
    %v2459 = vpack.c.bf16 %v2458, %v2458
    %2460 = vmatprep.subr.bf16.mxu0 0
    %2461 = vmatpush1.bf16.msra.mxu0 %v172
    %2462 = vmatprep.subr.bf16.mxu0 0
    %2463 = vmatpush1.bf16.msra.mxu0 %v173
    %2464 = vmatprep.subr.bf16.mxu0 0
    %2465 = vmatpush1.bf16.msra.mxu0 %v174
    %2466 = vmatprep.subr.bf16.mxu0 0
    %2467 = vmatpush1.bf16.msra.mxu0 %v175
    %2468 = vmatprep.subr.bf16.mxu0 0
    %2469 = vmatpush1.bf16.msra.mxu0 %v176
    %2470 = vmatprep.subr.bf16.mxu0 0
    %2471 = vmatpush1.bf16.msra.mxu0 %v177
    %2472 = vmatprep.subr.bf16.mxu0 0
    %2473 = vmatpush1.bf16.msra.mxu0 %v178
    %2474 = vmatprep.subr.bf16.mxu0 0
    %2475 = vmatpush1.bf16.msra.mxu0 %v179
    %2476 = vmatprep.subr.bf16.mxu0 0
    %2477 = vmatpush1.bf16.msra.mxu0 0
    %2478 = vmatprep.subr.bf16.mxu0 0
    %2479 = vmatpush1.bf16.msra.mxu0 0
    %2480 = vmatprep.subr.bf16.mxu0 0
    %2481 = vmatpush1.bf16.msra.mxu0 0
    %2482 = vmatprep.subr.bf16.mxu0 0
    %2483 = vmatpush1.bf16.msra.mxu0 0
    %2484 = vmatprep.subr.bf16.mxu0 0
    %2485 = vmatpush1.bf16.msra.mxu0 0
    %2486 = vmatprep.subr.bf16.mxu0 0
    %2487 = vmatpush1.bf16.msra.mxu0 0
    %2488 = vmatprep.subr.bf16.mxu0 0
    %2489 = vmatpush1.bf16.msra.mxu0 0
    %2490 = vmatprep.subr.bf16.mxu0 0
    %2491 = vmatpush1.bf16.msra.mxu0 0
    %2492 = vmatprep.mubr.bf16.mxu0 0
    %2493 = vmatmul.mubr.bf16.gmra.mrb[0].mxu0 %v2459
    %v2494 = vpop.f32.mrb[0].mxu0
    %v2495 = vadd.f32 0.0, %v2494
    %v2496 = vpop.f32.mrb[0].mxu0
    %v2497 = vpop.f32.mrb[0].mxu0
    %v2498 = vpop.f32.mrb[0].mxu0
    %2499 = vdwg.mxu0
    %v2500 = vxor.u32 %v2495, 2147483648
    %v2501 = vmul.f32 %v2500, 1.442695
    %v2502 = vpow.pop %v2501
    %v2503 = vadd.f32 %v2502, 1.0
    %v2504 = vrcp.pop %v2503
    %v2505 = vmul.f32 1.0, %v2504
    %v2506 = vmul.f32 %v2505, 2.0
    %v2507 = vmul.f32 %v2506, %v2409
    %v2508 = vpack.c.bf16 %v2507, %v2507
    %2509 = vmatprep.subr.bf16.mxu0 0
    %2510 = vmatpush1.bf16.msra.mxu0 %v180
    %2511 = vmatprep.subr.bf16.mxu0 0
    %2512 = vmatpush1.bf16.msra.mxu0 %v181
    %2513 = vmatprep.subr.bf16.mxu0 0
    %2514 = vmatpush1.bf16.msra.mxu0 %v182
    %2515 = vmatprep.subr.bf16.mxu0 0
    %2516 = vmatpush1.bf16.msra.mxu0 %v183
    %2517 = vmatprep.subr.bf16.mxu0 0
    %2518 = vmatpush1.bf16.msra.mxu0 %v184
    %2519 = vmatprep.subr.bf16.mxu0 0
    %2520 = vmatpush1.bf16.msra.mxu0 %v185
    %2521 = vmatprep.subr.bf16.mxu0 0
    %2522 = vmatpush1.bf16.msra.mxu0 %v186
    %2523 = vmatprep.subr.bf16.mxu0 0
    %2524 = vmatpush1.bf16.msra.mxu0 %v187
    %2525 = vmatprep.subr.bf16.mxu0 0
    %2526 = vmatpush1.bf16.msra.mxu0 0
    %2527 = vmatprep.subr.bf16.mxu0 0
    %2528 = vmatpush1.bf16.msra.mxu0 0
    %2529 = vmatprep.subr.bf16.mxu0 0
    %2530 = vmatpush1.bf16.msra.mxu0 0
    %2531 = vmatprep.subr.bf16.mxu0 0
    %2532 = vmatpush1.bf16.msra.mxu0 0
    %2533 = vmatprep.subr.bf16.mxu0 0
    %2534 = vmatpush1.bf16.msra.mxu0 0
    %2535 = vmatprep.subr.bf16.mxu0 0
    %2536 = vmatpush1.bf16.msra.mxu0 0
    %2537 = vmatprep.subr.bf16.mxu0 0
    %2538 = vmatpush1.bf16.msra.mxu0 0
    %2539 = vmatprep.subr.bf16.mxu0 0
    %2540 = vmatpush1.bf16.msra.mxu0 0
    %2541 = vmatprep.mubr.bf16.mxu0 0
    %2542 = vmatmul.mubr.bf16.gmra.mrb[0].mxu0 %v2508
    %v2543 = vpop.f32.mrb[0].mxu0
    %v2544 = vadd.f32 0.0, %v2543
    %v2545 = vpop.f32.mrb[0].mxu0
    %v2546 = vpop.f32.mrb[0].mxu0
    %v2547 = vpop.f32.mrb[0].mxu0
    %2548 = vdwg.mxu0
    %v2549 = vxor.u32 %v2544, 2147483648
    %v2550 = vmul.f32 %v2549, 1.442695
    %v2551 = vpow.pop %v2550
    %v2552 = vadd.f32 %v2551, 1.0
    %v2553 = vrcp.pop %v2552
    %v2554 = vmul.f32 1.0, %v2553
    %v2555 = vmul.f32 %v2554, 2.0
    %v2556 = vmul.f32 %v2555, %v2458
    %v2557 = vpack.c.bf16 %v2556, %v2556
    %2558 = vmatprep.subr.bf16.mxu0 %v109
    %2559 = vmatpush1.bf16.msra.mxu0 %v108
    %2560 = vmatprep.subr.bf16.mxu0 %v113
    %2561 = vmatpush1.bf16.msra.mxu0 %v112
    %2562 = vmatprep.subr.bf16.mxu0 %v117
    %2563 = vmatpush1.bf16.msra.mxu0 %v116
    %2564 = vmatprep.subr.bf16.mxu0 %v121
    %2565 = vmatpush1.bf16.msra.mxu0 %v120
    %2566 = vmatprep.subr.bf16.mxu0 %v125
    %2567 = vmatpush1.bf16.msra.mxu0 %v124
    %2568 = vmatprep.subr.bf16.mxu0 %v129
    %2569 = vmatpush1.bf16.msra.mxu0 %v128
    %2570 = vmatprep.subr.bf16.mxu0 %v133
    %2571 = vmatpush1.bf16.msra.mxu0 %v132
    %2572 = vmatprep.subr.bf16.mxu0 %v137
    %2573 = vmatpush1.bf16.msra.mxu0 %v136
    %2574 = vmatprep.subr.bf16.mxu0 %v141
    %2575 = vmatpush1.bf16.msra.mxu0 %v140
    %2576 = vmatprep.subr.bf16.mxu0 %v145
    %2577 = vmatpush1.bf16.msra.mxu0 %v144
    %2578 = vmatprep.subr.bf16.mxu0 %v149
    %2579 = vmatpush1.bf16.msra.mxu0 %v148
    %2580 = vmatprep.subr.bf16.mxu0 %v153
    %2581 = vmatpush1.bf16.msra.mxu0 %v152
    %2582 = vmatprep.subr.bf16.mxu0 %v157
    %2583 = vmatpush1.bf16.msra.mxu0 %v156
    %2584 = vmatprep.subr.bf16.mxu0 %v161
    %2585 = vmatpush1.bf16.msra.mxu0 %v160
    %2586 = vmatprep.subr.bf16.mxu0 %v165
    %2587 = vmatpush1.bf16.msra.mxu0 %v164
    %2588 = vmatprep.subr.bf16.mxu0 %v169
    %2589 = vmatpush1.bf16.msra.mxu0 %v168
    %2590 = vmatprep.mubr.bf16.mxu0 %v2557
    %2591 = vmatmul.mubr.bf16.gmra.mrb[0].mxu0 %v2508
    %v2592 = vpop.f32.mrb[0].mxu0
    %v2593 = vadd.f32 %v393, %v2592
    %v2594 = vpop.f32.mrb[0].mxu0
    %v2595 = vadd.f32 %v397, %v2594
    %v2596 = vpop.f32.mrb[0].mxu0
    %v2597 = vpop.f32.mrb[0].mxu0
    %2598 = vdwg.mxu0
    %2599 = vmatprep.subr.bf16.mxu0 %v111
    %2600 = vmatpush1.bf16.msra.mxu0 %v110
    %2601 = vmatprep.subr.bf16.mxu0 %v115
    %2602 = vmatpush1.bf16.msra.mxu0 %v114
    %2603 = vmatprep.subr.bf16.mxu0 %v119
    %2604 = vmatpush1.bf16.msra.mxu0 %v118
    %2605 = vmatprep.subr.bf16.mxu0 %v123
    %2606 = vmatpush1.bf16.msra.mxu0 %v122
    %2607 = vmatprep.subr.bf16.mxu0 %v127
    %2608 = vmatpush1.bf16.msra.mxu0 %v126
    %2609 = vmatprep.subr.bf16.mxu0 %v131
    %2610 = vmatpush1.bf16.msra.mxu0 %v130
    %2611 = vmatprep.subr.bf16.mxu0 %v135
    %2612 = vmatpush1.bf16.msra.mxu0 %v134
    %2613 = vmatprep.subr.bf16.mxu0 %v139
    %2614 = vmatpush1.bf16.msra.mxu0 %v138
    %2615 = vmatprep.subr.bf16.mxu0 %v143
    %2616 = vmatpush1.bf16.msra.mxu0 %v142
    %2617 = vmatprep.subr.bf16.mxu0 %v147
    %2618 = vmatpush1.bf16.msra.mxu0 %v146
    %2619 = vmatprep.subr.bf16.mxu0 %v151
    %2620 = vmatpush1.bf16.msra.mxu0 %v150
    %2621 = vmatprep.subr.bf16.mxu0 %v155
    %2622 = vmatpush1.bf16.msra.mxu0 %v154
    %2623 = vmatprep.subr.bf16.mxu0 %v159
    %2624 = vmatpush1.bf16.msra.mxu0 %v158
    %2625 = vmatprep.subr.bf16.mxu0 %v163
    %2626 = vmatpush1.bf16.msra.mxu0 %v162
    %2627 = vmatprep.subr.bf16.mxu0 %v167
    %2628 = vmatpush1.bf16.msra.mxu0 %v166
    %2629 = vmatprep.subr.bf16.mxu0 %v171
    %2630 = vmatpush1.bf16.msra.mxu0 %v170
    %2631 = vmatprep.mubr.bf16.mxu0 %v2557
    %2632 = vmatmul.mubr.bf16.gmra.mrb[0].mxu0 %v2508
    %v2633 = vpop.f32.mrb[0].mxu0
    %v2634 = vadd.f32 %v401, %v2633
    %v2635 = vpop.f32.mrb[0].mxu0
    %v2636 = vadd.f32 %v405, %v2635
    %v2637 = vpop.f32.mrb[0].mxu0
    %v2638 = vpop.f32.mrb[0].mxu0
    %2639 = vdwg.mxu0
    %v2640 = vxor.u32 %v2593, 2147483648
    %v2641 = vmul.f32 %v2640, 1.442695
    %v2642 = vpow.pop %v2641
    %v2643 = vadd.f32 %v2642, 1.0
    %v2644 = vrcp.pop %v2643
    %v2645 = vmul.f32 1.0, %v2644
    %v2646 = vxor.u32 %v2595, 2147483648
    %v2647 = vmul.f32 %v2646, 1.442695
    %v2648 = vpow.pop %v2647
    %v2649 = vadd.f32 %v2648, 1.0
    %v2650 = vrcp.pop %v2649
    %v2651 = vmul.f32 1.0, %v2650
    %v2652 = vtanh.pop %v2634
    %v2653 = vxor.u32 %v2636, 2147483648
    %v2654 = vmul.f32 %v2653, 1.442695
    %v2655 = vpow.pop %v2654
    %v2656 = vadd.f32 %v2655, 1.0
    %v2657 = vrcp.pop %v2656
    %v2658 = vmul.f32 1.0, %v2657
    %v2659 = vmul.f32 %v2651, %v2354
    %v2660 = vmul.f32 %v2645, %v2652
    %v2661 = vadd.f32 %v2659, %v2660
    %v2662 = vtanh.pop %v2661
    %v2663 = vmul.f32 %v2658, %v2662
    %s2664 = scalar_lea.vmem [#allocation11], 56
    %2665 = vst [vmem:[%s2664] sm:$0xff] %v2663
    %2666 = vst [vmem:[#allocation5] sm:$0xff] %v2663
    %2667 = vst [vmem:[#allocation6] sm:$0xff] %v2661
    // Predicated region
    $region26: #{tpu_custom_call.1} parent=1 // pred_check
      %p2668 = pneg %p33
    $region27: #{tpu_custom_call.1} parent=1 // pred_check_branch
      %2670 = sbr.rel (%p2668) target = $region29
    $region28: #{tpu_custom_call.1} parent=1 // pred_region
      %2671 = vst [vmem:[#allocation12] sm:$0xff] %v2661
    $region29: #{tpu_custom_call.1} parent=1 // pred_fallthru
      _
    // Predicated region
    $region30: #{tpu_custom_call.1} parent=1 // pred_check
      _
    $region31: #{tpu_custom_call.1} parent=1 // pred_check_branch
      %2673 = sbr.rel (0) target = $region33
    $region32: #{tpu_custom_call.1} parent=1 // pred_region
      %s2675 = ssub.s32 1024, 1024
      %2676 = vsyncadd [#allocation10], %s2675
      %s2677 = sshll.u32 [#allocation11], 4
      %s2678 = int_to_ptr.vmem [resolvable:$true] %s2677
      %2683 = dma.vmem_to_hbm [thread:$0]  %s2678, 1024, %s5, [#allocation10], 128, 128, 8
    $region33: #{tpu_custom_call.1} parent=1 // pred_fallthru
      _
    // Predicated region
    $region34: #{tpu_custom_call.1} parent=1 // pred_check
      _
    $region35: #{tpu_custom_call.1} parent=1 // pred_check_branch
      %2685 = sbr.rel (0) target = $region37
    $region36: #{tpu_custom_call.1} parent=1 // pred_region
      %s2687 = ssub.s32 128, 128
      %2688 = vsyncadd [#allocation13], %s2687
      %s2690 = sshll.u32 [#allocation12], 4
      %s2691 = int_to_ptr.vmem [resolvable:$true] %s2690
      %2693 = dma.vmem_to_hbm [thread:$0]  %s2691, 128, %s6, [#allocation13]
    $region37: #{tpu_custom_call.1} parent=1 // pred_fallthru
      _
    // Predicated region
    $region38: #{tpu_custom_call.1} parent=1 // pred_check
      _
    $region39: #{tpu_custom_call.1} parent=1 // pred_check_branch
      %2695 = sbr.rel (0) target = $region41
    $region40: #{tpu_custom_call.1} parent=1 // pred_region
      %2696 = dma.done [#allocation10], 1024
    $region41: #{tpu_custom_call.1} parent=1 // pred_fallthru
      _
    // Predicated region
    $region42: #{tpu_custom_call.1} parent=1 // pred_check
      _
    $region43: #{tpu_custom_call.1} parent=1 // pred_check_branch
      %2698 = sbr.rel (0) target = $region45
    $region44: #{tpu_custom_call.1} parent=1 // pred_region
      %2699 = dma.done [#allocation13], 128
    $region45: #{tpu_custom_call.1} parent=1 // pred_fallthru
      _
    %2700 = vsyncpa [#allocation9], 1
    %2701 = vsyncpa [#allocation10], 1
    %2702 = vsyncpa [#allocation13], 1
  %2703 = vsyncmov [#allocation7]
  %s2704 = vpop.sfrf %2703
  %p2705 = scmp.eq.s32.totalorder %s2704, 0
  %p2706 = pneg %p2705
  %2708 = shalt.err (%p2706)
  %s2709 = scalar_lea.sflag [#allocation7], 1
  %2710 = vsyncmov %s2709
  %s2711 = vpop.sfrf %2710
  %p2712 = scmp.eq.s32.totalorder %s2711, 0
  %p2713 = pneg %p2712
  %2715 = shalt.err (%p2713)
  %s2716 = scalar_lea.sflag [#allocation7], 2
  %2717 = vsyncmov %s2716
  %s2718 = vpop.sfrf %2717
  %p2719 = scmp.eq.s32.totalorder %s2718, 0
  %p2720 = pneg %p2719
  %2722 = shalt.err (%p2720)

</llo_original>
